<compile_context>
chip_gen: v6e
topology: v6e:2x2x1
jax: 0.10.0
libtpu: 0.0.40
codegen_flags: <defaults>
</compile_context>

<pallas_src>
import functools

import jax
import jax.numpy as jnp
from jax.experimental import pallas as pl
from jax.experimental.pallas import tpu as pltpu


def _cosine_vq_kernel(x_ref, e_norm_t_ref, embed_ref, q_ref, idx_ref):
    # x_ref:        (TN, D)    row tile of the flattened input
    # e_norm_t_ref: (D,  K)    l2-normalized codebook, pre-transposed (resident)
    # embed_ref:    (K,  D)    raw codebook (resident)
    # q_ref:        (TN, D)    quantized rows (gathered from the raw codebook)
    # idx_ref:      (1, 1, TN) argmax codebook indices (lane-dense int32)
    scores = jnp.dot(
        x_ref[...], e_norm_t_ref[...], preferred_element_type=jnp.float32
    )  # (TN, K) f32 on the MXU; ||x|| scaling omitted (argmax-invariant)
    tn, k = scores.shape

    col = jax.lax.broadcasted_iota(jnp.int32, (tn, k), 1)
    max_val = jnp.max(scores, axis=-1, keepdims=True)  # (TN, 1)
    # Lowest index attaining the row max (matches torch.max(...).indices).
    idx = jnp.min(jnp.where(scores == max_val, col, k), axis=-1)  # (TN,) int32

    # Gather from the RAW codebook as a one-hot matmul: exact row selection
    # (0*x + 1*row sums exactly), rides the MXU, reuses the resident tile.
    onehot = (col == idx[:, None]).astype(embed_ref.dtype)  # (TN, K)
    q = jnp.dot(onehot, embed_ref[...], preferred_element_type=jnp.float32)
    q_ref[...] = q.astype(q_ref.dtype)

    idx_ref[...] = idx[None, None, :]


@functools.partial(jax.jit, static_argnames=("block_rows",))
def cosine_sim_codebook_forward(x, embed, *, block_rows=256):
    """Pallas forward of CosineSimCodebook: returns (quantize, embed_ind)."""
    if block_rows % 128 != 0:
        raise ValueError("block_rows must be a multiple of 128")
    orig_shape = x.shape
    dim = orig_shape[-1]
    codebook_size, dim_e = embed.shape
    if dim_e != dim:
        raise ValueError("embed dim mismatch")

    n = 1
    for s in orig_shape[:-1]:
        n *= s
    flat = x.reshape(n, dim)

    # Precompute l2norm(embed) once (amortized over every row tile) and pass it
    # pre-transposed so the score matmul needs no in-kernel transpose.
    e32 = embed.astype(jnp.float32)
    e_norm = e32 / jnp.maximum(
        jnp.sqrt(jnp.sum(e32 * e32, axis=-1, keepdims=True)), 1e-12
    )
    e_norm_t = e_norm.astype(embed.dtype).T  # (dim, K)

    grid_n = -(-n // block_rows)
    n_pad = grid_n * block_rows
    if n_pad != n:
        flat = jnp.pad(flat, ((0, n_pad - n), (0, 0)))

    q_pad, idx_pad = pl.pallas_call(
        _cosine_vq_kernel,
        out_shape=(
            jax.ShapeDtypeStruct((n_pad, dim), x.dtype),
            jax.ShapeDtypeStruct((grid_n, 1, block_rows), jnp.int32),
        ),
        grid_spec=pltpu.PrefetchScalarGridSpec(
            num_scalar_prefetch=0,
            grid=(grid_n,),
            in_specs=[
                # x: tiled over rows
                pl.BlockSpec((block_rows, dim), lambda i: (i, 0)),
                # normalized codebook (transposed): resident, DMA'd once
                pl.BlockSpec((dim, codebook_size), lambda i: (0, 0)),
                # raw codebook: resident, DMA'd once
                pl.BlockSpec((codebook_size, dim), lambda i: (0, 0)),
            ],
            out_specs=[
                pl.BlockSpec((block_rows, dim), lambda i: (i, 0)),
                pl.BlockSpec((1, 1, block_rows), lambda i: (i, 0, 0)),
            ],
        ),
        compiler_params=pltpu.CompilerParams(
            dimension_semantics=("parallel",)
        ),
    )(flat, e_norm_t, embed)

    quantize = q_pad[:n].reshape(orig_shape)
    embed_ind = idx_pad.reshape(-1)[:n].reshape(orig_shape[:-1])
    return quantize, embed_ind


if __name__ == "__main__":
    key = jax.random.PRNGKey(0)
    k1, k2 = jax.random.split(key)

    batch, seq, dim = 2, 256, 128
    codebook_size = 512

    x = jax.random.normal(k1, (batch, seq, dim), dtype=jnp.float32)
    # Raw codebook buffer state (need not be unit-norm, e.g. after EMA updates).
    embed = jax.random.normal(k2, (codebook_size, dim), dtype=jnp.float32)

    quantize, embed_ind = cosine_sim_codebook_forward(x, embed, block_rows=256)
    jax.block_until_ready((quantize, embed_ind))

    # Pure-JAX reference matching the PyTorch forward.
    flat = x.reshape(-1, dim)
    flat_n = flat / jnp.maximum(
        jnp.linalg.norm(flat, axis=-1, keepdims=True), 1e-12
    )
    e_n = embed / jnp.maximum(
        jnp.linalg.norm(embed, axis=-1, keepdims=True), 1e-12
    )
    ref_idx = jnp.argmax(flat_n @ e_n.T, axis=-1).astype(jnp.int32)
    ref_q = embed[ref_idx].reshape(batch, seq, dim)
    ref_idx = ref_idx.reshape(batch, seq)

    assert quantize.shape == (batch, seq, dim)
    assert embed_ind.shape == (batch, seq)
    assert jnp.array_equal(embed_ind, ref_idx), "index mismatch vs reference"
    assert jnp.allclose(quantize, ref_q, atol=1e-5, rtol=1e-5), "quantize mismatch"

    print("KERNEL_OK")
</pallas_src>

<mosaic_0001>
module attributes {stable_mosaic.version = 11 : i64} {
  func.func @_cosine_vq_kernel(%arg0: i32, %arg1: memref<256x128xf32, #tpu.memory_space<vmem>>, %arg2: memref<128x512xf32, #tpu.memory_space<vmem>>, %arg3: memref<512x128xf32, #tpu.memory_space<vmem>>, %arg4: memref<256x128xf32, #tpu.memory_space<vmem>>, %arg5: memref<1x1x256xi32, #tpu.memory_space<vmem>>) attributes {dimension_semantics = [#tpu.dimension_semantics<parallel>], iteration_bounds = array<i64: 2>, scalar_prefetch = 0 : i64, scratch_operands = 0 : i64, tpu.core_type = #tpu.core_type<tc>, window_params = [{transform_indices = @transform_0, window_bounds = array<i64: 256, 128>}, {pipeline_mode = #tpu.pipeline_mode<synchronous>, transform_indices = @transform_1, window_bounds = array<i64: 128, 512>}, {pipeline_mode = #tpu.pipeline_mode<synchronous>, transform_indices = @transform_2, window_bounds = array<i64: 512, 128>}, {transform_indices = @transform_3, window_bounds = array<i64: 256, 128>}, {transform_indices = @transform_4, window_bounds = array<i64: 1, 1, 256>}]} {
    %c0 = arith.constant 0 : index
    %c0_0 = arith.constant 0 : index
    %0 = vector.load %arg1[%c0, %c0_0] : memref<256x128xf32, #tpu.memory_space<vmem>>, vector<256x128xf32>
    %c0_1 = arith.constant 0 : index
    %c0_2 = arith.constant 0 : index
    %1 = vector.load %arg2[%c0_1, %c0_2] : memref<128x512xf32, #tpu.memory_space<vmem>>, vector<128x512xf32>
    %cst = arith.constant dense<0.000000e+00> : vector<256x512xf32>
    %2 = tpu.matmul %0, %1, %cst {dimension_numbers = #tpu.dot_dimension_numbers<[1], [0], [0], [1], [0, 0, 1, 1], [], []>} : vector<256x128xf32>, vector<128x512xf32>, vector<256x512xf32> -> vector<256x512xf32>
    %3 = tpu.iota {dimensions = array<i32: 1>} : vector<256x512xi32>
    %cst_3 = arith.constant dense<0xFF800000> : vector<256xf32>
    %4 = vector.multi_reduction <maximumf>, %2, %cst_3 [1] : vector<256x512xf32> to vector<256xf32>
    %5 = vector.shape_cast %4 : vector<256xf32> to vector<256x1xf32>
    %6 = vector.broadcast %5 : vector<256x1xf32> to vector<256x512xf32>
    %7 = arith.cmpf oeq, %2, %6 : vector<256x512xf32>
    %c512_i32 = arith.constant 512 : i32
    %8 = vector.broadcast %c512_i32 : i32 to vector<256x512xi32>
    %9 = arith.select %7, %3, %8 : vector<256x512xi1>, vector<256x512xi32>
    %cst_4 = arith.constant dense<2147483647> : vector<256xi32>
    %10 = vector.multi_reduction <minsi>, %9, %cst_4 [1] : vector<256x512xi32> to vector<256xi32>
    %11 = vector.shape_cast %10 : vector<256xi32> to vector<256x1xi32>
    %12 = vector.broadcast %11 : vector<256x1xi32> to vector<256x512xi32>
    %13 = arith.cmpi eq, %3, %12 : vector<256x512xi32>
    %14 = arith.extui %13 : vector<256x512xi1> to vector<256x512xi32>
    %15 = arith.sitofp %14 : vector<256x512xi32> to vector<256x512xf32>
    %c0_5 = arith.constant 0 : index
    %c0_6 = arith.constant 0 : index
    %16 = vector.load %arg3[%c0_5, %c0_6] : memref<512x128xf32, #tpu.memory_space<vmem>>, vector<512x128xf32>
    %cst_7 = arith.constant dense<0.000000e+00> : vector<256x128xf32>
    %17 = tpu.matmul %15, %16, %cst_7 {dimension_numbers = #tpu.dot_dimension_numbers<[1], [0], [0], [1], [0, 0, 1, 1], [], []>} : vector<256x512xf32>, vector<512x128xf32>, vector<256x128xf32> -> vector<256x128xf32>
    %c0_8 = arith.constant 0 : index
    %c0_9 = arith.constant 0 : index
    %18 = vector.load %arg4[%c0_8, %c0_9] : memref<256x128xf32, #tpu.memory_space<vmem>>, vector<256x128xf32>
    tpu.vector_store %arg4[%c0_8, %c0_9], %17 {strides = array<i32>} : memref<256x128xf32, #tpu.memory_space<vmem>>, vector<256x128xf32>,
    %19 = vector.shape_cast %10 : vector<256xi32> to vector<1x1x256xi32>
    %c0_10 = arith.constant 0 : index
    %c0_11 = arith.constant 0 : index
    %c0_12 = arith.constant 0 : index
    %20 = vector.load %arg5[%c0_10, %c0_11, %c0_12] : memref<1x1x256xi32, #tpu.memory_space<vmem>>, vector<1x1x256xi32>
    tpu.vector_store %arg5[%c0_10, %c0_11, %c0_12], %19 {strides = array<i32>} : memref<1x1x256xi32, #tpu.memory_space<vmem>>, vector<1x1x256xi32>,
    return
  }
  func.func @transform_0(%arg0: i32) -> (i32, i32) {
    %c0_i32 = arith.constant 0 : i32
    %c0_i32_0 = arith.constant 0 : i32
    return %arg0, %c0_i32 : i32, i32
  }
  func.func @transform_1(%arg0: i32) -> (i32, i32) {
    %c0_i32 = arith.constant 0 : i32
    %c0_i32_0 = arith.constant 0 : i32
    %c0_i32_1 = arith.constant 0 : i32
    return %c0_i32, %c0_i32_0 : i32, i32
  }
  func.func @transform_2(%arg0: i32) -> (i32, i32) {
    %c0_i32 = arith.constant 0 : i32
    %c0_i32_0 = arith.constant 0 : i32
    %c0_i32_1 = arith.constant 0 : i32
    return %c0_i32, %c0_i32_0 : i32, i32
  }
  func.func @transform_3(%arg0: i32) -> (i32, i32) {
    %c0_i32 = arith.constant 0 : i32
    %c0_i32_0 = arith.constant 0 : i32
    return %arg0, %c0_i32 : i32, i32
  }
  func.func @transform_4(%arg0: i32) -> (i32, i32, i32) {
    %c0_i32 = arith.constant 0 : i32
    %c0_i32_0 = arith.constant 0 : i32
    %c0_i32_1 = arith.constant 0 : i32
    return %arg0, %c0_i32, %c0_i32_0 : i32, i32, i32
  }
}

</mosaic_0001>

<llo_original>
// kernel: cosine_sim_codebook_forward.1
$region0: #{cosine_sim_codebook_forward.1}
  #allocation0 [shape = 'u32[]', space=smem, size = 0x4, offset = 0x4, fixed_abs, tag = 'smem constant byte address 0x4 - core index']
  #allocation1 [shape = 'u32[144,128]{1,0:T(1,128)}', space=vmem, size = 0x12000, scoped, tag = 'internal scratch']
  %s0 = inlined_call_operand.vmem [shape: f32[512,128], index: 0, kind: input, shape index: {}]
  %s1 = inlined_call_operand.vmem [shape: f32[128,512], index: 1, kind: input, shape index: {}]
  %s2 = inlined_call_operand.vmem [shape: f32[512,128], index: 2, kind: input, shape index: {}]
  %s3 = inlined_call_operand.hbm [shape: f32[512,128], index: 3, kind: output, shape index: {0}]
  %s4 = inlined_call_operand.vmem [shape: s32[2,1,256], index: 4, kind: output, shape index: {1}]
  %5 = xla_tuple %s3, %s4
  %s6 = sld [smem:[#allocation0]]
  $region53: #{cosine_sim_codebook_forward.1} parent=0
    _
  %s8 = ssub.s32 1, %s6
  %s9 = scalar_select 0, %s8, %s6
  $region1: #{cosine_sim_codebook_forward.1} parent=0
    #allocation2 [shape = 'u8[262144]{0}', space=vmem, size = 0x40000, scoped, tag = 'output window, operand 0']
    #allocation3 [shape = 's32[2]{0}', space=sflag, size = 0x8, scoped, tag = 'scoped memory for cosine_sim_codebook_forward.1']
    %10 = vsyncpa [#allocation3], 0
    %s11 = scalar_lea.sflag [#allocation3], 1
    %12 = vsyncpa %s11, 0
    loop: start=0, step=1, limit=4
    $region2: #{cosine_sim_codebook_forward.1} parent=1 // loop_pre_header
      _
    $region3: #{cosine_sim_codebook_forward.1} parent=1 // loop_header
      %s14 = sphi 0, %s18
      %p15 = scmp.ge.s32.totalorder %s14, 4
      %s24 = sphi 0, %s26
      %s27 = sphi 0, %s24
      %s28 = sphi 0, %s27
      %s44 = sphi 0, %s28
      %s48 = sphi 0, %s48
      %s50 = sphi 0, %s48
      %s51 = sphi 0, %s50
      %s65 = sphi 0, %s51
      %s69 = sphi 0, %s69
      %s71 = sphi 0, %s69
      %s72 = sphi 0, %s71
      %s86 = sphi 0, %s72
      %s92 = sphi 0, %s94
      %s95 = sphi 0, %s92
      %s96 = sphi 0, %s95
      %s112 = sphi 0, %s96
      %s118 = sphi 0, %s120
      %s121 = sphi 0, %s118
      %s122 = sphi 0, %s121
      %s138 = sphi 0, %s122
    $region4: #{cosine_sim_codebook_forward.1} parent=1 // loop_header_branch
      %17 = sbr.rel (%p15) target = $region8
    $region5: #{cosine_sim_codebook_forward.1} parent=1 // loop_body
      %s19 = ssub.s32 %s14, 1
      %s20 = ssub.s32 %s14, 2
      %s21 = sadd.s32 %s14, 1
      %s22 = ssub.s32 %s14, %s21
      %p23 = scmp.eq.s32.totalorder %s22, 0
      %s25 = sadd.s32 %s24, 1
      %s26 = scalar_select %p23, %s24, %s25
      %p29 = pneg %p23
      %p30 = scmp.eq.s32.totalorder %s14, 1
      %p31 = por %p29, %p30
      %p32 = scmp.ne.s32.totalorder %s24, %s27
      %p33 = scmp.eq.s32.totalorder %s14, 0
      %p34 = por %p32, %p33
      %p35 = scmp.ne.s32.totalorder %s24, %s27
      %p36 = scmp.eq.s32.totalorder %s19, 1
      %p37 = por %p35, %p36
      %p38 = scmp.ne.s32.totalorder %s27, %s28
      %p39 = scmp.eq.s32.totalorder %s19, 0
      %p40 = por %p38, %p39
      %p41 = scmp.ne.s32.totalorder %s27, %s28
      %p42 = scmp.eq.s32.totalorder %s20, 1
      %p43 = por %p41, %p42
      %p45 = scmp.ne.s32.totalorder %s28, %s44
      %p46 = scmp.eq.s32.totalorder %s20, 0
      %p47 = por %p45, %p46
      %s49 = sadd.s32 %s48, 1
      %p52 = scmp.eq.s32.totalorder %s14, 1
      %p53 = scmp.ne.s32.totalorder %s48, %s50
      %p54 = scmp.eq.s32.totalorder %s14, 0
      %p55 = por %p53, %p54
      %p56 = scmp.ne.s32.totalorder %s48, %s50
      %p57 = scmp.eq.s32.totalorder %s19, 1
      %p58 = por %p56, %p57
      %p59 = scmp.ne.s32.totalorder %s50, %s51
      %p60 = scmp.eq.s32.totalorder %s19, 0
      %p61 = por %p59, %p60
      %p62 = scmp.ne.s32.totalorder %s50, %s51
      %p63 = scmp.eq.s32.totalorder %s20, 1
      %p64 = por %p62, %p63
      %p66 = scmp.ne.s32.totalorder %s51, %s65
      %p67 = scmp.eq.s32.totalorder %s20, 0
      %p68 = por %p66, %p67
      %s70 = sadd.s32 %s69, 1
      %p73 = scmp.eq.s32.totalorder %s14, 1
      %p74 = scmp.ne.s32.totalorder %s69, %s71
      %p75 = scmp.eq.s32.totalorder %s14, 0
      %p76 = por %p74, %p75
      %p77 = scmp.ne.s32.totalorder %s69, %s71
      %p78 = scmp.eq.s32.totalorder %s19, 1
      %p79 = por %p77, %p78
      %p80 = scmp.ne.s32.totalorder %s71, %s72
      %p81 = scmp.eq.s32.totalorder %s19, 0
      %p82 = por %p80, %p81
      %p83 = scmp.ne.s32.totalorder %s71, %s72
      %p84 = scmp.eq.s32.totalorder %s20, 1
      %p85 = por %p83, %p84
      %p87 = scmp.ne.s32.totalorder %s72, %s86
      %p88 = scmp.eq.s32.totalorder %s20, 0
      %p89 = por %p87, %p88
      %s90 = ssub.s32 %s14, %s21
      %p91 = scmp.eq.s32.totalorder %s90, 0
      %s93 = sadd.s32 %s92, 1
      %s94 = scalar_select %p91, %s92, %s93
      %p97 = pneg %p91
      %p98 = scmp.eq.s32.totalorder %s14, 1
      %p99 = por %p97, %p98
      %p100 = scmp.ne.s32.totalorder %s92, %s95
      %p101 = scmp.eq.s32.totalorder %s14, 0
      %p102 = por %p100, %p101
      %p103 = scmp.ne.s32.totalorder %s92, %s95
      %p104 = scmp.eq.s32.totalorder %s19, 1
      %p105 = por %p103, %p104
      %p106 = scmp.ne.s32.totalorder %s95, %s96
      %p107 = scmp.eq.s32.totalorder %s19, 0
      %p108 = por %p106, %p107
      %p109 = scmp.ne.s32.totalorder %s95, %s96
      %p110 = scmp.eq.s32.totalorder %s20, 1
      %p111 = por %p109, %p110
      %p113 = scmp.ne.s32.totalorder %s96, %s112
      %p114 = scmp.eq.s32.totalorder %s20, 0
      %p115 = por %p113, %p114
      %s116 = ssub.s32 %s14, %s21
      %p117 = scmp.eq.s32.totalorder %s116, 0
      %s119 = sadd.s32 %s118, 1
      %s120 = scalar_select %p117, %s118, %s119
      %p123 = pneg %p117
      %p124 = scmp.eq.s32.totalorder %s14, 1
      %p125 = por %p123, %p124
      %p126 = scmp.ne.s32.totalorder %s118, %s121
      %p127 = scmp.eq.s32.totalorder %s14, 0
      %p128 = por %p126, %p127
      %p129 = scmp.ne.s32.totalorder %s118, %s121
      %p130 = scmp.eq.s32.totalorder %s19, 1
      %p131 = por %p129, %p130
      %p132 = scmp.ne.s32.totalorder %s121, %s122
      %p133 = scmp.eq.s32.totalorder %s19, 0
      %p134 = por %p132, %p133
      %p135 = scmp.ne.s32.totalorder %s121, %s122
      %p136 = scmp.eq.s32.totalorder %s20, 1
      %p137 = por %p135, %p136
      %p139 = scmp.ne.s32.totalorder %s122, %s138
      %p140 = scmp.eq.s32.totalorder %s20, 0
      %p141 = por %p139, %p140
      %p142 = scmp.le.s32.totalorder 1, %s14
      %p143 = scmp.lt.s32.totalorder %s14, 3
      %p144 = pnand %p142, %p143
      %p145 = pneg %p144
      // Predicated region
      $region9: #{cosine_sim_codebook_forward.1} parent=5 // pred_check
        _
      $region10: #{cosine_sim_codebook_forward.1} parent=5 // pred_check_branch
        %147 = sbr.rel (%p144) target = $region12
      $region11: #{cosine_sim_codebook_forward.1} parent=5 // pred_region
        %s148 = ssub.s32 %s14, 1
        // Predicated region
        $region13: #{cosine_sim_codebook_forward.1} parent=11 // pred_check
          %p149 = pneg %p61
        $region14: #{cosine_sim_codebook_forward.1} parent=11 // pred_check_branch
          %151 = sbr.rel (%p149) target = $region16
        $region15: #{cosine_sim_codebook_forward.1} parent=11 // pred_region
          _
        $region16: #{cosine_sim_codebook_forward.1} parent=11 // pred_fallthru
          _
        // Predicated region
        $region17: #{cosine_sim_codebook_forward.1} parent=11 // pred_check
          %p152 = pneg %p82
        $region18: #{cosine_sim_codebook_forward.1} parent=11 // pred_check_branch
          %154 = sbr.rel (%p152) target = $region20
        $region19: #{cosine_sim_codebook_forward.1} parent=11 // pred_region
          _
        $region20: #{cosine_sim_codebook_forward.1} parent=11 // pred_fallthru
          _
      $region12: #{cosine_sim_codebook_forward.1} parent=5 // pred_fallthru
        _
      %p155 = scmp.lt.s32.totalorder %s14, 2
      // Predicated region
      $region21: #{cosine_sim_codebook_forward.1} parent=5 // pred_check
        %p156 = pneg %p155
      $region22: #{cosine_sim_codebook_forward.1} parent=5 // pred_check_branch
        %158 = sbr.rel (%p156) target = $region24
      $region23: #{cosine_sim_codebook_forward.1} parent=5 // pred_region
        // Predicated region
        $region25: #{cosine_sim_codebook_forward.1} parent=23 // pred_check
          %p159 = pneg %p34
        $region26: #{cosine_sim_codebook_forward.1} parent=23 // pred_check_branch
          %161 = sbr.rel (%p159) target = $region28
        $region27: #{cosine_sim_codebook_forward.1} parent=23 // pred_region
          %s162 = smul.u32 32, %s14
          %p163 = scmp.lt.s32.totalorder %s162, 63
          %s164 = scalar_select %p163, %s162, 63
          %s165 = smul.addr %s164, 8
          %s166 = scalar_lea.vmem %s0, %s165
          %s167 = smul.u32 32, %s14
        $region28: #{cosine_sim_codebook_forward.1} parent=23 // pred_fallthru
          _
      $region24: #{cosine_sim_codebook_forward.1} parent=5 // pred_fallthru
        _
      %p168 = scmp.le.s32.totalorder 1, %s14
      %p169 = scmp.lt.s32.totalorder %s14, 3
      %p170 = pnand %p168, %p169
      %p171 = pneg %p170
      // Predicated region
      $region29: #{cosine_sim_codebook_forward.1} parent=5 // pred_check
        _
      $region30: #{cosine_sim_codebook_forward.1} parent=5 // pred_check_branch
        %173 = sbr.rel (%p170) target = $region32
      $region31: #{cosine_sim_codebook_forward.1} parent=5 // pred_region
        %s174 = ssub.s32 %s14, 1
        %s175 = smul.u32 32, %s19
        %p176 = scmp.lt.s32.totalorder %s175, 63
        %s177 = scalar_select %p176, %s175, 63
        %s178 = smul.addr %s177, 8
        %s179 = scalar_lea.vmem %s0, %s178
        %p180 = pneg %p40
        %p181 = pneg %p37
        %p182 = pneg %p61
        %p183 = pneg %p58
        %p184 = pneg %p82
        %p185 = pneg %p79
        %p186 = pneg %p108
        %p187 = pneg %p105
        %s188 = sand.u32 %s95, 1
        %s189 = scalar_lea.sflag [#allocation3], %s188
        %s190 = sand.u32 %s95, 1
        %s191 = smul.addr %s190, 256
        %s192 = scalar_lea.vmem [#allocation2], %s191
        %p193 = pneg %p134
        %p194 = pneg %p131
        %p195 = scmp.lt.s32.totalorder %s19, 1
        %s196 = scalar_select %p195, %s19, 1
        %s197 = smul.addr %s196, 2
        %s198 = scalar_lea.vmem %s4, %s197
        %s199 = smul.u32 32, %s19
        %p200 = scmp.lt.s32.totalorder %s199, 63
        %s201 = scalar_select %p200, %s199, 63
        %s202 = smul.addr %s201, 8
        %s203 = scalar_lea.vmem %s0, %s202
        %s204 = smul.u32 32, %s19
        %s205 = smul.u32 32, %s19
        %p206 = scmp.lt.s32.totalorder %s19, 1
        %s207 = scalar_select %p206, %s19, 1
        %s208 = smul.addr %s207, 2
        %s209 = scalar_lea.vmem %s4, %s208
        %v210 = vld [vmem:[%s203] sm:$0xff]
        %v211 = vld [vmem:[%s203 + $0x8] sm:$0xff]
        %v212 = vld [vmem:[%s203 + $0x10] sm:$0xff]
        %v213 = vld [vmem:[%s203 + $0x18] sm:$0xff]
        %v214 = vld [vmem:[%s203 + $0x20] sm:$0xff]
        %v215 = vld [vmem:[%s203 + $0x28] sm:$0xff]
        %v216 = vld [vmem:[%s203 + $0x30] sm:$0xff]
        %v217 = vld [vmem:[%s203 + $0x38] sm:$0xff]
        %v218 = vld [vmem:[%s203 + $0x40] sm:$0xff]
        %v219 = vld [vmem:[%s203 + $0x48] sm:$0xff]
        %v220 = vld [vmem:[%s203 + $0x50] sm:$0xff]
        %v221 = vld [vmem:[%s203 + $0x58] sm:$0xff]
        %v222 = vld [vmem:[%s203 + $0x60] sm:$0xff]
        %v223 = vld [vmem:[%s203 + $0x68] sm:$0xff]
        %v224 = vld [vmem:[%s203 + $0x70] sm:$0xff]
        %v225 = vld [vmem:[%s203 + $0x78] sm:$0xff]
        %v226 = vld [vmem:[%s203 + $0x80] sm:$0xff]
        %v227 = vld [vmem:[%s203 + $0x88] sm:$0xff]
        %v228 = vld [vmem:[%s203 + $0x90] sm:$0xff]
        %v229 = vld [vmem:[%s203 + $0x98] sm:$0xff]
        %v230 = vld [vmem:[%s203 + $0xa0] sm:$0xff]
        %v231 = vld [vmem:[%s203 + $0xa8] sm:$0xff]
        %v232 = vld [vmem:[%s203 + $0xb0] sm:$0xff]
        %v233 = vld [vmem:[%s203 + $0xb8] sm:$0xff]
        %v234 = vld [vmem:[%s203 + $0xc0] sm:$0xff]
        %v235 = vld [vmem:[%s203 + $0xc8] sm:$0xff]
        %v236 = vld [vmem:[%s203 + $0xd0] sm:$0xff]
        %v237 = vld [vmem:[%s203 + $0xd8] sm:$0xff]
        %v238 = vld [vmem:[%s203 + $0xe0] sm:$0xff]
        %v239 = vld [vmem:[%s203 + $0xe8] sm:$0xff]
        %v240 = vld [vmem:[%s203 + $0xf0] sm:$0xff]
        %v241 = vld [vmem:[%s203 + $0xf8] sm:$0xff]
        %v242 = vld [vmem:[%s1] sm:$0xff]
        %v243 = vld [vmem:[%s1 + $0x8] sm:$0xff]
        %v244 = vld [vmem:[%s1 + $0x10] sm:$0xff]
        %v245 = vld [vmem:[%s1 + $0x18] sm:$0xff]
        %v246 = vld [vmem:[%s1 + $0x20] sm:$0xff]
        %v247 = vld [vmem:[%s1 + $0x28] sm:$0xff]
        %v248 = vld [vmem:[%s1 + $0x30] sm:$0xff]
        %v249 = vld [vmem:[%s1 + $0x38] sm:$0xff]
        %v250 = vld [vmem:[%s1 + $0x40] sm:$0xff]
        %v251 = vld [vmem:[%s1 + $0x48] sm:$0xff]
        %v252 = vld [vmem:[%s1 + $0x50] sm:$0xff]
        %v253 = vld [vmem:[%s1 + $0x58] sm:$0xff]
        %v254 = vld [vmem:[%s1 + $0x60] sm:$0xff]
        %v255 = vld [vmem:[%s1 + $0x68] sm:$0xff]
        %v256 = vld [vmem:[%s1 + $0x70] sm:$0xff]
        %v257 = vld [vmem:[%s1 + $0x78] sm:$0xff]
        %v258 = vld [vmem:[%s1 + $0x80] sm:$0xff]
        %v259 = vld [vmem:[%s1 + $0x88] sm:$0xff]
        %v260 = vld [vmem:[%s1 + $0x90] sm:$0xff]
        %v261 = vld [vmem:[%s1 + $0x98] sm:$0xff]
        %v262 = vld [vmem:[%s1 + $0xa0] sm:$0xff]
        %v263 = vld [vmem:[%s1 + $0xa8] sm:$0xff]
        %v264 = vld [vmem:[%s1 + $0xb0] sm:$0xff]
        %v265 = vld [vmem:[%s1 + $0xb8] sm:$0xff]
        %v266 = vld [vmem:[%s1 + $0xc0] sm:$0xff]
        %v267 = vld [vmem:[%s1 + $0xc8] sm:$0xff]
        %v268 = vld [vmem:[%s1 + $0xd0] sm:$0xff]
        %v269 = vld [vmem:[%s1 + $0xd8] sm:$0xff]
        %v270 = vld [vmem:[%s1 + $0xe0] sm:$0xff]
        %v271 = vld [vmem:[%s1 + $0xe8] sm:$0xff]
        %v272 = vld [vmem:[%s1 + $0xf0] sm:$0xff]
        %v273 = vld [vmem:[%s1 + $0xf8] sm:$0xff]
        %v274 = vld [vmem:[%s1 + $0x100] sm:$0xff]
        %v275 = vld [vmem:[%s1 + $0x108] sm:$0xff]
        %v276 = vld [vmem:[%s1 + $0x110] sm:$0xff]
        %v277 = vld [vmem:[%s1 + $0x118] sm:$0xff]
        %v278 = vld [vmem:[%s1 + $0x120] sm:$0xff]
        %v279 = vld [vmem:[%s1 + $0x128] sm:$0xff]
        %v280 = vld [vmem:[%s1 + $0x130] sm:$0xff]
        %v281 = vld [vmem:[%s1 + $0x138] sm:$0xff]
        %v282 = vld [vmem:[%s1 + $0x140] sm:$0xff]
        %v283 = vld [vmem:[%s1 + $0x148] sm:$0xff]
        %v284 = vld [vmem:[%s1 + $0x150] sm:$0xff]
        %v285 = vld [vmem:[%s1 + $0x158] sm:$0xff]
        %v286 = vld [vmem:[%s1 + $0x160] sm:$0xff]
        %v287 = vld [vmem:[%s1 + $0x168] sm:$0xff]
        %v288 = vld [vmem:[%s1 + $0x170] sm:$0xff]
        %v289 = vld [vmem:[%s1 + $0x178] sm:$0xff]
        %v290 = vld [vmem:[%s1 + $0x180] sm:$0xff]
        %v291 = vld [vmem:[%s1 + $0x188] sm:$0xff]
        %v292 = vld [vmem:[%s1 + $0x190] sm:$0xff]
        %v293 = vld [vmem:[%s1 + $0x198] sm:$0xff]
        %v294 = vld [vmem:[%s1 + $0x1a0] sm:$0xff]
        %v295 = vld [vmem:[%s1 + $0x1a8] sm:$0xff]
        %v296 = vld [vmem:[%s1 + $0x1b0] sm:$0xff]
        %v297 = vld [vmem:[%s1 + $0x1b8] sm:$0xff]
        %v298 = vld [vmem:[%s1 + $0x1c0] sm:$0xff]
        %v299 = vld [vmem:[%s1 + $0x1c8] sm:$0xff]
        %v300 = vld [vmem:[%s1 + $0x1d0] sm:$0xff]
        %v301 = vld [vmem:[%s1 + $0x1d8] sm:$0xff]
        %v302 = vld [vmem:[%s1 + $0x1e0] sm:$0xff]
        %v303 = vld [vmem:[%s1 + $0x1e8] sm:$0xff]
        %v304 = vld [vmem:[%s1 + $0x1f0] sm:$0xff]
        %v305 = vld [vmem:[%s1 + $0x1f8] sm:$0xff]
        %306 = vmatprep.subr.mxu0 %v303
        %307 = vmatpush1.msra.mxu0 %v302
        %308 = vmatprep.subr.mxu0 %v299
        %309 = vmatpush1.msra.mxu0 %v298
        %310 = vmatprep.subr.mxu0 %v295
        %311 = vmatpush1.msra.mxu0 %v294
        %312 = vmatprep.subr.mxu0 %v291
        %313 = vmatpush1.msra.mxu0 %v290
        %314 = vmatprep.subr.mxu0 %v287
        %315 = vmatpush1.msra.mxu0 %v286
        %316 = vmatprep.subr.mxu0 %v283
        %317 = vmatpush1.msra.mxu0 %v282
        %318 = vmatprep.subr.mxu0 %v279
        %319 = vmatpush1.msra.mxu0 %v278
        %320 = vmatprep.subr.mxu0 %v275
        %321 = vmatpush1.msra.mxu0 %v274
        %322 = vmatprep.subr.mxu0 %v271
        %323 = vmatpush1.msra.mxu0 %v270
        %324 = vmatprep.subr.mxu0 %v267
        %325 = vmatpush1.msra.mxu0 %v266
        %326 = vmatprep.subr.mxu0 %v263
        %327 = vmatpush1.msra.mxu0 %v262
        %328 = vmatprep.subr.mxu0 %v259
        %329 = vmatpush1.msra.mxu0 %v258
        %330 = vmatprep.subr.mxu0 %v255
        %331 = vmatpush1.msra.mxu0 %v254
        %332 = vmatprep.subr.mxu0 %v251
        %333 = vmatpush1.msra.mxu0 %v250
        %334 = vmatprep.subr.mxu0 %v247
        %335 = vmatpush1.msra.mxu0 %v246
        %336 = vmatprep.subr.mxu0 %v243
        %337 = vmatpush1.msra.mxu0 %v242
        %338 = vmatprep.subr.mxu0 0.0
        %339 = vmatpush2.msra.mxu0 0.0
        %340 = vmatprep.subr.mxu0 0.0
        %341 = vmatpush2.msra.mxu0 0.0
        %342 = vmatprep.subr.mxu0 0.0
        %343 = vmatpush2.msra.mxu0 0.0
        %344 = vmatprep.subr.mxu0 0.0
        %345 = vmatpush2.msra.mxu0 0.0
        %346 = vmatprep.subr.mxu0 0.0
        %347 = vmatpush2.msra.mxu0 0.0
        %348 = vmatprep.subr.mxu0 0.0
        %349 = vmatpush2.msra.mxu0 0.0
        %350 = vmatprep.subr.mxu0 0.0
        %351 = vmatpush2.msra.mxu0 0.0
        %352 = vmatprep.subr.mxu0 0.0
        %353 = vmatpush2.msra.mxu0 0.0
        %354 = vmatprep.subr.mxu0 0.0
        %355 = vmatpush2.msra.mxu0 0.0
        %356 = vmatprep.subr.mxu0 0.0
        %357 = vmatpush2.msra.mxu0 0.0
        %358 = vmatprep.subr.mxu0 0.0
        %359 = vmatpush2.msra.mxu0 0.0
        %360 = vmatprep.subr.mxu0 0.0
        %361 = vmatpush2.msra.mxu0 0.0
        %362 = vmatprep.subr.mxu0 0.0
        %363 = vmatpush2.msra.mxu0 0.0
        %364 = vmatprep.subr.mxu0 0.0
        %365 = vmatpush2.msra.mxu0 0.0
        %366 = vmatprep.subr.mxu0 0.0
        %367 = vmatpush2.msra.mxu0 0.0
        %368 = vmatprep.subr.mxu0 0.0
        %369 = vmatpush2.msra.mxu0 0.0
        %370 = vmatprep.mubr.f32.mxu0 0.0
        %371 = vmatmul.mubr.f32.gmra.mxu0 %v210
        %v372 = vpop.f32.mrf.mxu0
        %v373 = vadd.f32 0.0, %v372
        %v374 = vpop.f32.mrf.mxu0
        %v375 = vadd.f32 0.0, %v374
        %376 = vmatprep.mubr.f32.mxu0 0.0
        %377 = vmatmul.mubr.f32.gmra.mxu0 %v211
        %v378 = vpop.f32.mrf.mxu0
        %v379 = vadd.f32 0.0, %v378
        %v380 = vpop.f32.mrf.mxu0
        %v381 = vadd.f32 0.0, %v380
        %382 = vmatprep.mubr.f32.mxu0 0.0
        %383 = vmatmul.mubr.f32.gmra.mxu0 %v212
        %v384 = vpop.f32.mrf.mxu0
        %v385 = vadd.f32 0.0, %v384
        %v386 = vpop.f32.mrf.mxu0
        %v387 = vadd.f32 0.0, %v386
        %388 = vmatprep.mubr.f32.mxu0 0.0
        %389 = vmatmul.mubr.f32.gmra.mxu0 %v213
        %v390 = vpop.f32.mrf.mxu0
        %v391 = vadd.f32 0.0, %v390
        %v392 = vpop.f32.mrf.mxu0
        %v393 = vadd.f32 0.0, %v392
        %394 = vmatprep.mubr.f32.mxu0 0.0
        %395 = vmatmul.mubr.f32.gmra.mxu0 %v214
        %v396 = vpop.f32.mrf.mxu0
        %v397 = vadd.f32 0.0, %v396
        %v398 = vpop.f32.mrf.mxu0
        %v399 = vadd.f32 0.0, %v398
        %400 = vmatprep.mubr.f32.mxu0 0.0
        %401 = vmatmul.mubr.f32.gmra.mxu0 %v215
        %v402 = vpop.f32.mrf.mxu0
        %v403 = vadd.f32 0.0, %v402
        %v404 = vpop.f32.mrf.mxu0
        %v405 = vadd.f32 0.0, %v404
        %406 = vmatprep.mubr.f32.mxu0 0.0
        %407 = vmatmul.mubr.f32.gmra.mxu0 %v216
        %v408 = vpop.f32.mrf.mxu0
        %v409 = vadd.f32 0.0, %v408
        %v410 = vpop.f32.mrf.mxu0
        %v411 = vadd.f32 0.0, %v410
        %412 = vmatprep.mubr.f32.mxu0 0.0
        %413 = vmatmul.mubr.f32.gmra.mxu0 %v217
        %v414 = vpop.f32.mrf.mxu0
        %v415 = vadd.f32 0.0, %v414
        %v416 = vpop.f32.mrf.mxu0
        %v417 = vadd.f32 0.0, %v416
        %418 = vmatprep.mubr.f32.mxu0 0.0
        %419 = vmatmul.mubr.f32.gmra.mxu0 %v218
        %v420 = vpop.f32.mrf.mxu0
        %v421 = vadd.f32 0.0, %v420
        %v422 = vpop.f32.mrf.mxu0
        %v423 = vadd.f32 0.0, %v422
        %424 = vmatprep.mubr.f32.mxu0 0.0
        %425 = vmatmul.mubr.f32.gmra.mxu0 %v219
        %v426 = vpop.f32.mrf.mxu0
        %v427 = vadd.f32 0.0, %v426
        %v428 = vpop.f32.mrf.mxu0
        %v429 = vadd.f32 0.0, %v428
        %430 = vmatprep.mubr.f32.mxu0 0.0
        %431 = vmatmul.mubr.f32.gmra.mxu0 %v220
        %v432 = vpop.f32.mrf.mxu0
        %v433 = vadd.f32 0.0, %v432
        %v434 = vpop.f32.mrf.mxu0
        %v435 = vadd.f32 0.0, %v434
        %436 = vmatprep.mubr.f32.mxu0 0.0
        %437 = vmatmul.mubr.f32.gmra.mxu0 %v221
        %v438 = vpop.f32.mrf.mxu0
        %v439 = vadd.f32 0.0, %v438
        %v440 = vpop.f32.mrf.mxu0
        %v441 = vadd.f32 0.0, %v440
        %442 = vmatprep.mubr.f32.mxu0 0.0
        %443 = vmatmul.mubr.f32.gmra.mxu0 %v222
        %v444 = vpop.f32.mrf.mxu0
        %v445 = vadd.f32 0.0, %v444
        %v446 = vpop.f32.mrf.mxu0
        %v447 = vadd.f32 0.0, %v446
        %448 = vmatprep.mubr.f32.mxu0 0.0
        %449 = vmatmul.mubr.f32.gmra.mxu0 %v223
        %v450 = vpop.f32.mrf.mxu0
        %v451 = vadd.f32 0.0, %v450
        %v452 = vpop.f32.mrf.mxu0
        %v453 = vadd.f32 0.0, %v452
        %454 = vmatprep.mubr.f32.mxu0 0.0
        %455 = vmatmul.mubr.f32.gmra.mxu0 %v224
        %v456 = vpop.f32.mrf.mxu0
        %v457 = vadd.f32 0.0, %v456
        %v458 = vpop.f32.mrf.mxu0
        %v459 = vadd.f32 0.0, %v458
        %460 = vmatprep.mubr.f32.mxu0 0.0
        %461 = vmatmul.mubr.f32.gmra.mxu0 %v225
        %v462 = vpop.f32.mrf.mxu0
        %v463 = vadd.f32 0.0, %v462
        %v464 = vpop.f32.mrf.mxu0
        %v465 = vadd.f32 0.0, %v464
        %466 = vmatprep.mubr.f32.mxu0 0.0
        %467 = vmatmul.mubr.f32.gmra.mxu0 %v226
        %v468 = vpop.f32.mrf.mxu0
        %v469 = vadd.f32 0.0, %v468
        %v470 = vpop.f32.mrf.mxu0
        %v471 = vadd.f32 0.0, %v470
        %472 = vmatprep.mubr.f32.mxu0 0.0
        %473 = vmatmul.mubr.f32.gmra.mxu0 %v227
        %v474 = vpop.f32.mrf.mxu0
        %v475 = vadd.f32 0.0, %v474
        %v476 = vpop.f32.mrf.mxu0
        %v477 = vadd.f32 0.0, %v476
        %478 = vmatprep.mubr.f32.mxu0 0.0
        %479 = vmatmul.mubr.f32.gmra.mxu0 %v228
        %v480 = vpop.f32.mrf.mxu0
        %v481 = vadd.f32 0.0, %v480
        %v482 = vpop.f32.mrf.mxu0
        %v483 = vadd.f32 0.0, %v482
        %484 = vmatprep.mubr.f32.mxu0 0.0
        %485 = vmatmul.mubr.f32.gmra.mxu0 %v229
        %v486 = vpop.f32.mrf.mxu0
        %v487 = vadd.f32 0.0, %v486
        %v488 = vpop.f32.mrf.mxu0
        %v489 = vadd.f32 0.0, %v488
        %490 = vmatprep.mubr.f32.mxu0 0.0
        %491 = vmatmul.mubr.f32.gmra.mxu0 %v230
        %v492 = vpop.f32.mrf.mxu0
        %v493 = vadd.f32 0.0, %v492
        %v494 = vpop.f32.mrf.mxu0
        %v495 = vadd.f32 0.0, %v494
        %496 = vmatprep.mubr.f32.mxu0 0.0
        %497 = vmatmul.mubr.f32.gmra.mxu0 %v231
        %v498 = vpop.f32.mrf.mxu0
        %v499 = vadd.f32 0.0, %v498
        %v500 = vpop.f32.mrf.mxu0
        %v501 = vadd.f32 0.0, %v500
        %502 = vmatprep.mubr.f32.mxu0 0.0
        %503 = vmatmul.mubr.f32.gmra.mxu0 %v232
        %v504 = vpop.f32.mrf.mxu0
        %v505 = vadd.f32 0.0, %v504
        %v506 = vpop.f32.mrf.mxu0
        %v507 = vadd.f32 0.0, %v506
        %508 = vmatprep.mubr.f32.mxu0 0.0
        %509 = vmatmul.mubr.f32.gmra.mxu0 %v233
        %v510 = vpop.f32.mrf.mxu0
        %v511 = vadd.f32 0.0, %v510
        %v512 = vpop.f32.mrf.mxu0
        %v513 = vadd.f32 0.0, %v512
        %514 = vmatprep.mubr.f32.mxu0 0.0
        %515 = vmatmul.mubr.f32.gmra.mxu0 %v234
        %v516 = vpop.f32.mrf.mxu0
        %v517 = vadd.f32 0.0, %v516
        %v518 = vpop.f32.mrf.mxu0
        %v519 = vadd.f32 0.0, %v518
        %520 = vmatprep.mubr.f32.mxu0 0.0
        %521 = vmatmul.mubr.f32.gmra.mxu0 %v235
        %v522 = vpop.f32.mrf.mxu0
        %v523 = vadd.f32 0.0, %v522
        %v524 = vpop.f32.mrf.mxu0
        %v525 = vadd.f32 0.0, %v524
        %526 = vmatprep.mubr.f32.mxu0 0.0
        %527 = vmatmul.mubr.f32.gmra.mxu0 %v236
        %v528 = vpop.f32.mrf.mxu0
        %v529 = vadd.f32 0.0, %v528
        %v530 = vpop.f32.mrf.mxu0
        %v531 = vadd.f32 0.0, %v530
        %532 = vmatprep.mubr.f32.mxu0 0.0
        %533 = vmatmul.mubr.f32.gmra.mxu0 %v237
        %v534 = vpop.f32.mrf.mxu0
        %v535 = vadd.f32 0.0, %v534
        %v536 = vpop.f32.mrf.mxu0
        %v537 = vadd.f32 0.0, %v536
        %538 = vmatprep.mubr.f32.mxu0 0.0
        %539 = vmatmul.mubr.f32.gmra.mxu0 %v238
        %v540 = vpop.f32.mrf.mxu0
        %v541 = vadd.f32 0.0, %v540
        %v542 = vpop.f32.mrf.mxu0
        %v543 = vadd.f32 0.0, %v542
        %544 = vmatprep.mubr.f32.mxu0 0.0
        %545 = vmatmul.mubr.f32.gmra.mxu0 %v239
        %v546 = vpop.f32.mrf.mxu0
        %v547 = vadd.f32 0.0, %v546
        %v548 = vpop.f32.mrf.mxu0
        %v549 = vadd.f32 0.0, %v548
        %550 = vmatprep.mubr.f32.mxu0 0.0
        %551 = vmatmul.mubr.f32.gmra.mxu0 %v240
        %v552 = vpop.f32.mrf.mxu0
        %v553 = vadd.f32 0.0, %v552
        %v554 = vpop.f32.mrf.mxu0
        %v555 = vadd.f32 0.0, %v554
        %556 = vmatprep.mubr.f32.mxu0 0.0
        %557 = vmatmul.mubr.f32.gmra.mxu0 %v241
        %v558 = vpop.f32.mrf.mxu0
        %v559 = vadd.f32 0.0, %v558
        %v560 = vpop.f32.mrf.mxu0
        %v561 = vadd.f32 0.0, %v560
        %562 = vdwg.mxu0
        %563 = vmatprep.subr.mxu0 %v305
        %564 = vmatpush1.msra.mxu0 %v304
        %565 = vmatprep.subr.mxu0 %v301
        %566 = vmatpush1.msra.mxu0 %v300
        %567 = vmatprep.subr.mxu0 %v297
        %568 = vmatpush1.msra.mxu0 %v296
        %569 = vmatprep.subr.mxu0 %v293
        %570 = vmatpush1.msra.mxu0 %v292
        %571 = vmatprep.subr.mxu0 %v289
        %572 = vmatpush1.msra.mxu0 %v288
        %573 = vmatprep.subr.mxu0 %v285
        %574 = vmatpush1.msra.mxu0 %v284
        %575 = vmatprep.subr.mxu0 %v281
        %576 = vmatpush1.msra.mxu0 %v280
        %577 = vmatprep.subr.mxu0 %v277
        %578 = vmatpush1.msra.mxu0 %v276
        %579 = vmatprep.subr.mxu0 %v273
        %580 = vmatpush1.msra.mxu0 %v272
        %581 = vmatprep.subr.mxu0 %v269
        %582 = vmatpush1.msra.mxu0 %v268
        %583 = vmatprep.subr.mxu0 %v265
        %584 = vmatpush1.msra.mxu0 %v264
        %585 = vmatprep.subr.mxu0 %v261
        %586 = vmatpush1.msra.mxu0 %v260
        %587 = vmatprep.subr.mxu0 %v257
        %588 = vmatpush1.msra.mxu0 %v256
        %589 = vmatprep.subr.mxu0 %v253
        %590 = vmatpush1.msra.mxu0 %v252
        %591 = vmatprep.subr.mxu0 %v249
        %592 = vmatpush1.msra.mxu0 %v248
        %593 = vmatprep.subr.mxu0 %v245
        %594 = vmatpush1.msra.mxu0 %v244
        %595 = vmatprep.subr.mxu0 0.0
        %596 = vmatpush2.msra.mxu0 0.0
        %597 = vmatprep.subr.mxu0 0.0
        %598 = vmatpush2.msra.mxu0 0.0
        %599 = vmatprep.subr.mxu0 0.0
        %600 = vmatpush2.msra.mxu0 0.0
        %601 = vmatprep.subr.mxu0 0.0
        %602 = vmatpush2.msra.mxu0 0.0
        %603 = vmatprep.subr.mxu0 0.0
        %604 = vmatpush2.msra.mxu0 0.0
        %605 = vmatprep.subr.mxu0 0.0
        %606 = vmatpush2.msra.mxu0 0.0
        %607 = vmatprep.subr.mxu0 0.0
        %608 = vmatpush2.msra.mxu0 0.0
        %609 = vmatprep.subr.mxu0 0.0
        %610 = vmatpush2.msra.mxu0 0.0
        %611 = vmatprep.subr.mxu0 0.0
        %612 = vmatpush2.msra.mxu0 0.0
        %613 = vmatprep.subr.mxu0 0.0
        %614 = vmatpush2.msra.mxu0 0.0
        %615 = vmatprep.subr.mxu0 0.0
        %616 = vmatpush2.msra.mxu0 0.0
        %617 = vmatprep.subr.mxu0 0.0
        %618 = vmatpush2.msra.mxu0 0.0
        %619 = vmatprep.subr.mxu0 0.0
        %620 = vmatpush2.msra.mxu0 0.0
        %621 = vmatprep.subr.mxu0 0.0
        %622 = vmatpush2.msra.mxu0 0.0
        %623 = vmatprep.subr.mxu0 0.0
        %624 = vmatpush2.msra.mxu0 0.0
        %625 = vmatprep.subr.mxu0 0.0
        %626 = vmatpush2.msra.mxu0 0.0
        %627 = vmatprep.mubr.f32.mxu0 0.0
        %628 = vmatmul.mubr.f32.gmra.mxu0 %v210
        %v629 = vpop.f32.mrf.mxu0
        %v630 = vadd.f32 0.0, %v629
        %v631 = vpop.f32.mrf.mxu0
        %v632 = vadd.f32 0.0, %v631
        %633 = vmatprep.mubr.f32.mxu0 0.0
        %634 = vmatmul.mubr.f32.gmra.mxu0 %v211
        %v635 = vpop.f32.mrf.mxu0
        %v636 = vadd.f32 0.0, %v635
        %v637 = vpop.f32.mrf.mxu0
        %v638 = vadd.f32 0.0, %v637
        %639 = vmatprep.mubr.f32.mxu0 0.0
        %640 = vmatmul.mubr.f32.gmra.mxu0 %v212
        %v641 = vpop.f32.mrf.mxu0
        %v642 = vadd.f32 0.0, %v641
        %v643 = vpop.f32.mrf.mxu0
        %v644 = vadd.f32 0.0, %v643
        %645 = vmatprep.mubr.f32.mxu0 0.0
        %646 = vmatmul.mubr.f32.gmra.mxu0 %v213
        %v647 = vpop.f32.mrf.mxu0
        %v648 = vadd.f32 0.0, %v647
        %v649 = vpop.f32.mrf.mxu0
        %v650 = vadd.f32 0.0, %v649
        %651 = vmatprep.mubr.f32.mxu0 0.0
        %652 = vmatmul.mubr.f32.gmra.mxu0 %v214
        %v653 = vpop.f32.mrf.mxu0
        %v654 = vadd.f32 0.0, %v653
        %v655 = vpop.f32.mrf.mxu0
        %v656 = vadd.f32 0.0, %v655
        %657 = vmatprep.mubr.f32.mxu0 0.0
        %658 = vmatmul.mubr.f32.gmra.mxu0 %v215
        %v659 = vpop.f32.mrf.mxu0
        %v660 = vadd.f32 0.0, %v659
        %v661 = vpop.f32.mrf.mxu0
        %v662 = vadd.f32 0.0, %v661
        %663 = vmatprep.mubr.f32.mxu0 0.0
        %664 = vmatmul.mubr.f32.gmra.mxu0 %v216
        %v665 = vpop.f32.mrf.mxu0
        %v666 = vadd.f32 0.0, %v665
        %v667 = vpop.f32.mrf.mxu0
        %v668 = vadd.f32 0.0, %v667
        %669 = vmatprep.mubr.f32.mxu0 0.0
        %670 = vmatmul.mubr.f32.gmra.mxu0 %v217
        %v671 = vpop.f32.mrf.mxu0
        %v672 = vadd.f32 0.0, %v671
        %v673 = vpop.f32.mrf.mxu0
        %v674 = vadd.f32 0.0, %v673
        %675 = vmatprep.mubr.f32.mxu0 0.0
        %676 = vmatmul.mubr.f32.gmra.mxu0 %v218
        %v677 = vpop.f32.mrf.mxu0
        %v678 = vadd.f32 0.0, %v677
        %v679 = vpop.f32.mrf.mxu0
        %v680 = vadd.f32 0.0, %v679
        %681 = vmatprep.mubr.f32.mxu0 0.0
        %682 = vmatmul.mubr.f32.gmra.mxu0 %v219
        %v683 = vpop.f32.mrf.mxu0
        %v684 = vadd.f32 0.0, %v683
        %v685 = vpop.f32.mrf.mxu0
        %v686 = vadd.f32 0.0, %v685
        %687 = vmatprep.mubr.f32.mxu0 0.0
        %688 = vmatmul.mubr.f32.gmra.mxu0 %v220
        %v689 = vpop.f32.mrf.mxu0
        %v690 = vadd.f32 0.0, %v689
        %v691 = vpop.f32.mrf.mxu0
        %v692 = vadd.f32 0.0, %v691
        %693 = vmatprep.mubr.f32.mxu0 0.0
        %694 = vmatmul.mubr.f32.gmra.mxu0 %v221
        %v695 = vpop.f32.mrf.mxu0
        %v696 = vadd.f32 0.0, %v695
        %v697 = vpop.f32.mrf.mxu0
        %v698 = vadd.f32 0.0, %v697
        %699 = vmatprep.mubr.f32.mxu0 0.0
        %700 = vmatmul.mubr.f32.gmra.mxu0 %v222
        %v701 = vpop.f32.mrf.mxu0
        %v702 = vadd.f32 0.0, %v701
        %v703 = vpop.f32.mrf.mxu0
        %v704 = vadd.f32 0.0, %v703
        %705 = vmatprep.mubr.f32.mxu0 0.0
        %706 = vmatmul.mubr.f32.gmra.mxu0 %v223
        %v707 = vpop.f32.mrf.mxu0
        %v708 = vadd.f32 0.0, %v707
        %v709 = vpop.f32.mrf.mxu0
        %v710 = vadd.f32 0.0, %v709
        %711 = vmatprep.mubr.f32.mxu0 0.0
        %712 = vmatmul.mubr.f32.gmra.mxu0 %v224
        %v713 = vpop.f32.mrf.mxu0
        %v714 = vadd.f32 0.0, %v713
        %v715 = vpop.f32.mrf.mxu0
        %v716 = vadd.f32 0.0, %v715
        %717 = vmatprep.mubr.f32.mxu0 0.0
        %718 = vmatmul.mubr.f32.gmra.mxu0 %v225
        %v719 = vpop.f32.mrf.mxu0
        %v720 = vadd.f32 0.0, %v719
        %v721 = vpop.f32.mrf.mxu0
        %v722 = vadd.f32 0.0, %v721
        %723 = vmatprep.mubr.f32.mxu0 0.0
        %724 = vmatmul.mubr.f32.gmra.mxu0 %v226
        %v725 = vpop.f32.mrf.mxu0
        %v726 = vadd.f32 0.0, %v725
        %v727 = vpop.f32.mrf.mxu0
        %v728 = vadd.f32 0.0, %v727
        %729 = vmatprep.mubr.f32.mxu0 0.0
        %730 = vmatmul.mubr.f32.gmra.mxu0 %v227
        %v731 = vpop.f32.mrf.mxu0
        %v732 = vadd.f32 0.0, %v731
        %v733 = vpop.f32.mrf.mxu0
        %v734 = vadd.f32 0.0, %v733
        %735 = vmatprep.mubr.f32.mxu0 0.0
        %736 = vmatmul.mubr.f32.gmra.mxu0 %v228
        %v737 = vpop.f32.mrf.mxu0
        %v738 = vadd.f32 0.0, %v737
        %v739 = vpop.f32.mrf.mxu0
        %v740 = vadd.f32 0.0, %v739
        %741 = vmatprep.mubr.f32.mxu0 0.0
        %742 = vmatmul.mubr.f32.gmra.mxu0 %v229
        %v743 = vpop.f32.mrf.mxu0
        %v744 = vadd.f32 0.0, %v743
        %v745 = vpop.f32.mrf.mxu0
        %v746 = vadd.f32 0.0, %v745
        %747 = vmatprep.mubr.f32.mxu0 0.0
        %748 = vmatmul.mubr.f32.gmra.mxu0 %v230
        %v749 = vpop.f32.mrf.mxu0
        %v750 = vadd.f32 0.0, %v749
        %v751 = vpop.f32.mrf.mxu0
        %v752 = vadd.f32 0.0, %v751
        %753 = vmatprep.mubr.f32.mxu0 0.0
        %754 = vmatmul.mubr.f32.gmra.mxu0 %v231
        %v755 = vpop.f32.mrf.mxu0
        %v756 = vadd.f32 0.0, %v755
        %v757 = vpop.f32.mrf.mxu0
        %v758 = vadd.f32 0.0, %v757
        %759 = vmatprep.mubr.f32.mxu0 0.0
        %760 = vmatmul.mubr.f32.gmra.mxu0 %v232
        %v761 = vpop.f32.mrf.mxu0
        %v762 = vadd.f32 0.0, %v761
        %v763 = vpop.f32.mrf.mxu0
        %v764 = vadd.f32 0.0, %v763
        %765 = vmatprep.mubr.f32.mxu0 0.0
        %766 = vmatmul.mubr.f32.gmra.mxu0 %v233
        %v767 = vpop.f32.mrf.mxu0
        %v768 = vadd.f32 0.0, %v767
        %v769 = vpop.f32.mrf.mxu0
        %v770 = vadd.f32 0.0, %v769
        %771 = vmatprep.mubr.f32.mxu0 0.0
        %772 = vmatmul.mubr.f32.gmra.mxu0 %v234
        %v773 = vpop.f32.mrf.mxu0
        %v774 = vadd.f32 0.0, %v773
        %v775 = vpop.f32.mrf.mxu0
        %v776 = vadd.f32 0.0, %v775
        %777 = vmatprep.mubr.f32.mxu0 0.0
        %778 = vmatmul.mubr.f32.gmra.mxu0 %v235
        %v779 = vpop.f32.mrf.mxu0
        %v780 = vadd.f32 0.0, %v779
        %v781 = vpop.f32.mrf.mxu0
        %v782 = vadd.f32 0.0, %v781
        %783 = vmatprep.mubr.f32.mxu0 0.0
        %784 = vmatmul.mubr.f32.gmra.mxu0 %v236
        %v785 = vpop.f32.mrf.mxu0
        %v786 = vadd.f32 0.0, %v785
        %v787 = vpop.f32.mrf.mxu0
        %v788 = vadd.f32 0.0, %v787
        %789 = vmatprep.mubr.f32.mxu0 0.0
        %790 = vmatmul.mubr.f32.gmra.mxu0 %v237
        %v791 = vpop.f32.mrf.mxu0
        %v792 = vadd.f32 0.0, %v791
        %v793 = vpop.f32.mrf.mxu0
        %v794 = vadd.f32 0.0, %v793
        %795 = vmatprep.mubr.f32.mxu0 0.0
        %796 = vmatmul.mubr.f32.gmra.mxu0 %v238
        %v797 = vpop.f32.mrf.mxu0
        %v798 = vadd.f32 0.0, %v797
        %v799 = vpop.f32.mrf.mxu0
        %v800 = vadd.f32 0.0, %v799
        %801 = vmatprep.mubr.f32.mxu0 0.0
        %802 = vmatmul.mubr.f32.gmra.mxu0 %v239
        %v803 = vpop.f32.mrf.mxu0
        %v804 = vadd.f32 0.0, %v803
        %v805 = vpop.f32.mrf.mxu0
        %v806 = vadd.f32 0.0, %v805
        %807 = vmatprep.mubr.f32.mxu0 0.0
        %808 = vmatmul.mubr.f32.gmra.mxu0 %v240
        %v809 = vpop.f32.mrf.mxu0
        %v810 = vadd.f32 0.0, %v809
        %v811 = vpop.f32.mrf.mxu0
        %v812 = vadd.f32 0.0, %v811
        %813 = vmatprep.mubr.f32.mxu0 0.0
        %814 = vmatmul.mubr.f32.gmra.mxu0 %v241
        %v815 = vpop.f32.mrf.mxu0
        %v816 = vadd.f32 0.0, %v815
        %v817 = vpop.f32.mrf.mxu0
        %v818 = vadd.f32 0.0, %v817
        %819 = vdwg.mxu0
        %v820 = vlaneseq
        %v821 = vand.u32 %v820, 127
        %v822 = vadd.s32 %v821, 128
        %v823 = vadd.s32 %v821, 256
        %v824 = vadd.s32 %v821, 384
        %v825 = vmax.f32 %v373, %v375
        %v826 = vmax.f32 %v825, %v630
        %v827 = vmax.f32 %v826, %v632
        %828 = vmax.xlane.f32.xlu0 %v827
        %v829 = vpop.xlane.xlu0 %828
        %v830 = vmax.f32 %v379, %v381
        %v831 = vmax.f32 %v830, %v636
        %v832 = vmax.f32 %v831, %v638
        %833 = vmax.xlane.f32.xlu0 %v832
        %v834 = vpop.xlane.xlu0 %833
        %v835 = vmax.f32 %v385, %v387
        %v836 = vmax.f32 %v835, %v642
        %v837 = vmax.f32 %v836, %v644
        %838 = vmax.xlane.f32.xlu0 %v837
        %v839 = vpop.xlane.xlu0 %838
        %v840 = vmax.f32 %v391, %v393
        %v841 = vmax.f32 %v840, %v648
        %v842 = vmax.f32 %v841, %v650
        %843 = vmax.xlane.f32.xlu0 %v842
        %v844 = vpop.xlane.xlu0 %843
        %v845 = vmax.f32 %v397, %v399
        %v846 = vmax.f32 %v845, %v654
        %v847 = vmax.f32 %v846, %v656
        %848 = vmax.xlane.f32.xlu0 %v847
        %v849 = vpop.xlane.xlu0 %848
        %v850 = vmax.f32 %v403, %v405
        %v851 = vmax.f32 %v850, %v660
        %v852 = vmax.f32 %v851, %v662
        %853 = vmax.xlane.f32.xlu0 %v852
        %v854 = vpop.xlane.xlu0 %853
        %v855 = vmax.f32 %v409, %v411
        %v856 = vmax.f32 %v855, %v666
        %v857 = vmax.f32 %v856, %v668
        %858 = vmax.xlane.f32.xlu0 %v857
        %v859 = vpop.xlane.xlu0 %858
        %v860 = vmax.f32 %v415, %v417
        %v861 = vmax.f32 %v860, %v672
        %v862 = vmax.f32 %v861, %v674
        %863 = vmax.xlane.f32.xlu0 %v862
        %v864 = vpop.xlane.xlu0 %863
        %v865 = vmax.f32 %v421, %v423
        %v866 = vmax.f32 %v865, %v678
        %v867 = vmax.f32 %v866, %v680
        %868 = vmax.xlane.f32.xlu0 %v867
        %v869 = vpop.xlane.xlu0 %868
        %v870 = vmax.f32 %v427, %v429
        %v871 = vmax.f32 %v870, %v684
        %v872 = vmax.f32 %v871, %v686
        %873 = vmax.xlane.f32.xlu0 %v872
        %v874 = vpop.xlane.xlu0 %873
        %v875 = vmax.f32 %v433, %v435
        %v876 = vmax.f32 %v875, %v690
        %v877 = vmax.f32 %v876, %v692
        %878 = vmax.xlane.f32.xlu0 %v877
        %v879 = vpop.xlane.xlu0 %878
        %v880 = vmax.f32 %v439, %v441
        %v881 = vmax.f32 %v880, %v696
        %v882 = vmax.f32 %v881, %v698
        %883 = vmax.xlane.f32.xlu0 %v882
        %v884 = vpop.xlane.xlu0 %883
        %v885 = vmax.f32 %v445, %v447
        %v886 = vmax.f32 %v885, %v702
        %v887 = vmax.f32 %v886, %v704
        %888 = vmax.xlane.f32.xlu0 %v887
        %v889 = vpop.xlane.xlu0 %888
        %v890 = vmax.f32 %v451, %v453
        %v891 = vmax.f32 %v890, %v708
        %v892 = vmax.f32 %v891, %v710
        %893 = vmax.xlane.f32.xlu0 %v892
        %v894 = vpop.xlane.xlu0 %893
        %v895 = vmax.f32 %v457, %v459
        %v896 = vmax.f32 %v895, %v714
        %v897 = vmax.f32 %v896, %v716
        %898 = vmax.xlane.f32.xlu0 %v897
        %v899 = vpop.xlane.xlu0 %898
        %v900 = vmax.f32 %v463, %v465
        %v901 = vmax.f32 %v900, %v720
        %v902 = vmax.f32 %v901, %v722
        %903 = vmax.xlane.f32.xlu0 %v902
        %v904 = vpop.xlane.xlu0 %903
        %v905 = vmax.f32 %v469, %v471
        %v906 = vmax.f32 %v905, %v726
        %v907 = vmax.f32 %v906, %v728
        %908 = vmax.xlane.f32.xlu0 %v907
        %v909 = vpop.xlane.xlu0 %908
        %v910 = vmax.f32 %v475, %v477
        %v911 = vmax.f32 %v910, %v732
        %v912 = vmax.f32 %v911, %v734
        %913 = vmax.xlane.f32.xlu0 %v912
        %v914 = vpop.xlane.xlu0 %913
        %v915 = vmax.f32 %v481, %v483
        %v916 = vmax.f32 %v915, %v738
        %v917 = vmax.f32 %v916, %v740
        %918 = vmax.xlane.f32.xlu0 %v917
        %v919 = vpop.xlane.xlu0 %918
        %v920 = vmax.f32 %v487, %v489
        %v921 = vmax.f32 %v920, %v744
        %v922 = vmax.f32 %v921, %v746
        %923 = vmax.xlane.f32.xlu0 %v922
        %v924 = vpop.xlane.xlu0 %923
        %v925 = vmax.f32 %v493, %v495
        %v926 = vmax.f32 %v925, %v750
        %v927 = vmax.f32 %v926, %v752
        %928 = vmax.xlane.f32.xlu0 %v927
        %v929 = vpop.xlane.xlu0 %928
        %v930 = vmax.f32 %v499, %v501
        %v931 = vmax.f32 %v930, %v756
        %v932 = vmax.f32 %v931, %v758
        %933 = vmax.xlane.f32.xlu0 %v932
        %v934 = vpop.xlane.xlu0 %933
        %v935 = vmax.f32 %v505, %v507
        %v936 = vmax.f32 %v935, %v762
        %v937 = vmax.f32 %v936, %v764
        %938 = vmax.xlane.f32.xlu0 %v937
        %v939 = vpop.xlane.xlu0 %938
        %v940 = vmax.f32 %v511, %v513
        %v941 = vmax.f32 %v940, %v768
        %v942 = vmax.f32 %v941, %v770
        %943 = vmax.xlane.f32.xlu0 %v942
        %v944 = vpop.xlane.xlu0 %943
        %v945 = vmax.f32 %v517, %v519
        %v946 = vmax.f32 %v945, %v774
        %v947 = vmax.f32 %v946, %v776
        %948 = vmax.xlane.f32.xlu0 %v947
        %v949 = vpop.xlane.xlu0 %948
        %v950 = vmax.f32 %v523, %v525
        %v951 = vmax.f32 %v950, %v780
        %v952 = vmax.f32 %v951, %v782
        %953 = vmax.xlane.f32.xlu0 %v952
        %v954 = vpop.xlane.xlu0 %953
        %v955 = vmax.f32 %v529, %v531
        %v956 = vmax.f32 %v955, %v786
        %v957 = vmax.f32 %v956, %v788
        %958 = vmax.xlane.f32.xlu0 %v957
        %v959 = vpop.xlane.xlu0 %958
        %v960 = vmax.f32 %v535, %v537
        %v961 = vmax.f32 %v960, %v792
        %v962 = vmax.f32 %v961, %v794
        %963 = vmax.xlane.f32.xlu0 %v962
        %v964 = vpop.xlane.xlu0 %963
        %v965 = vmax.f32 %v541, %v543
        %v966 = vmax.f32 %v965, %v798
        %v967 = vmax.f32 %v966, %v800
        %968 = vmax.xlane.f32.xlu0 %v967
        %v969 = vpop.xlane.xlu0 %968
        %v970 = vmax.f32 %v547, %v549
        %v971 = vmax.f32 %v970, %v804
        %v972 = vmax.f32 %v971, %v806
        %973 = vmax.xlane.f32.xlu0 %v972
        %v974 = vpop.xlane.xlu0 %973
        %v975 = vmax.f32 %v553, %v555
        %v976 = vmax.f32 %v975, %v810
        %v977 = vmax.f32 %v976, %v812
        %978 = vmax.xlane.f32.xlu0 %v977
        %v979 = vpop.xlane.xlu0 %978
        %v980 = vmax.f32 %v559, %v561
        %v981 = vmax.f32 %v980, %v816
        %v982 = vmax.f32 %v981, %v818
        %983 = vmax.xlane.f32.xlu0 %v982
        %v984 = vpop.xlane.xlu0 %983
        %vm985 = vcmp.eq.f32.partialorder %v373, %v829
        %vm986 = vcmp.eq.f32.partialorder %v375, %v829
        %vm987 = vcmp.eq.f32.partialorder %v630, %v829
        %vm988 = vcmp.eq.f32.partialorder %v632, %v829
        %vm989 = vcmp.eq.f32.partialorder %v379, %v834
        %vm990 = vcmp.eq.f32.partialorder %v381, %v834
        %vm991 = vcmp.eq.f32.partialorder %v636, %v834
        %vm992 = vcmp.eq.f32.partialorder %v638, %v834
        %vm993 = vcmp.eq.f32.partialorder %v385, %v839
        %vm994 = vcmp.eq.f32.partialorder %v387, %v839
        %vm995 = vcmp.eq.f32.partialorder %v642, %v839
        %vm996 = vcmp.eq.f32.partialorder %v644, %v839
        %vm997 = vcmp.eq.f32.partialorder %v391, %v844
        %vm998 = vcmp.eq.f32.partialorder %v393, %v844
        %vm999 = vcmp.eq.f32.partialorder %v648, %v844
        %vm1000 = vcmp.eq.f32.partialorder %v650, %v844
        %vm1001 = vcmp.eq.f32.partialorder %v397, %v849
        %vm1002 = vcmp.eq.f32.partialorder %v399, %v849
        %vm1003 = vcmp.eq.f32.partialorder %v654, %v849
        %vm1004 = vcmp.eq.f32.partialorder %v656, %v849
        %vm1005 = vcmp.eq.f32.partialorder %v403, %v854
        %vm1006 = vcmp.eq.f32.partialorder %v405, %v854
        %vm1007 = vcmp.eq.f32.partialorder %v660, %v854
        %vm1008 = vcmp.eq.f32.partialorder %v662, %v854
        %vm1009 = vcmp.eq.f32.partialorder %v409, %v859
        %vm1010 = vcmp.eq.f32.partialorder %v411, %v859
        %vm1011 = vcmp.eq.f32.partialorder %v666, %v859
        %vm1012 = vcmp.eq.f32.partialorder %v668, %v859
        %vm1013 = vcmp.eq.f32.partialorder %v415, %v864
        %vm1014 = vcmp.eq.f32.partialorder %v417, %v864
        %vm1015 = vcmp.eq.f32.partialorder %v672, %v864
        %vm1016 = vcmp.eq.f32.partialorder %v674, %v864
        %vm1017 = vcmp.eq.f32.partialorder %v421, %v869
        %vm1018 = vcmp.eq.f32.partialorder %v423, %v869
        %vm1019 = vcmp.eq.f32.partialorder %v678, %v869
        %vm1020 = vcmp.eq.f32.partialorder %v680, %v869
        %vm1021 = vcmp.eq.f32.partialorder %v427, %v874
        %vm1022 = vcmp.eq.f32.partialorder %v429, %v874
        %vm1023 = vcmp.eq.f32.partialorder %v684, %v874
        %vm1024 = vcmp.eq.f32.partialorder %v686, %v874
        %vm1025 = vcmp.eq.f32.partialorder %v433, %v879
        %vm1026 = vcmp.eq.f32.partialorder %v435, %v879
        %vm1027 = vcmp.eq.f32.partialorder %v690, %v879
        %vm1028 = vcmp.eq.f32.partialorder %v692, %v879
        %vm1029 = vcmp.eq.f32.partialorder %v439, %v884
        %vm1030 = vcmp.eq.f32.partialorder %v441, %v884
        %vm1031 = vcmp.eq.f32.partialorder %v696, %v884
        %vm1032 = vcmp.eq.f32.partialorder %v698, %v884
        %vm1033 = vcmp.eq.f32.partialorder %v445, %v889
        %vm1034 = vcmp.eq.f32.partialorder %v447, %v889
        %vm1035 = vcmp.eq.f32.partialorder %v702, %v889
        %vm1036 = vcmp.eq.f32.partialorder %v704, %v889
        %vm1037 = vcmp.eq.f32.partialorder %v451, %v894
        %vm1038 = vcmp.eq.f32.partialorder %v453, %v894
        %vm1039 = vcmp.eq.f32.partialorder %v708, %v894
        %vm1040 = vcmp.eq.f32.partialorder %v710, %v894
        %vm1041 = vcmp.eq.f32.partialorder %v457, %v899
        %vm1042 = vcmp.eq.f32.partialorder %v459, %v899
        %vm1043 = vcmp.eq.f32.partialorder %v714, %v899
        %vm1044 = vcmp.eq.f32.partialorder %v716, %v899
        %vm1045 = vcmp.eq.f32.partialorder %v463, %v904
        %vm1046 = vcmp.eq.f32.partialorder %v465, %v904
        %vm1047 = vcmp.eq.f32.partialorder %v720, %v904
        %vm1048 = vcmp.eq.f32.partialorder %v722, %v904
        %vm1049 = vcmp.eq.f32.partialorder %v469, %v909
        %vm1050 = vcmp.eq.f32.partialorder %v471, %v909
        %vm1051 = vcmp.eq.f32.partialorder %v726, %v909
        %vm1052 = vcmp.eq.f32.partialorder %v728, %v909
        %vm1053 = vcmp.eq.f32.partialorder %v475, %v914
        %vm1054 = vcmp.eq.f32.partialorder %v477, %v914
        %vm1055 = vcmp.eq.f32.partialorder %v732, %v914
        %vm1056 = vcmp.eq.f32.partialorder %v734, %v914
        %vm1057 = vcmp.eq.f32.partialorder %v481, %v919
        %vm1058 = vcmp.eq.f32.partialorder %v483, %v919
        %vm1059 = vcmp.eq.f32.partialorder %v738, %v919
        %vm1060 = vcmp.eq.f32.partialorder %v740, %v919
        %vm1061 = vcmp.eq.f32.partialorder %v487, %v924
        %vm1062 = vcmp.eq.f32.partialorder %v489, %v924
        %vm1063 = vcmp.eq.f32.partialorder %v744, %v924
        %vm1064 = vcmp.eq.f32.partialorder %v746, %v924
        %vm1065 = vcmp.eq.f32.partialorder %v493, %v929
        %vm1066 = vcmp.eq.f32.partialorder %v495, %v929
        %vm1067 = vcmp.eq.f32.partialorder %v750, %v929
        %vm1068 = vcmp.eq.f32.partialorder %v752, %v929
        %vm1069 = vcmp.eq.f32.partialorder %v499, %v934
        %vm1070 = vcmp.eq.f32.partialorder %v501, %v934
        %vm1071 = vcmp.eq.f32.partialorder %v756, %v934
        %vm1072 = vcmp.eq.f32.partialorder %v758, %v934
        %vm1073 = vcmp.eq.f32.partialorder %v505, %v939
        %vm1074 = vcmp.eq.f32.partialorder %v507, %v939
        %vm1075 = vcmp.eq.f32.partialorder %v762, %v939
        %vm1076 = vcmp.eq.f32.partialorder %v764, %v939
        %vm1077 = vcmp.eq.f32.partialorder %v511, %v944
        %vm1078 = vcmp.eq.f32.partialorder %v513, %v944
        %vm1079 = vcmp.eq.f32.partialorder %v768, %v944
        %vm1080 = vcmp.eq.f32.partialorder %v770, %v944
        %vm1081 = vcmp.eq.f32.partialorder %v517, %v949
        %vm1082 = vcmp.eq.f32.partialorder %v519, %v949
        %vm1083 = vcmp.eq.f32.partialorder %v774, %v949
        %vm1084 = vcmp.eq.f32.partialorder %v776, %v949
        %vm1085 = vcmp.eq.f32.partialorder %v523, %v954
        %vm1086 = vcmp.eq.f32.partialorder %v525, %v954
        %vm1087 = vcmp.eq.f32.partialorder %v780, %v954
        %vm1088 = vcmp.eq.f32.partialorder %v782, %v954
        %vm1089 = vcmp.eq.f32.partialorder %v529, %v959
        %vm1090 = vcmp.eq.f32.partialorder %v531, %v959
        %vm1091 = vcmp.eq.f32.partialorder %v786, %v959
        %vm1092 = vcmp.eq.f32.partialorder %v788, %v959
        %vm1093 = vcmp.eq.f32.partialorder %v535, %v964
        %vm1094 = vcmp.eq.f32.partialorder %v537, %v964
        %vm1095 = vcmp.eq.f32.partialorder %v792, %v964
        %vm1096 = vcmp.eq.f32.partialorder %v794, %v964
        %vm1097 = vcmp.eq.f32.partialorder %v541, %v969
        %vm1098 = vcmp.eq.f32.partialorder %v543, %v969
        %vm1099 = vcmp.eq.f32.partialorder %v798, %v969
        %vm1100 = vcmp.eq.f32.partialorder %v800, %v969
        %vm1101 = vcmp.eq.f32.partialorder %v547, %v974
        %vm1102 = vcmp.eq.f32.partialorder %v549, %v974
        %vm1103 = vcmp.eq.f32.partialorder %v804, %v974
        %vm1104 = vcmp.eq.f32.partialorder %v806, %v974
        %vm1105 = vcmp.eq.f32.partialorder %v553, %v979
        %vm1106 = vcmp.eq.f32.partialorder %v555, %v979
        %vm1107 = vcmp.eq.f32.partialorder %v810, %v979
        %vm1108 = vcmp.eq.f32.partialorder %v812, %v979
        %vm1109 = vcmp.eq.f32.partialorder %v559, %v984
        %vm1110 = vcmp.eq.f32.partialorder %v561, %v984
        %vm1111 = vcmp.eq.f32.partialorder %v816, %v984
        %vm1112 = vcmp.eq.f32.partialorder %v818, %v984
        %v1113 = vsel %vm985, %v821, 512
        %v1114 = vsel %vm986, %v822, 512
        %v1115 = vsel %vm987, %v823, 512
        %v1116 = vsel %vm988, %v824, 512
        %v1117 = vsel %vm989, %v821, 512
        %v1118 = vsel %vm990, %v822, 512
        %v1119 = vsel %vm991, %v823, 512
        %v1120 = vsel %vm992, %v824, 512
        %v1121 = vsel %vm993, %v821, 512
        %v1122 = vsel %vm994, %v822, 512
        %v1123 = vsel %vm995, %v823, 512
        %v1124 = vsel %vm996, %v824, 512
        %v1125 = vsel %vm997, %v821, 512
        %v1126 = vsel %vm998, %v822, 512
        %v1127 = vsel %vm999, %v823, 512
        %v1128 = vsel %vm1000, %v824, 512
        %v1129 = vsel %vm1001, %v821, 512
        %v1130 = vsel %vm1002, %v822, 512
        %v1131 = vsel %vm1003, %v823, 512
        %v1132 = vsel %vm1004, %v824, 512
        %v1133 = vsel %vm1005, %v821, 512
        %v1134 = vsel %vm1006, %v822, 512
        %v1135 = vsel %vm1007, %v823, 512
        %v1136 = vsel %vm1008, %v824, 512
        %v1137 = vsel %vm1009, %v821, 512
        %v1138 = vsel %vm1010, %v822, 512
        %v1139 = vsel %vm1011, %v823, 512
        %v1140 = vsel %vm1012, %v824, 512
        %v1141 = vsel %vm1013, %v821, 512
        %v1142 = vsel %vm1014, %v822, 512
        %v1143 = vsel %vm1015, %v823, 512
        %v1144 = vsel %vm1016, %v824, 512
        %v1145 = vsel %vm1017, %v821, 512
        %v1146 = vsel %vm1018, %v822, 512
        %v1147 = vsel %vm1019, %v823, 512
        %v1148 = vsel %vm1020, %v824, 512
        %v1149 = vsel %vm1021, %v821, 512
        %v1150 = vsel %vm1022, %v822, 512
        %v1151 = vsel %vm1023, %v823, 512
        %v1152 = vsel %vm1024, %v824, 512
        %v1153 = vsel %vm1025, %v821, 512
        %v1154 = vsel %vm1026, %v822, 512
        %v1155 = vsel %vm1027, %v823, 512
        %v1156 = vsel %vm1028, %v824, 512
        %v1157 = vsel %vm1029, %v821, 512
        %v1158 = vsel %vm1030, %v822, 512
        %v1159 = vsel %vm1031, %v823, 512
        %v1160 = vsel %vm1032, %v824, 512
        %v1161 = vsel %vm1033, %v821, 512
        %v1162 = vsel %vm1034, %v822, 512
        %v1163 = vsel %vm1035, %v823, 512
        %v1164 = vsel %vm1036, %v824, 512
        %v1165 = vsel %vm1037, %v821, 512
        %v1166 = vsel %vm1038, %v822, 512
        %v1167 = vsel %vm1039, %v823, 512
        %v1168 = vsel %vm1040, %v824, 512
        %v1169 = vsel %vm1041, %v821, 512
        %v1170 = vsel %vm1042, %v822, 512
        %v1171 = vsel %vm1043, %v823, 512
        %v1172 = vsel %vm1044, %v824, 512
        %v1173 = vsel %vm1045, %v821, 512
        %v1174 = vsel %vm1046, %v822, 512
        %v1175 = vsel %vm1047, %v823, 512
        %v1176 = vsel %vm1048, %v824, 512
        %v1177 = vsel %vm1049, %v821, 512
        %v1178 = vsel %vm1050, %v822, 512
        %v1179 = vsel %vm1051, %v823, 512
        %v1180 = vsel %vm1052, %v824, 512
        %v1181 = vsel %vm1053, %v821, 512
        %v1182 = vsel %vm1054, %v822, 512
        %v1183 = vsel %vm1055, %v823, 512
        %v1184 = vsel %vm1056, %v824, 512
        %v1185 = vsel %vm1057, %v821, 512
        %v1186 = vsel %vm1058, %v822, 512
        %v1187 = vsel %vm1059, %v823, 512
        %v1188 = vsel %vm1060, %v824, 512
        %v1189 = vsel %vm1061, %v821, 512
        %v1190 = vsel %vm1062, %v822, 512
        %v1191 = vsel %vm1063, %v823, 512
        %v1192 = vsel %vm1064, %v824, 512
        %v1193 = vsel %vm1065, %v821, 512
        %v1194 = vsel %vm1066, %v822, 512
        %v1195 = vsel %vm1067, %v823, 512
        %v1196 = vsel %vm1068, %v824, 512
        %v1197 = vsel %vm1069, %v821, 512
        %v1198 = vsel %vm1070, %v822, 512
        %v1199 = vsel %vm1071, %v823, 512
        %v1200 = vsel %vm1072, %v824, 512
        %v1201 = vsel %vm1073, %v821, 512
        %v1202 = vsel %vm1074, %v822, 512
        %v1203 = vsel %vm1075, %v823, 512
        %v1204 = vsel %vm1076, %v824, 512
        %v1205 = vsel %vm1077, %v821, 512
        %v1206 = vsel %vm1078, %v822, 512
        %v1207 = vsel %vm1079, %v823, 512
        %v1208 = vsel %vm1080, %v824, 512
        %v1209 = vsel %vm1081, %v821, 512
        %v1210 = vsel %vm1082, %v822, 512
        %v1211 = vsel %vm1083, %v823, 512
        %v1212 = vsel %vm1084, %v824, 512
        %v1213 = vsel %vm1085, %v821, 512
        %v1214 = vsel %vm1086, %v822, 512
        %v1215 = vsel %vm1087, %v823, 512
        %v1216 = vsel %vm1088, %v824, 512
        %v1217 = vsel %vm1089, %v821, 512
        %v1218 = vsel %vm1090, %v822, 512
        %v1219 = vsel %vm1091, %v823, 512
        %v1220 = vsel %vm1092, %v824, 512
        %v1221 = vsel %vm1093, %v821, 512
        %v1222 = vsel %vm1094, %v822, 512
        %v1223 = vsel %vm1095, %v823, 512
        %v1224 = vsel %vm1096, %v824, 512
        %v1225 = vsel %vm1097, %v821, 512
        %v1226 = vsel %vm1098, %v822, 512
        %v1227 = vsel %vm1099, %v823, 512
        %v1228 = vsel %vm1100, %v824, 512
        %v1229 = vsel %vm1101, %v821, 512
        %v1230 = vsel %vm1102, %v822, 512
        %v1231 = vsel %vm1103, %v823, 512
        %v1232 = vsel %vm1104, %v824, 512
        %v1233 = vsel %vm1105, %v821, 512
        %v1234 = vsel %vm1106, %v822, 512
        %v1235 = vsel %vm1107, %v823, 512
        %v1236 = vsel %vm1108, %v824, 512
        %v1237 = vsel %vm1109, %v821, 512
        %v1238 = vsel %vm1110, %v822, 512
        %v1239 = vsel %vm1111, %v823, 512
        %v1240 = vsel %vm1112, %v824, 512
        %vm1241 = vcmp.lt.s32.totalorder %v1113, %v1114
        %v1242 = vsel %vm1241, %v1113, %v1114
        %vm1243 = vcmp.lt.s32.totalorder %v1242, %v1115
        %v1244 = vsel %vm1243, %v1242, %v1115
        %vm1245 = vcmp.lt.s32.totalorder %v1244, %v1116
        %v1246 = vsel %vm1245, %v1244, %v1116
        %v1247 = vand.u32 %v1246, 65535
        %v1248 = vshra.s32 %v1246, 16
        %v1249 = vcvt.s32.f32 %v1247
        %v1250 = vcvt.s32.f32 %v1248
        %1251 = vmin.xlane.f32.xlu0 %v1250
        %v1252 = vpop.xlane.xlu0 %1251
        %vm1253 = vcmp.eq.f32.partialorder %v1250, %v1252
        %v1254 = vsel %vm1253, %v1249, inf
        %1255 = vmin.xlane.f32.xlu0 %v1254
        %v1256 = vpop.xlane.xlu0 %1255
        %v1257 = vcvt.f32.s32 %v1256
        %v1258 = vcvt.f32.s32 %v1252
        %v1259 = vshll.u32 %v1258, 16
        %v1260 = vadd.s32 %v1259, %v1257
        %vm1261 = vcmp.lt.s32.totalorder %v1117, %v1118
        %v1262 = vsel %vm1261, %v1117, %v1118
        %vm1263 = vcmp.lt.s32.totalorder %v1262, %v1119
        %v1264 = vsel %vm1263, %v1262, %v1119
        %vm1265 = vcmp.lt.s32.totalorder %v1264, %v1120
        %v1266 = vsel %vm1265, %v1264, %v1120
        %v1267 = vand.u32 %v1266, 65535
        %v1268 = vshra.s32 %v1266, 16
        %v1269 = vcvt.s32.f32 %v1267
        %v1270 = vcvt.s32.f32 %v1268
        %1271 = vmin.xlane.f32.xlu0 %v1270
        %v1272 = vpop.xlane.xlu0 %1271
        %vm1273 = vcmp.eq.f32.partialorder %v1270, %v1272
        %v1274 = vsel %vm1273, %v1269, inf
        %1275 = vmin.xlane.f32.xlu0 %v1274
        %v1276 = vpop.xlane.xlu0 %1275
        %v1277 = vcvt.f32.s32 %v1276
        %v1278 = vcvt.f32.s32 %v1272
        %v1279 = vshll.u32 %v1278, 16
        %v1280 = vadd.s32 %v1279, %v1277
        %vm1281 = vcmp.lt.s32.totalorder %v1121, %v1122
        %v1282 = vsel %vm1281, %v1121, %v1122
        %vm1283 = vcmp.lt.s32.totalorder %v1282, %v1123
        %v1284 = vsel %vm1283, %v1282, %v1123
        %vm1285 = vcmp.lt.s32.totalorder %v1284, %v1124
        %v1286 = vsel %vm1285, %v1284, %v1124
        %v1287 = vand.u32 %v1286, 65535
        %v1288 = vshra.s32 %v1286, 16
        %v1289 = vcvt.s32.f32 %v1287
        %v1290 = vcvt.s32.f32 %v1288
        %1291 = vmin.xlane.f32.xlu0 %v1290
        %v1292 = vpop.xlane.xlu0 %1291
        %vm1293 = vcmp.eq.f32.partialorder %v1290, %v1292
        %v1294 = vsel %vm1293, %v1289, inf
        %1295 = vmin.xlane.f32.xlu0 %v1294
        %v1296 = vpop.xlane.xlu0 %1295
        %v1297 = vcvt.f32.s32 %v1296
        %v1298 = vcvt.f32.s32 %v1292
        %v1299 = vshll.u32 %v1298, 16
        %v1300 = vadd.s32 %v1299, %v1297
        %vm1301 = vcmp.lt.s32.totalorder %v1125, %v1126
        %v1302 = vsel %vm1301, %v1125, %v1126
        %vm1303 = vcmp.lt.s32.totalorder %v1302, %v1127
        %v1304 = vsel %vm1303, %v1302, %v1127
        %vm1305 = vcmp.lt.s32.totalorder %v1304, %v1128
        %v1306 = vsel %vm1305, %v1304, %v1128
        %v1307 = vand.u32 %v1306, 65535
        %v1308 = vshra.s32 %v1306, 16
        %v1309 = vcvt.s32.f32 %v1307
        %v1310 = vcvt.s32.f32 %v1308
        %1311 = vmin.xlane.f32.xlu0 %v1310
        %v1312 = vpop.xlane.xlu0 %1311
        %vm1313 = vcmp.eq.f32.partialorder %v1310, %v1312
        %v1314 = vsel %vm1313, %v1309, inf
        %1315 = vmin.xlane.f32.xlu0 %v1314
        %v1316 = vpop.xlane.xlu0 %1315
        %v1317 = vcvt.f32.s32 %v1316
        %v1318 = vcvt.f32.s32 %v1312
        %v1319 = vshll.u32 %v1318, 16
        %v1320 = vadd.s32 %v1319, %v1317
        %vm1321 = vcmp.lt.s32.totalorder %v1129, %v1130
        %v1322 = vsel %vm1321, %v1129, %v1130
        %vm1323 = vcmp.lt.s32.totalorder %v1322, %v1131
        %v1324 = vsel %vm1323, %v1322, %v1131
        %vm1325 = vcmp.lt.s32.totalorder %v1324, %v1132
        %v1326 = vsel %vm1325, %v1324, %v1132
        %v1327 = vand.u32 %v1326, 65535
        %v1328 = vshra.s32 %v1326, 16
        %v1329 = vcvt.s32.f32 %v1327
        %v1330 = vcvt.s32.f32 %v1328
        %1331 = vmin.xlane.f32.xlu0 %v1330
        %v1332 = vpop.xlane.xlu0 %1331
        %vm1333 = vcmp.eq.f32.partialorder %v1330, %v1332
        %v1334 = vsel %vm1333, %v1329, inf
        %1335 = vmin.xlane.f32.xlu0 %v1334
        %v1336 = vpop.xlane.xlu0 %1335
        %v1337 = vcvt.f32.s32 %v1336
        %v1338 = vcvt.f32.s32 %v1332
        %v1339 = vshll.u32 %v1338, 16
        %v1340 = vadd.s32 %v1339, %v1337
        %vm1341 = vcmp.lt.s32.totalorder %v1133, %v1134
        %v1342 = vsel %vm1341, %v1133, %v1134
        %vm1343 = vcmp.lt.s32.totalorder %v1342, %v1135
        %v1344 = vsel %vm1343, %v1342, %v1135
        %vm1345 = vcmp.lt.s32.totalorder %v1344, %v1136
        %v1346 = vsel %vm1345, %v1344, %v1136
        %v1347 = vand.u32 %v1346, 65535
        %v1348 = vshra.s32 %v1346, 16
        %v1349 = vcvt.s32.f32 %v1347
        %v1350 = vcvt.s32.f32 %v1348
        %1351 = vmin.xlane.f32.xlu0 %v1350
        %v1352 = vpop.xlane.xlu0 %1351
        %vm1353 = vcmp.eq.f32.partialorder %v1350, %v1352
        %v1354 = vsel %vm1353, %v1349, inf
        %1355 = vmin.xlane.f32.xlu0 %v1354
        %v1356 = vpop.xlane.xlu0 %1355
        %v1357 = vcvt.f32.s32 %v1356
        %v1358 = vcvt.f32.s32 %v1352
        %v1359 = vshll.u32 %v1358, 16
        %v1360 = vadd.s32 %v1359, %v1357
        %vm1361 = vcmp.lt.s32.totalorder %v1137, %v1138
        %v1362 = vsel %vm1361, %v1137, %v1138
        %vm1363 = vcmp.lt.s32.totalorder %v1362, %v1139
        %v1364 = vsel %vm1363, %v1362, %v1139
        %vm1365 = vcmp.lt.s32.totalorder %v1364, %v1140
        %v1366 = vsel %vm1365, %v1364, %v1140
        %v1367 = vand.u32 %v1366, 65535
        %v1368 = vshra.s32 %v1366, 16
        %v1369 = vcvt.s32.f32 %v1367
        %v1370 = vcvt.s32.f32 %v1368
        %1371 = vmin.xlane.f32.xlu0 %v1370
        %v1372 = vpop.xlane.xlu0 %1371
        %vm1373 = vcmp.eq.f32.partialorder %v1370, %v1372
        %v1374 = vsel %vm1373, %v1369, inf
        %1375 = vmin.xlane.f32.xlu0 %v1374
        %v1376 = vpop.xlane.xlu0 %1375
        %v1377 = vcvt.f32.s32 %v1376
        %v1378 = vcvt.f32.s32 %v1372
        %v1379 = vshll.u32 %v1378, 16
        %v1380 = vadd.s32 %v1379, %v1377
        %vm1381 = vcmp.lt.s32.totalorder %v1141, %v1142
        %v1382 = vsel %vm1381, %v1141, %v1142
        %vm1383 = vcmp.lt.s32.totalorder %v1382, %v1143
        %v1384 = vsel %vm1383, %v1382, %v1143
        %vm1385 = vcmp.lt.s32.totalorder %v1384, %v1144
        %v1386 = vsel %vm1385, %v1384, %v1144
        %v1387 = vand.u32 %v1386, 65535
        %v1388 = vshra.s32 %v1386, 16
        %v1389 = vcvt.s32.f32 %v1387
        %v1390 = vcvt.s32.f32 %v1388
        %1391 = vmin.xlane.f32.xlu0 %v1390
        %v1392 = vpop.xlane.xlu0 %1391
        %vm1393 = vcmp.eq.f32.partialorder %v1390, %v1392
        %v1394 = vsel %vm1393, %v1389, inf
        %1395 = vmin.xlane.f32.xlu0 %v1394
        %v1396 = vpop.xlane.xlu0 %1395
        %v1397 = vcvt.f32.s32 %v1396
        %v1398 = vcvt.f32.s32 %v1392
        %v1399 = vshll.u32 %v1398, 16
        %v1400 = vadd.s32 %v1399, %v1397
        %vm1401 = vcmp.lt.s32.totalorder %v1145, %v1146
        %v1402 = vsel %vm1401, %v1145, %v1146
        %vm1403 = vcmp.lt.s32.totalorder %v1402, %v1147
        %v1404 = vsel %vm1403, %v1402, %v1147
        %vm1405 = vcmp.lt.s32.totalorder %v1404, %v1148
        %v1406 = vsel %vm1405, %v1404, %v1148
        %v1407 = vand.u32 %v1406, 65535
        %v1408 = vshra.s32 %v1406, 16
        %v1409 = vcvt.s32.f32 %v1407
        %v1410 = vcvt.s32.f32 %v1408
        %1411 = vmin.xlane.f32.xlu0 %v1410
        %v1412 = vpop.xlane.xlu0 %1411
        %vm1413 = vcmp.eq.f32.partialorder %v1410, %v1412
        %v1414 = vsel %vm1413, %v1409, inf
        %1415 = vmin.xlane.f32.xlu0 %v1414
        %v1416 = vpop.xlane.xlu0 %1415
        %v1417 = vcvt.f32.s32 %v1416
        %v1418 = vcvt.f32.s32 %v1412
        %v1419 = vshll.u32 %v1418, 16
        %v1420 = vadd.s32 %v1419, %v1417
        %vm1421 = vcmp.lt.s32.totalorder %v1149, %v1150
        %v1422 = vsel %vm1421, %v1149, %v1150
        %vm1423 = vcmp.lt.s32.totalorder %v1422, %v1151
        %v1424 = vsel %vm1423, %v1422, %v1151
        %vm1425 = vcmp.lt.s32.totalorder %v1424, %v1152
        %v1426 = vsel %vm1425, %v1424, %v1152
        %v1427 = vand.u32 %v1426, 65535
        %v1428 = vshra.s32 %v1426, 16
        %v1429 = vcvt.s32.f32 %v1427
        %v1430 = vcvt.s32.f32 %v1428
        %1431 = vmin.xlane.f32.xlu0 %v1430
        %v1432 = vpop.xlane.xlu0 %1431
        %vm1433 = vcmp.eq.f32.partialorder %v1430, %v1432
        %v1434 = vsel %vm1433, %v1429, inf
        %1435 = vmin.xlane.f32.xlu0 %v1434
        %v1436 = vpop.xlane.xlu0 %1435
        %v1437 = vcvt.f32.s32 %v1436
        %v1438 = vcvt.f32.s32 %v1432
        %v1439 = vshll.u32 %v1438, 16
        %v1440 = vadd.s32 %v1439, %v1437
        %vm1441 = vcmp.lt.s32.totalorder %v1153, %v1154
        %v1442 = vsel %vm1441, %v1153, %v1154
        %vm1443 = vcmp.lt.s32.totalorder %v1442, %v1155
        %v1444 = vsel %vm1443, %v1442, %v1155
        %vm1445 = vcmp.lt.s32.totalorder %v1444, %v1156
        %v1446 = vsel %vm1445, %v1444, %v1156
        %v1447 = vand.u32 %v1446, 65535
        %v1448 = vshra.s32 %v1446, 16
        %v1449 = vcvt.s32.f32 %v1447
        %v1450 = vcvt.s32.f32 %v1448
        %1451 = vmin.xlane.f32.xlu0 %v1450
        %v1452 = vpop.xlane.xlu0 %1451
        %vm1453 = vcmp.eq.f32.partialorder %v1450, %v1452
        %v1454 = vsel %vm1453, %v1449, inf
        %1455 = vmin.xlane.f32.xlu0 %v1454
        %v1456 = vpop.xlane.xlu0 %1455
        %v1457 = vcvt.f32.s32 %v1456
        %v1458 = vcvt.f32.s32 %v1452
        %v1459 = vshll.u32 %v1458, 16
        %v1460 = vadd.s32 %v1459, %v1457
        %vm1461 = vcmp.lt.s32.totalorder %v1157, %v1158
        %v1462 = vsel %vm1461, %v1157, %v1158
        %vm1463 = vcmp.lt.s32.totalorder %v1462, %v1159
        %v1464 = vsel %vm1463, %v1462, %v1159
        %vm1465 = vcmp.lt.s32.totalorder %v1464, %v1160
        %v1466 = vsel %vm1465, %v1464, %v1160
        %v1467 = vand.u32 %v1466, 65535
        %v1468 = vshra.s32 %v1466, 16
        %v1469 = vcvt.s32.f32 %v1467
        %v1470 = vcvt.s32.f32 %v1468
        %1471 = vmin.xlane.f32.xlu0 %v1470
        %v1472 = vpop.xlane.xlu0 %1471
        %vm1473 = vcmp.eq.f32.partialorder %v1470, %v1472
        %v1474 = vsel %vm1473, %v1469, inf
        %1475 = vmin.xlane.f32.xlu0 %v1474
        %v1476 = vpop.xlane.xlu0 %1475
        %v1477 = vcvt.f32.s32 %v1476
        %v1478 = vcvt.f32.s32 %v1472
        %v1479 = vshll.u32 %v1478, 16
        %v1480 = vadd.s32 %v1479, %v1477
        %vm1481 = vcmp.lt.s32.totalorder %v1161, %v1162
        %v1482 = vsel %vm1481, %v1161, %v1162
        %vm1483 = vcmp.lt.s32.totalorder %v1482, %v1163
        %v1484 = vsel %vm1483, %v1482, %v1163
        %vm1485 = vcmp.lt.s32.totalorder %v1484, %v1164
        %v1486 = vsel %vm1485, %v1484, %v1164
        %v1487 = vand.u32 %v1486, 65535
        %v1488 = vshra.s32 %v1486, 16
        %v1489 = vcvt.s32.f32 %v1487
        %v1490 = vcvt.s32.f32 %v1488
        %1491 = vmin.xlane.f32.xlu0 %v1490
        %v1492 = vpop.xlane.xlu0 %1491
        %vm1493 = vcmp.eq.f32.partialorder %v1490, %v1492
        %v1494 = vsel %vm1493, %v1489, inf
        %1495 = vmin.xlane.f32.xlu0 %v1494
        %v1496 = vpop.xlane.xlu0 %1495
        %v1497 = vcvt.f32.s32 %v1496
        %v1498 = vcvt.f32.s32 %v1492
        %v1499 = vshll.u32 %v1498, 16
        %v1500 = vadd.s32 %v1499, %v1497
        %vm1501 = vcmp.lt.s32.totalorder %v1165, %v1166
        %v1502 = vsel %vm1501, %v1165, %v1166
        %vm1503 = vcmp.lt.s32.totalorder %v1502, %v1167
        %v1504 = vsel %vm1503, %v1502, %v1167
        %vm1505 = vcmp.lt.s32.totalorder %v1504, %v1168
        %v1506 = vsel %vm1505, %v1504, %v1168
        %v1507 = vand.u32 %v1506, 65535
        %v1508 = vshra.s32 %v1506, 16
        %v1509 = vcvt.s32.f32 %v1507
        %v1510 = vcvt.s32.f32 %v1508
        %1511 = vmin.xlane.f32.xlu0 %v1510
        %v1512 = vpop.xlane.xlu0 %1511
        %vm1513 = vcmp.eq.f32.partialorder %v1510, %v1512
        %v1514 = vsel %vm1513, %v1509, inf
        %1515 = vmin.xlane.f32.xlu0 %v1514
        %v1516 = vpop.xlane.xlu0 %1515
        %v1517 = vcvt.f32.s32 %v1516
        %v1518 = vcvt.f32.s32 %v1512
        %v1519 = vshll.u32 %v1518, 16
        %v1520 = vadd.s32 %v1519, %v1517
        %vm1521 = vcmp.lt.s32.totalorder %v1169, %v1170
        %v1522 = vsel %vm1521, %v1169, %v1170
        %vm1523 = vcmp.lt.s32.totalorder %v1522, %v1171
        %v1524 = vsel %vm1523, %v1522, %v1171
        %vm1525 = vcmp.lt.s32.totalorder %v1524, %v1172
        %v1526 = vsel %vm1525, %v1524, %v1172
        %v1527 = vand.u32 %v1526, 65535
        %v1528 = vshra.s32 %v1526, 16
        %v1529 = vcvt.s32.f32 %v1527
        %v1530 = vcvt.s32.f32 %v1528
        %1531 = vmin.xlane.f32.xlu0 %v1530
        %v1532 = vpop.xlane.xlu0 %1531
        %vm1533 = vcmp.eq.f32.partialorder %v1530, %v1532
        %v1534 = vsel %vm1533, %v1529, inf
        %1535 = vmin.xlane.f32.xlu0 %v1534
        %v1536 = vpop.xlane.xlu0 %1535
        %v1537 = vcvt.f32.s32 %v1536
        %v1538 = vcvt.f32.s32 %v1532
        %v1539 = vshll.u32 %v1538, 16
        %v1540 = vadd.s32 %v1539, %v1537
        %vm1541 = vcmp.lt.s32.totalorder %v1173, %v1174
        %v1542 = vsel %vm1541, %v1173, %v1174
        %vm1543 = vcmp.lt.s32.totalorder %v1542, %v1175
        %v1544 = vsel %vm1543, %v1542, %v1175
        %vm1545 = vcmp.lt.s32.totalorder %v1544, %v1176
        %v1546 = vsel %vm1545, %v1544, %v1176
        %v1547 = vand.u32 %v1546, 65535
        %v1548 = vshra.s32 %v1546, 16
        %v1549 = vcvt.s32.f32 %v1547
        %v1550 = vcvt.s32.f32 %v1548
        %1551 = vmin.xlane.f32.xlu0 %v1550
        %v1552 = vpop.xlane.xlu0 %1551
        %vm1553 = vcmp.eq.f32.partialorder %v1550, %v1552
        %v1554 = vsel %vm1553, %v1549, inf
        %1555 = vmin.xlane.f32.xlu0 %v1554
        %v1556 = vpop.xlane.xlu0 %1555
        %v1557 = vcvt.f32.s32 %v1556
        %v1558 = vcvt.f32.s32 %v1552
        %v1559 = vshll.u32 %v1558, 16
        %v1560 = vadd.s32 %v1559, %v1557
        %vm1561 = vcmp.lt.s32.totalorder %v1177, %v1178
        %v1562 = vsel %vm1561, %v1177, %v1178
        %vm1563 = vcmp.lt.s32.totalorder %v1562, %v1179
        %v1564 = vsel %vm1563, %v1562, %v1179
        %vm1565 = vcmp.lt.s32.totalorder %v1564, %v1180
        %v1566 = vsel %vm1565, %v1564, %v1180
        %v1567 = vand.u32 %v1566, 65535
        %v1568 = vshra.s32 %v1566, 16
        %v1569 = vcvt.s32.f32 %v1567
        %v1570 = vcvt.s32.f32 %v1568
        %1571 = vmin.xlane.f32.xlu0 %v1570
        %v1572 = vpop.xlane.xlu0 %1571
        %vm1573 = vcmp.eq.f32.partialorder %v1570, %v1572
        %v1574 = vsel %vm1573, %v1569, inf
        %1575 = vmin.xlane.f32.xlu0 %v1574
        %v1576 = vpop.xlane.xlu0 %1575
        %v1577 = vcvt.f32.s32 %v1576
        %v1578 = vcvt.f32.s32 %v1572
        %v1579 = vshll.u32 %v1578, 16
        %v1580 = vadd.s32 %v1579, %v1577
        %vm1581 = vcmp.lt.s32.totalorder %v1181, %v1182
        %v1582 = vsel %vm1581, %v1181, %v1182
        %vm1583 = vcmp.lt.s32.totalorder %v1582, %v1183
        %v1584 = vsel %vm1583, %v1582, %v1183
        %vm1585 = vcmp.lt.s32.totalorder %v1584, %v1184
        %v1586 = vsel %vm1585, %v1584, %v1184
        %v1587 = vand.u32 %v1586, 65535
        %v1588 = vshra.s32 %v1586, 16
        %v1589 = vcvt.s32.f32 %v1587
        %v1590 = vcvt.s32.f32 %v1588
        %1591 = vmin.xlane.f32.xlu0 %v1590
        %v1592 = vpop.xlane.xlu0 %1591
        %vm1593 = vcmp.eq.f32.partialorder %v1590, %v1592
        %v1594 = vsel %vm1593, %v1589, inf
        %1595 = vmin.xlane.f32.xlu0 %v1594
        %v1596 = vpop.xlane.xlu0 %1595
        %v1597 = vcvt.f32.s32 %v1596
        %v1598 = vcvt.f32.s32 %v1592
        %v1599 = vshll.u32 %v1598, 16
        %v1600 = vadd.s32 %v1599, %v1597
        %vm1601 = vcmp.lt.s32.totalorder %v1185, %v1186
        %v1602 = vsel %vm1601, %v1185, %v1186
        %vm1603 = vcmp.lt.s32.totalorder %v1602, %v1187
        %v1604 = vsel %vm1603, %v1602, %v1187
        %vm1605 = vcmp.lt.s32.totalorder %v1604, %v1188
        %v1606 = vsel %vm1605, %v1604, %v1188
        %v1607 = vand.u32 %v1606, 65535
        %v1608 = vshra.s32 %v1606, 16
        %v1609 = vcvt.s32.f32 %v1607
        %v1610 = vcvt.s32.f32 %v1608
        %1611 = vmin.xlane.f32.xlu0 %v1610
        %v1612 = vpop.xlane.xlu0 %1611
        %vm1613 = vcmp.eq.f32.partialorder %v1610, %v1612
        %v1614 = vsel %vm1613, %v1609, inf
        %1615 = vmin.xlane.f32.xlu0 %v1614
        %v1616 = vpop.xlane.xlu0 %1615
        %v1617 = vcvt.f32.s32 %v1616
        %v1618 = vcvt.f32.s32 %v1612
        %v1619 = vshll.u32 %v1618, 16
        %v1620 = vadd.s32 %v1619, %v1617
        %vm1621 = vcmp.lt.s32.totalorder %v1189, %v1190
        %v1622 = vsel %vm1621, %v1189, %v1190
        %vm1623 = vcmp.lt.s32.totalorder %v1622, %v1191
        %v1624 = vsel %vm1623, %v1622, %v1191
        %vm1625 = vcmp.lt.s32.totalorder %v1624, %v1192
        %v1626 = vsel %vm1625, %v1624, %v1192
        %v1627 = vand.u32 %v1626, 65535
        %v1628 = vshra.s32 %v1626, 16
        %v1629 = vcvt.s32.f32 %v1627
        %v1630 = vcvt.s32.f32 %v1628
        %1631 = vmin.xlane.f32.xlu0 %v1630
        %v1632 = vpop.xlane.xlu0 %1631
        %vm1633 = vcmp.eq.f32.partialorder %v1630, %v1632
        %v1634 = vsel %vm1633, %v1629, inf
        %1635 = vmin.xlane.f32.xlu0 %v1634
        %v1636 = vpop.xlane.xlu0 %1635
        %v1637 = vcvt.f32.s32 %v1636
        %v1638 = vcvt.f32.s32 %v1632
        %v1639 = vshll.u32 %v1638, 16
        %v1640 = vadd.s32 %v1639, %v1637
        %vm1641 = vcmp.lt.s32.totalorder %v1193, %v1194
        %v1642 = vsel %vm1641, %v1193, %v1194
        %vm1643 = vcmp.lt.s32.totalorder %v1642, %v1195
        %v1644 = vsel %vm1643, %v1642, %v1195
        %vm1645 = vcmp.lt.s32.totalorder %v1644, %v1196
        %v1646 = vsel %vm1645, %v1644, %v1196
        %v1647 = vand.u32 %v1646, 65535
        %v1648 = vshra.s32 %v1646, 16
        %v1649 = vcvt.s32.f32 %v1647
        %v1650 = vcvt.s32.f32 %v1648
        %1651 = vmin.xlane.f32.xlu0 %v1650
        %v1652 = vpop.xlane.xlu0 %1651
        %vm1653 = vcmp.eq.f32.partialorder %v1650, %v1652
        %v1654 = vsel %vm1653, %v1649, inf
        %1655 = vmin.xlane.f32.xlu0 %v1654
        %v1656 = vpop.xlane.xlu0 %1655
        %v1657 = vcvt.f32.s32 %v1656
        %v1658 = vcvt.f32.s32 %v1652
        %v1659 = vshll.u32 %v1658, 16
        %v1660 = vadd.s32 %v1659, %v1657
        %vm1661 = vcmp.lt.s32.totalorder %v1197, %v1198
        %v1662 = vsel %vm1661, %v1197, %v1198
        %vm1663 = vcmp.lt.s32.totalorder %v1662, %v1199
        %v1664 = vsel %vm1663, %v1662, %v1199
        %vm1665 = vcmp.lt.s32.totalorder %v1664, %v1200
        %v1666 = vsel %vm1665, %v1664, %v1200
        %v1667 = vand.u32 %v1666, 65535
        %v1668 = vshra.s32 %v1666, 16
        %v1669 = vcvt.s32.f32 %v1667
        %v1670 = vcvt.s32.f32 %v1668
        %1671 = vmin.xlane.f32.xlu0 %v1670
        %v1672 = vpop.xlane.xlu0 %1671
        %vm1673 = vcmp.eq.f32.partialorder %v1670, %v1672
        %v1674 = vsel %vm1673, %v1669, inf
        %1675 = vmin.xlane.f32.xlu0 %v1674
        %v1676 = vpop.xlane.xlu0 %1675
        %v1677 = vcvt.f32.s32 %v1676
        %v1678 = vcvt.f32.s32 %v1672
        %v1679 = vshll.u32 %v1678, 16
        %v1680 = vadd.s32 %v1679, %v1677
        %vm1681 = vcmp.lt.s32.totalorder %v1201, %v1202
        %v1682 = vsel %vm1681, %v1201, %v1202
        %vm1683 = vcmp.lt.s32.totalorder %v1682, %v1203
        %v1684 = vsel %vm1683, %v1682, %v1203
        %vm1685 = vcmp.lt.s32.totalorder %v1684, %v1204
        %v1686 = vsel %vm1685, %v1684, %v1204
        %v1687 = vand.u32 %v1686, 65535
        %v1688 = vshra.s32 %v1686, 16
        %v1689 = vcvt.s32.f32 %v1687
        %v1690 = vcvt.s32.f32 %v1688
        %1691 = vmin.xlane.f32.xlu0 %v1690
        %v1692 = vpop.xlane.xlu0 %1691
        %vm1693 = vcmp.eq.f32.partialorder %v1690, %v1692
        %v1694 = vsel %vm1693, %v1689, inf
        %1695 = vmin.xlane.f32.xlu0 %v1694
        %v1696 = vpop.xlane.xlu0 %1695
        %v1697 = vcvt.f32.s32 %v1696
        %v1698 = vcvt.f32.s32 %v1692
        %v1699 = vshll.u32 %v1698, 16
        %v1700 = vadd.s32 %v1699, %v1697
        %vm1701 = vcmp.lt.s32.totalorder %v1205, %v1206
        %v1702 = vsel %vm1701, %v1205, %v1206
        %vm1703 = vcmp.lt.s32.totalorder %v1702, %v1207
        %v1704 = vsel %vm1703, %v1702, %v1207
        %vm1705 = vcmp.lt.s32.totalorder %v1704, %v1208
        %v1706 = vsel %vm1705, %v1704, %v1208
        %v1707 = vand.u32 %v1706, 65535
        %v1708 = vshra.s32 %v1706, 16
        %v1709 = vcvt.s32.f32 %v1707
        %v1710 = vcvt.s32.f32 %v1708
        %1711 = vmin.xlane.f32.xlu0 %v1710
        %v1712 = vpop.xlane.xlu0 %1711
        %vm1713 = vcmp.eq.f32.partialorder %v1710, %v1712
        %v1714 = vsel %vm1713, %v1709, inf
        %1715 = vmin.xlane.f32.xlu0 %v1714
        %v1716 = vpop.xlane.xlu0 %1715
        %v1717 = vcvt.f32.s32 %v1716
        %v1718 = vcvt.f32.s32 %v1712
        %v1719 = vshll.u32 %v1718, 16
        %v1720 = vadd.s32 %v1719, %v1717
        %vm1721 = vcmp.lt.s32.totalorder %v1209, %v1210
        %v1722 = vsel %vm1721, %v1209, %v1210
        %vm1723 = vcmp.lt.s32.totalorder %v1722, %v1211
        %v1724 = vsel %vm1723, %v1722, %v1211
        %vm1725 = vcmp.lt.s32.totalorder %v1724, %v1212
        %v1726 = vsel %vm1725, %v1724, %v1212
        %v1727 = vand.u32 %v1726, 65535
        %v1728 = vshra.s32 %v1726, 16
        %v1729 = vcvt.s32.f32 %v1727
        %v1730 = vcvt.s32.f32 %v1728
        %1731 = vmin.xlane.f32.xlu0 %v1730
        %v1732 = vpop.xlane.xlu0 %1731
        %vm1733 = vcmp.eq.f32.partialorder %v1730, %v1732
        %v1734 = vsel %vm1733, %v1729, inf
        %1735 = vmin.xlane.f32.xlu0 %v1734
        %v1736 = vpop.xlane.xlu0 %1735
        %v1737 = vcvt.f32.s32 %v1736
        %v1738 = vcvt.f32.s32 %v1732
        %v1739 = vshll.u32 %v1738, 16
        %v1740 = vadd.s32 %v1739, %v1737
        %vm1741 = vcmp.lt.s32.totalorder %v1213, %v1214
        %v1742 = vsel %vm1741, %v1213, %v1214
        %vm1743 = vcmp.lt.s32.totalorder %v1742, %v1215
        %v1744 = vsel %vm1743, %v1742, %v1215
        %vm1745 = vcmp.lt.s32.totalorder %v1744, %v1216
        %v1746 = vsel %vm1745, %v1744, %v1216
        %v1747 = vand.u32 %v1746, 65535
        %v1748 = vshra.s32 %v1746, 16
        %v1749 = vcvt.s32.f32 %v1747
        %v1750 = vcvt.s32.f32 %v1748
        %1751 = vmin.xlane.f32.xlu0 %v1750
        %v1752 = vpop.xlane.xlu0 %1751
        %vm1753 = vcmp.eq.f32.partialorder %v1750, %v1752
        %v1754 = vsel %vm1753, %v1749, inf
        %1755 = vmin.xlane.f32.xlu0 %v1754
        %v1756 = vpop.xlane.xlu0 %1755
        %v1757 = vcvt.f32.s32 %v1756
        %v1758 = vcvt.f32.s32 %v1752
        %v1759 = vshll.u32 %v1758, 16
        %v1760 = vadd.s32 %v1759, %v1757
        %vm1761 = vcmp.lt.s32.totalorder %v1217, %v1218
        %v1762 = vsel %vm1761, %v1217, %v1218
        %vm1763 = vcmp.lt.s32.totalorder %v1762, %v1219
        %v1764 = vsel %vm1763, %v1762, %v1219
        %vm1765 = vcmp.lt.s32.totalorder %v1764, %v1220
        %v1766 = vsel %vm1765, %v1764, %v1220
        %v1767 = vand.u32 %v1766, 65535
        %v1768 = vshra.s32 %v1766, 16
        %v1769 = vcvt.s32.f32 %v1767
        %v1770 = vcvt.s32.f32 %v1768
        %1771 = vmin.xlane.f32.xlu0 %v1770
        %v1772 = vpop.xlane.xlu0 %1771
        %vm1773 = vcmp.eq.f32.partialorder %v1770, %v1772
        %v1774 = vsel %vm1773, %v1769, inf
        %1775 = vmin.xlane.f32.xlu0 %v1774
        %v1776 = vpop.xlane.xlu0 %1775
        %v1777 = vcvt.f32.s32 %v1776
        %v1778 = vcvt.f32.s32 %v1772
        %v1779 = vshll.u32 %v1778, 16
        %v1780 = vadd.s32 %v1779, %v1777
        %vm1781 = vcmp.lt.s32.totalorder %v1221, %v1222
        %v1782 = vsel %vm1781, %v1221, %v1222
        %vm1783 = vcmp.lt.s32.totalorder %v1782, %v1223
        %v1784 = vsel %vm1783, %v1782, %v1223
        %vm1785 = vcmp.lt.s32.totalorder %v1784, %v1224
        %v1786 = vsel %vm1785, %v1784, %v1224
        %v1787 = vand.u32 %v1786, 65535
        %v1788 = vshra.s32 %v1786, 16
        %v1789 = vcvt.s32.f32 %v1787
        %v1790 = vcvt.s32.f32 %v1788
        %1791 = vmin.xlane.f32.xlu0 %v1790
        %v1792 = vpop.xlane.xlu0 %1791
        %vm1793 = vcmp.eq.f32.partialorder %v1790, %v1792
        %v1794 = vsel %vm1793, %v1789, inf
        %1795 = vmin.xlane.f32.xlu0 %v1794
        %v1796 = vpop.xlane.xlu0 %1795
        %v1797 = vcvt.f32.s32 %v1796
        %v1798 = vcvt.f32.s32 %v1792
        %v1799 = vshll.u32 %v1798, 16
        %v1800 = vadd.s32 %v1799, %v1797
        %vm1801 = vcmp.lt.s32.totalorder %v1225, %v1226
        %v1802 = vsel %vm1801, %v1225, %v1226
        %vm1803 = vcmp.lt.s32.totalorder %v1802, %v1227
        %v1804 = vsel %vm1803, %v1802, %v1227
        %vm1805 = vcmp.lt.s32.totalorder %v1804, %v1228
        %v1806 = vsel %vm1805, %v1804, %v1228
        %v1807 = vand.u32 %v1806, 65535
        %v1808 = vshra.s32 %v1806, 16
        %v1809 = vcvt.s32.f32 %v1807
        %v1810 = vcvt.s32.f32 %v1808
        %1811 = vmin.xlane.f32.xlu0 %v1810
        %v1812 = vpop.xlane.xlu0 %1811
        %vm1813 = vcmp.eq.f32.partialorder %v1810, %v1812
        %v1814 = vsel %vm1813, %v1809, inf
        %1815 = vmin.xlane.f32.xlu0 %v1814
        %v1816 = vpop.xlane.xlu0 %1815
        %v1817 = vcvt.f32.s32 %v1816
        %v1818 = vcvt.f32.s32 %v1812
        %v1819 = vshll.u32 %v1818, 16
        %v1820 = vadd.s32 %v1819, %v1817
        %vm1821 = vcmp.lt.s32.totalorder %v1229, %v1230
        %v1822 = vsel %vm1821, %v1229, %v1230
        %vm1823 = vcmp.lt.s32.totalorder %v1822, %v1231
        %v1824 = vsel %vm1823, %v1822, %v1231
        %vm1825 = vcmp.lt.s32.totalorder %v1824, %v1232
        %v1826 = vsel %vm1825, %v1824, %v1232
        %v1827 = vand.u32 %v1826, 65535
        %v1828 = vshra.s32 %v1826, 16
        %v1829 = vcvt.s32.f32 %v1827
        %v1830 = vcvt.s32.f32 %v1828
        %1831 = vmin.xlane.f32.xlu0 %v1830
        %v1832 = vpop.xlane.xlu0 %1831
        %vm1833 = vcmp.eq.f32.partialorder %v1830, %v1832
        %v1834 = vsel %vm1833, %v1829, inf
        %1835 = vmin.xlane.f32.xlu0 %v1834
        %v1836 = vpop.xlane.xlu0 %1835
        %v1837 = vcvt.f32.s32 %v1836
        %v1838 = vcvt.f32.s32 %v1832
        %v1839 = vshll.u32 %v1838, 16
        %v1840 = vadd.s32 %v1839, %v1837
        %vm1841 = vcmp.lt.s32.totalorder %v1233, %v1234
        %v1842 = vsel %vm1841, %v1233, %v1234
        %vm1843 = vcmp.lt.s32.totalorder %v1842, %v1235
        %v1844 = vsel %vm1843, %v1842, %v1235
        %vm1845 = vcmp.lt.s32.totalorder %v1844, %v1236
        %v1846 = vsel %vm1845, %v1844, %v1236
        %v1847 = vand.u32 %v1846, 65535
        %v1848 = vshra.s32 %v1846, 16
        %v1849 = vcvt.s32.f32 %v1847
        %v1850 = vcvt.s32.f32 %v1848
        %1851 = vmin.xlane.f32.xlu0 %v1850
        %v1852 = vpop.xlane.xlu0 %1851
        %vm1853 = vcmp.eq.f32.partialorder %v1850, %v1852
        %v1854 = vsel %vm1853, %v1849, inf
        %1855 = vmin.xlane.f32.xlu0 %v1854
        %v1856 = vpop.xlane.xlu0 %1855
        %v1857 = vcvt.f32.s32 %v1856
        %v1858 = vcvt.f32.s32 %v1852
        %v1859 = vshll.u32 %v1858, 16
        %v1860 = vadd.s32 %v1859, %v1857
        %vm1861 = vcmp.lt.s32.totalorder %v1237, %v1238
        %v1862 = vsel %vm1861, %v1237, %v1238
        %vm1863 = vcmp.lt.s32.totalorder %v1862, %v1239
        %v1864 = vsel %vm1863, %v1862, %v1239
        %vm1865 = vcmp.lt.s32.totalorder %v1864, %v1240
        %v1866 = vsel %vm1865, %v1864, %v1240
        %v1867 = vand.u32 %v1866, 65535
        %v1868 = vshra.s32 %v1866, 16
        %v1869 = vcvt.s32.f32 %v1867
        %v1870 = vcvt.s32.f32 %v1868
        %1871 = vmin.xlane.f32.xlu0 %v1870
        %v1872 = vpop.xlane.xlu0 %1871
        %vm1873 = vcmp.eq.f32.partialorder %v1870, %v1872
        %v1874 = vsel %vm1873, %v1869, inf
        %1875 = vmin.xlane.f32.xlu0 %v1874
        %v1876 = vpop.xlane.xlu0 %1875
        %v1877 = vcvt.f32.s32 %v1876
        %v1878 = vcvt.f32.s32 %v1872
        %v1879 = vshll.u32 %v1878, 16
        %v1880 = vadd.s32 %v1879, %v1877
        %vm1881 = vcmp.eq.s32.totalorder %v821, %v1260
        %vm1882 = vcmp.eq.s32.totalorder %v822, %v1260
        %vm1883 = vcmp.eq.s32.totalorder %v823, %v1260
        %vm1884 = vcmp.eq.s32.totalorder %v824, %v1260
        %vm1885 = vcmp.eq.s32.totalorder %v821, %v1280
        %vm1886 = vcmp.eq.s32.totalorder %v822, %v1280
        %vm1887 = vcmp.eq.s32.totalorder %v823, %v1280
        %vm1888 = vcmp.eq.s32.totalorder %v824, %v1280
        %vm1889 = vcmp.eq.s32.totalorder %v821, %v1300
        %vm1890 = vcmp.eq.s32.totalorder %v822, %v1300
        %vm1891 = vcmp.eq.s32.totalorder %v823, %v1300
        %vm1892 = vcmp.eq.s32.totalorder %v824, %v1300
        %vm1893 = vcmp.eq.s32.totalorder %v821, %v1320
        %vm1894 = vcmp.eq.s32.totalorder %v822, %v1320
        %vm1895 = vcmp.eq.s32.totalorder %v823, %v1320
        %vm1896 = vcmp.eq.s32.totalorder %v824, %v1320
        %vm1897 = vcmp.eq.s32.totalorder %v821, %v1340
        %vm1898 = vcmp.eq.s32.totalorder %v822, %v1340
        %vm1899 = vcmp.eq.s32.totalorder %v823, %v1340
        %vm1900 = vcmp.eq.s32.totalorder %v824, %v1340
        %vm1901 = vcmp.eq.s32.totalorder %v821, %v1360
        %vm1902 = vcmp.eq.s32.totalorder %v822, %v1360
        %vm1903 = vcmp.eq.s32.totalorder %v823, %v1360
        %vm1904 = vcmp.eq.s32.totalorder %v824, %v1360
        %vm1905 = vcmp.eq.s32.totalorder %v821, %v1380
        %vm1906 = vcmp.eq.s32.totalorder %v822, %v1380
        %vm1907 = vcmp.eq.s32.totalorder %v823, %v1380
        %vm1908 = vcmp.eq.s32.totalorder %v824, %v1380
        %vm1909 = vcmp.eq.s32.totalorder %v821, %v1400
        %vm1910 = vcmp.eq.s32.totalorder %v822, %v1400
        %vm1911 = vcmp.eq.s32.totalorder %v823, %v1400
        %vm1912 = vcmp.eq.s32.totalorder %v824, %v1400
        %vm1913 = vcmp.eq.s32.totalorder %v821, %v1420
        %vm1914 = vcmp.eq.s32.totalorder %v822, %v1420
        %vm1915 = vcmp.eq.s32.totalorder %v823, %v1420
        %vm1916 = vcmp.eq.s32.totalorder %v824, %v1420
        %vm1917 = vcmp.eq.s32.totalorder %v821, %v1440
        %vm1918 = vcmp.eq.s32.totalorder %v822, %v1440
        %vm1919 = vcmp.eq.s32.totalorder %v823, %v1440
        %vm1920 = vcmp.eq.s32.totalorder %v824, %v1440
        %vm1921 = vcmp.eq.s32.totalorder %v821, %v1460
        %vm1922 = vcmp.eq.s32.totalorder %v822, %v1460
        %vm1923 = vcmp.eq.s32.totalorder %v823, %v1460
        %vm1924 = vcmp.eq.s32.totalorder %v824, %v1460
        %vm1925 = vcmp.eq.s32.totalorder %v821, %v1480
        %vm1926 = vcmp.eq.s32.totalorder %v822, %v1480
        %vm1927 = vcmp.eq.s32.totalorder %v823, %v1480
        %vm1928 = vcmp.eq.s32.totalorder %v824, %v1480
        %vm1929 = vcmp.eq.s32.totalorder %v821, %v1500
        %vm1930 = vcmp.eq.s32.totalorder %v822, %v1500
        %vm1931 = vcmp.eq.s32.totalorder %v823, %v1500
        %vm1932 = vcmp.eq.s32.totalorder %v824, %v1500
        %vm1933 = vcmp.eq.s32.totalorder %v821, %v1520
        %vm1934 = vcmp.eq.s32.totalorder %v822, %v1520
        %vm1935 = vcmp.eq.s32.totalorder %v823, %v1520
        %vm1936 = vcmp.eq.s32.totalorder %v824, %v1520
        %vm1937 = vcmp.eq.s32.totalorder %v821, %v1540
        %vm1938 = vcmp.eq.s32.totalorder %v822, %v1540
        %vm1939 = vcmp.eq.s32.totalorder %v823, %v1540
        %vm1940 = vcmp.eq.s32.totalorder %v824, %v1540
        %vm1941 = vcmp.eq.s32.totalorder %v821, %v1560
        %vm1942 = vcmp.eq.s32.totalorder %v822, %v1560
        %vm1943 = vcmp.eq.s32.totalorder %v823, %v1560
        %vm1944 = vcmp.eq.s32.totalorder %v824, %v1560
        %vm1945 = vcmp.eq.s32.totalorder %v821, %v1580
        %vm1946 = vcmp.eq.s32.totalorder %v822, %v1580
        %vm1947 = vcmp.eq.s32.totalorder %v823, %v1580
        %vm1948 = vcmp.eq.s32.totalorder %v824, %v1580
        %vm1949 = vcmp.eq.s32.totalorder %v821, %v1600
        %vm1950 = vcmp.eq.s32.totalorder %v822, %v1600
        %vm1951 = vcmp.eq.s32.totalorder %v823, %v1600
        %vm1952 = vcmp.eq.s32.totalorder %v824, %v1600
        %vm1953 = vcmp.eq.s32.totalorder %v821, %v1620
        %vm1954 = vcmp.eq.s32.totalorder %v822, %v1620
        %vm1955 = vcmp.eq.s32.totalorder %v823, %v1620
        %vm1956 = vcmp.eq.s32.totalorder %v824, %v1620
        %vm1957 = vcmp.eq.s32.totalorder %v821, %v1640
        %vm1958 = vcmp.eq.s32.totalorder %v822, %v1640
        %vm1959 = vcmp.eq.s32.totalorder %v823, %v1640
        %vm1960 = vcmp.eq.s32.totalorder %v824, %v1640
        %vm1961 = vcmp.eq.s32.totalorder %v821, %v1660
        %vm1962 = vcmp.eq.s32.totalorder %v822, %v1660
        %vm1963 = vcmp.eq.s32.totalorder %v823, %v1660
        %vm1964 = vcmp.eq.s32.totalorder %v824, %v1660
        %vm1965 = vcmp.eq.s32.totalorder %v821, %v1680
        %vm1966 = vcmp.eq.s32.totalorder %v822, %v1680
        %vm1967 = vcmp.eq.s32.totalorder %v823, %v1680
        %vm1968 = vcmp.eq.s32.totalorder %v824, %v1680
        %vm1969 = vcmp.eq.s32.totalorder %v821, %v1700
        %vm1970 = vcmp.eq.s32.totalorder %v822, %v1700
        %vm1971 = vcmp.eq.s32.totalorder %v823, %v1700
        %vm1972 = vcmp.eq.s32.totalorder %v824, %v1700
        %vm1973 = vcmp.eq.s32.totalorder %v821, %v1720
        %vm1974 = vcmp.eq.s32.totalorder %v822, %v1720
        %vm1975 = vcmp.eq.s32.totalorder %v823, %v1720
        %vm1976 = vcmp.eq.s32.totalorder %v824, %v1720
        %vm1977 = vcmp.eq.s32.totalorder %v821, %v1740
        %vm1978 = vcmp.eq.s32.totalorder %v822, %v1740
        %vm1979 = vcmp.eq.s32.totalorder %v823, %v1740
        %vm1980 = vcmp.eq.s32.totalorder %v824, %v1740
        %vm1981 = vcmp.eq.s32.totalorder %v821, %v1760
        %vm1982 = vcmp.eq.s32.totalorder %v822, %v1760
        %vm1983 = vcmp.eq.s32.totalorder %v823, %v1760
        %vm1984 = vcmp.eq.s32.totalorder %v824, %v1760
        %vm1985 = vcmp.eq.s32.totalorder %v821, %v1780
        %vm1986 = vcmp.eq.s32.totalorder %v822, %v1780
        %vm1987 = vcmp.eq.s32.totalorder %v823, %v1780
        %vm1988 = vcmp.eq.s32.totalorder %v824, %v1780
        %vm1989 = vcmp.eq.s32.totalorder %v821, %v1800
        %vm1990 = vcmp.eq.s32.totalorder %v822, %v1800
        %vm1991 = vcmp.eq.s32.totalorder %v823, %v1800
        %vm1992 = vcmp.eq.s32.totalorder %v824, %v1800
        %vm1993 = vcmp.eq.s32.totalorder %v821, %v1820
        %vm1994 = vcmp.eq.s32.totalorder %v822, %v1820
        %vm1995 = vcmp.eq.s32.totalorder %v823, %v1820
        %vm1996 = vcmp.eq.s32.totalorder %v824, %v1820
        %vm1997 = vcmp.eq.s32.totalorder %v821, %v1840
        %vm1998 = vcmp.eq.s32.totalorder %v822, %v1840
        %vm1999 = vcmp.eq.s32.totalorder %v823, %v1840
        %vm2000 = vcmp.eq.s32.totalorder %v824, %v1840
        %vm2001 = vcmp.eq.s32.totalorder %v821, %v1860
        %vm2002 = vcmp.eq.s32.totalorder %v822, %v1860
        %vm2003 = vcmp.eq.s32.totalorder %v823, %v1860
        %vm2004 = vcmp.eq.s32.totalorder %v824, %v1860
        %vm2005 = vcmp.eq.s32.totalorder %v821, %v1880
        %vm2006 = vcmp.eq.s32.totalorder %v822, %v1880
        %vm2007 = vcmp.eq.s32.totalorder %v823, %v1880
        %vm2008 = vcmp.eq.s32.totalorder %v824, %v1880
        %v2009 = vsel %vm1881, 1, 0
        %v2010 = vsel %vm1882, 1, 0
        %v2011 = vsel %vm1883, 1, 0
        %v2012 = vsel %vm1884, 1, 0
        %v2013 = vsel %vm1885, 1, 0
        %v2014 = vsel %vm1886, 1, 0
        %v2015 = vsel %vm1887, 1, 0
        %v2016 = vsel %vm1888, 1, 0
        %v2017 = vsel %vm1889, 1, 0
        %v2018 = vsel %vm1890, 1, 0
        %v2019 = vsel %vm1891, 1, 0
        %v2020 = vsel %vm1892, 1, 0
        %v2021 = vsel %vm1893, 1, 0
        %v2022 = vsel %vm1894, 1, 0
        %v2023 = vsel %vm1895, 1, 0
        %v2024 = vsel %vm1896, 1, 0
        %v2025 = vsel %vm1897, 1, 0
        %v2026 = vsel %vm1898, 1, 0
        %v2027 = vsel %vm1899, 1, 0
        %v2028 = vsel %vm1900, 1, 0
        %v2029 = vsel %vm1901, 1, 0
        %v2030 = vsel %vm1902, 1, 0
        %v2031 = vsel %vm1903, 1, 0
        %v2032 = vsel %vm1904, 1, 0
        %v2033 = vsel %vm1905, 1, 0
        %v2034 = vsel %vm1906, 1, 0
        %v2035 = vsel %vm1907, 1, 0
        %v2036 = vsel %vm1908, 1, 0
        %v2037 = vsel %vm1909, 1, 0
        %v2038 = vsel %vm1910, 1, 0
        %v2039 = vsel %vm1911, 1, 0
        %v2040 = vsel %vm1912, 1, 0
        %v2041 = vsel %vm1913, 1, 0
        %v2042 = vsel %vm1914, 1, 0
        %v2043 = vsel %vm1915, 1, 0
        %v2044 = vsel %vm1916, 1, 0
        %v2045 = vsel %vm1917, 1, 0
        %v2046 = vsel %vm1918, 1, 0
        %v2047 = vsel %vm1919, 1, 0
        %v2048 = vsel %vm1920, 1, 0
        %v2049 = vsel %vm1921, 1, 0
        %v2050 = vsel %vm1922, 1, 0
        %v2051 = vsel %vm1923, 1, 0
        %v2052 = vsel %vm1924, 1, 0
        %v2053 = vsel %vm1925, 1, 0
        %v2054 = vsel %vm1926, 1, 0
        %v2055 = vsel %vm1927, 1, 0
        %v2056 = vsel %vm1928, 1, 0
        %v2057 = vsel %vm1929, 1, 0
        %v2058 = vsel %vm1930, 1, 0
        %v2059 = vsel %vm1931, 1, 0
        %v2060 = vsel %vm1932, 1, 0
        %v2061 = vsel %vm1933, 1, 0
        %v2062 = vsel %vm1934, 1, 0
        %v2063 = vsel %vm1935, 1, 0
        %v2064 = vsel %vm1936, 1, 0
        %v2065 = vsel %vm1937, 1, 0
        %v2066 = vsel %vm1938, 1, 0
        %v2067 = vsel %vm1939, 1, 0
        %v2068 = vsel %vm1940, 1, 0
        %v2069 = vsel %vm1941, 1, 0
        %v2070 = vsel %vm1942, 1, 0
        %v2071 = vsel %vm1943, 1, 0
        %v2072 = vsel %vm1944, 1, 0
        %v2073 = vsel %vm1945, 1, 0
        %v2074 = vsel %vm1946, 1, 0
        %v2075 = vsel %vm1947, 1, 0
        %v2076 = vsel %vm1948, 1, 0
        %v2077 = vsel %vm1949, 1, 0
        %v2078 = vsel %vm1950, 1, 0
        %v2079 = vsel %vm1951, 1, 0
        %v2080 = vsel %vm1952, 1, 0
        %v2081 = vsel %vm1953, 1, 0
        %v2082 = vsel %vm1954, 1, 0
        %v2083 = vsel %vm1955, 1, 0
        %v2084 = vsel %vm1956, 1, 0
        %v2085 = vsel %vm1957, 1, 0
        %v2086 = vsel %vm1958, 1, 0
        %v2087 = vsel %vm1959, 1, 0
        %v2088 = vsel %vm1960, 1, 0
        %v2089 = vsel %vm1961, 1, 0
        %v2090 = vsel %vm1962, 1, 0
        %v2091 = vsel %vm1963, 1, 0
        %v2092 = vsel %vm1964, 1, 0
        %v2093 = vsel %vm1965, 1, 0
        %v2094 = vsel %vm1966, 1, 0
        %v2095 = vsel %vm1967, 1, 0
        %v2096 = vsel %vm1968, 1, 0
        %v2097 = vsel %vm1969, 1, 0
        %v2098 = vsel %vm1970, 1, 0
        %v2099 = vsel %vm1971, 1, 0
        %v2100 = vsel %vm1972, 1, 0
        %v2101 = vsel %vm1973, 1, 0
        %v2102 = vsel %vm1974, 1, 0
        %v2103 = vsel %vm1975, 1, 0
        %v2104 = vsel %vm1976, 1, 0
        %v2105 = vsel %vm1977, 1, 0
        %v2106 = vsel %vm1978, 1, 0
        %v2107 = vsel %vm1979, 1, 0
        %v2108 = vsel %vm1980, 1, 0
        %v2109 = vsel %vm1981, 1, 0
        %v2110 = vsel %vm1982, 1, 0
        %v2111 = vsel %vm1983, 1, 0
        %v2112 = vsel %vm1984, 1, 0
        %v2113 = vsel %vm1985, 1, 0
        %v2114 = vsel %vm1986, 1, 0
        %v2115 = vsel %vm1987, 1, 0
        %v2116 = vsel %vm1988, 1, 0
        %v2117 = vsel %vm1989, 1, 0
        %v2118 = vsel %vm1990, 1, 0
        %v2119 = vsel %vm1991, 1, 0
        %v2120 = vsel %vm1992, 1, 0
        %v2121 = vsel %vm1993, 1, 0
        %v2122 = vsel %vm1994, 1, 0
        %v2123 = vsel %vm1995, 1, 0
        %v2124 = vsel %vm1996, 1, 0
        %v2125 = vsel %vm1997, 1, 0
        %v2126 = vsel %vm1998, 1, 0
        %v2127 = vsel %vm1999, 1, 0
        %v2128 = vsel %vm2000, 1, 0
        %v2129 = vsel %vm2001, 1, 0
        %v2130 = vsel %vm2002, 1, 0
        %v2131 = vsel %vm2003, 1, 0
        %v2132 = vsel %vm2004, 1, 0
        %v2133 = vsel %vm2005, 1, 0
        %v2134 = vsel %vm2006, 1, 0
        %v2135 = vsel %vm2007, 1, 0
        %v2136 = vsel %vm2008, 1, 0
        %v2137 = vcvt.s32.f32 %v2009
        %v2138 = vcvt.s32.f32 %v2010
        %v2139 = vcvt.s32.f32 %v2011
        %v2140 = vcvt.s32.f32 %v2012
        %v2141 = vcvt.s32.f32 %v2013
        %v2142 = vcvt.s32.f32 %v2014
        %v2143 = vcvt.s32.f32 %v2015
        %v2144 = vcvt.s32.f32 %v2016
        %v2145 = vcvt.s32.f32 %v2017
        %v2146 = vcvt.s32.f32 %v2018
        %v2147 = vcvt.s32.f32 %v2019
        %v2148 = vcvt.s32.f32 %v2020
        %v2149 = vcvt.s32.f32 %v2021
        %v2150 = vcvt.s32.f32 %v2022
        %v2151 = vcvt.s32.f32 %v2023
        %v2152 = vcvt.s32.f32 %v2024
        %v2153 = vcvt.s32.f32 %v2025
        %v2154 = vcvt.s32.f32 %v2026
        %v2155 = vcvt.s32.f32 %v2027
        %v2156 = vcvt.s32.f32 %v2028
        %v2157 = vcvt.s32.f32 %v2029
        %v2158 = vcvt.s32.f32 %v2030
        %v2159 = vcvt.s32.f32 %v2031
        %v2160 = vcvt.s32.f32 %v2032
        %v2161 = vcvt.s32.f32 %v2033
        %v2162 = vcvt.s32.f32 %v2034
        %v2163 = vcvt.s32.f32 %v2035
        %v2164 = vcvt.s32.f32 %v2036
        %v2165 = vcvt.s32.f32 %v2037
        %v2166 = vcvt.s32.f32 %v2038
        %v2167 = vcvt.s32.f32 %v2039
        %v2168 = vcvt.s32.f32 %v2040
        %v2169 = vcvt.s32.f32 %v2041
        %v2170 = vcvt.s32.f32 %v2042
        %v2171 = vcvt.s32.f32 %v2043
        %v2172 = vcvt.s32.f32 %v2044
        %v2173 = vcvt.s32.f32 %v2045
        %v2174 = vcvt.s32.f32 %v2046
        %v2175 = vcvt.s32.f32 %v2047
        %v2176 = vcvt.s32.f32 %v2048
        %v2177 = vcvt.s32.f32 %v2049
        %v2178 = vcvt.s32.f32 %v2050
        %v2179 = vcvt.s32.f32 %v2051
        %v2180 = vcvt.s32.f32 %v2052
        %v2181 = vcvt.s32.f32 %v2053
        %v2182 = vcvt.s32.f32 %v2054
        %v2183 = vcvt.s32.f32 %v2055
        %v2184 = vcvt.s32.f32 %v2056
        %v2185 = vcvt.s32.f32 %v2057
        %v2186 = vcvt.s32.f32 %v2058
        %v2187 = vcvt.s32.f32 %v2059
        %v2188 = vcvt.s32.f32 %v2060
        %v2189 = vcvt.s32.f32 %v2061
        %v2190 = vcvt.s32.f32 %v2062
        %v2191 = vcvt.s32.f32 %v2063
        %v2192 = vcvt.s32.f32 %v2064
        %v2193 = vcvt.s32.f32 %v2065
        %v2194 = vcvt.s32.f32 %v2066
        %v2195 = vcvt.s32.f32 %v2067
        %v2196 = vcvt.s32.f32 %v2068
        %v2197 = vcvt.s32.f32 %v2069
        %v2198 = vcvt.s32.f32 %v2070
        %v2199 = vcvt.s32.f32 %v2071
        %v2200 = vcvt.s32.f32 %v2072
        %v2201 = vcvt.s32.f32 %v2073
        %v2202 = vcvt.s32.f32 %v2074
        %v2203 = vcvt.s32.f32 %v2075
        %v2204 = vcvt.s32.f32 %v2076
        %v2205 = vcvt.s32.f32 %v2077
        %v2206 = vcvt.s32.f32 %v2078
        %v2207 = vcvt.s32.f32 %v2079
        %v2208 = vcvt.s32.f32 %v2080
        %v2209 = vcvt.s32.f32 %v2081
        %v2210 = vcvt.s32.f32 %v2082
        %v2211 = vcvt.s32.f32 %v2083
        %v2212 = vcvt.s32.f32 %v2084
        %v2213 = vcvt.s32.f32 %v2085
        %v2214 = vcvt.s32.f32 %v2086
        %v2215 = vcvt.s32.f32 %v2087
        %v2216 = vcvt.s32.f32 %v2088
        %v2217 = vcvt.s32.f32 %v2089
        %v2218 = vcvt.s32.f32 %v2090
        %v2219 = vcvt.s32.f32 %v2091
        %v2220 = vcvt.s32.f32 %v2092
        %v2221 = vcvt.s32.f32 %v2093
        %v2222 = vcvt.s32.f32 %v2094
        %v2223 = vcvt.s32.f32 %v2095
        %v2224 = vcvt.s32.f32 %v2096
        %v2225 = vcvt.s32.f32 %v2097
        %v2226 = vcvt.s32.f32 %v2098
        %v2227 = vcvt.s32.f32 %v2099
        %v2228 = vcvt.s32.f32 %v2100
        %v2229 = vcvt.s32.f32 %v2101
        %v2230 = vcvt.s32.f32 %v2102
        %v2231 = vcvt.s32.f32 %v2103
        %v2232 = vcvt.s32.f32 %v2104
        %v2233 = vcvt.s32.f32 %v2105
        %v2234 = vcvt.s32.f32 %v2106
        %v2235 = vcvt.s32.f32 %v2107
        %v2236 = vcvt.s32.f32 %v2108
        %v2237 = vcvt.s32.f32 %v2109
        %v2238 = vcvt.s32.f32 %v2110
        %v2239 = vcvt.s32.f32 %v2111
        %v2240 = vcvt.s32.f32 %v2112
        %v2241 = vcvt.s32.f32 %v2113
        %v2242 = vcvt.s32.f32 %v2114
        %v2243 = vcvt.s32.f32 %v2115
        %v2244 = vcvt.s32.f32 %v2116
        %v2245 = vcvt.s32.f32 %v2117
        %v2246 = vcvt.s32.f32 %v2118
        %v2247 = vcvt.s32.f32 %v2119
        %v2248 = vcvt.s32.f32 %v2120
        %v2249 = vcvt.s32.f32 %v2121
        %v2250 = vcvt.s32.f32 %v2122
        %v2251 = vcvt.s32.f32 %v2123
        %v2252 = vcvt.s32.f32 %v2124
        %v2253 = vcvt.s32.f32 %v2125
        %v2254 = vcvt.s32.f32 %v2126
        %v2255 = vcvt.s32.f32 %v2127
        %v2256 = vcvt.s32.f32 %v2128
        %v2257 = vcvt.s32.f32 %v2129
        %v2258 = vcvt.s32.f32 %v2130
        %v2259 = vcvt.s32.f32 %v2131
        %v2260 = vcvt.s32.f32 %v2132
        %v2261 = vcvt.s32.f32 %v2133
        %v2262 = vcvt.s32.f32 %v2134
        %v2263 = vcvt.s32.f32 %v2135
        %v2264 = vcvt.s32.f32 %v2136
        %v2265 = vld [vmem:[%s2] sm:$0xff]
        %v2266 = vld [vmem:[%s2 + $0x8] sm:$0xff]
        %v2267 = vld [vmem:[%s2 + $0x10] sm:$0xff]
        %v2268 = vld [vmem:[%s2 + $0x18] sm:$0xff]
        %v2269 = vld [vmem:[%s2 + $0x20] sm:$0xff]
        %v2270 = vld [vmem:[%s2 + $0x28] sm:$0xff]
        %v2271 = vld [vmem:[%s2 + $0x30] sm:$0xff]
        %v2272 = vld [vmem:[%s2 + $0x38] sm:$0xff]
        %v2273 = vld [vmem:[%s2 + $0x40] sm:$0xff]
        %v2274 = vld [vmem:[%s2 + $0x48] sm:$0xff]
        %v2275 = vld [vmem:[%s2 + $0x50] sm:$0xff]
        %v2276 = vld [vmem:[%s2 + $0x58] sm:$0xff]
        %v2277 = vld [vmem:[%s2 + $0x60] sm:$0xff]
        %v2278 = vld [vmem:[%s2 + $0x68] sm:$0xff]
        %v2279 = vld [vmem:[%s2 + $0x70] sm:$0xff]
        %v2280 = vld [vmem:[%s2 + $0x78] sm:$0xff]
        %v2281 = vld [vmem:[%s2 + $0x80] sm:$0xff]
        %v2282 = vld [vmem:[%s2 + $0x88] sm:$0xff]
        %v2283 = vld [vmem:[%s2 + $0x90] sm:$0xff]
        %v2284 = vld [vmem:[%s2 + $0x98] sm:$0xff]
        %v2285 = vld [vmem:[%s2 + $0xa0] sm:$0xff]
        %v2286 = vld [vmem:[%s2 + $0xa8] sm:$0xff]
        %v2287 = vld [vmem:[%s2 + $0xb0] sm:$0xff]
        %v2288 = vld [vmem:[%s2 + $0xb8] sm:$0xff]
        %v2289 = vld [vmem:[%s2 + $0xc0] sm:$0xff]
        %v2290 = vld [vmem:[%s2 + $0xc8] sm:$0xff]
        %v2291 = vld [vmem:[%s2 + $0xd0] sm:$0xff]
        %v2292 = vld [vmem:[%s2 + $0xd8] sm:$0xff]
        %v2293 = vld [vmem:[%s2 + $0xe0] sm:$0xff]
        %v2294 = vld [vmem:[%s2 + $0xe8] sm:$0xff]
        %v2295 = vld [vmem:[%s2 + $0xf0] sm:$0xff]
        %v2296 = vld [vmem:[%s2 + $0xf8] sm:$0xff]
        %v2297 = vld [vmem:[%s2 + $0x100] sm:$0xff]
        %v2298 = vld [vmem:[%s2 + $0x108] sm:$0xff]
        %v2299 = vld [vmem:[%s2 + $0x110] sm:$0xff]
        %v2300 = vld [vmem:[%s2 + $0x118] sm:$0xff]
        %v2301 = vld [vmem:[%s2 + $0x120] sm:$0xff]
        %v2302 = vld [vmem:[%s2 + $0x128] sm:$0xff]
        %v2303 = vld [vmem:[%s2 + $0x130] sm:$0xff]
        %v2304 = vld [vmem:[%s2 + $0x138] sm:$0xff]
        %v2305 = vld [vmem:[%s2 + $0x140] sm:$0xff]
        %v2306 = vld [vmem:[%s2 + $0x148] sm:$0xff]
        %v2307 = vld [vmem:[%s2 + $0x150] sm:$0xff]
        %v2308 = vld [vmem:[%s2 + $0x158] sm:$0xff]
        %v2309 = vld [vmem:[%s2 + $0x160] sm:$0xff]
        %v2310 = vld [vmem:[%s2 + $0x168] sm:$0xff]
        %v2311 = vld [vmem:[%s2 + $0x170] sm:$0xff]
        %v2312 = vld [vmem:[%s2 + $0x178] sm:$0xff]
        %v2313 = vld [vmem:[%s2 + $0x180] sm:$0xff]
        %v2314 = vld [vmem:[%s2 + $0x188] sm:$0xff]
        %v2315 = vld [vmem:[%s2 + $0x190] sm:$0xff]
        %v2316 = vld [vmem:[%s2 + $0x198] sm:$0xff]
        %v2317 = vld [vmem:[%s2 + $0x1a0] sm:$0xff]
        %v2318 = vld [vmem:[%s2 + $0x1a8] sm:$0xff]
        %v2319 = vld [vmem:[%s2 + $0x1b0] sm:$0xff]
        %v2320 = vld [vmem:[%s2 + $0x1b8] sm:$0xff]
        %v2321 = vld [vmem:[%s2 + $0x1c0] sm:$0xff]
        %v2322 = vld [vmem:[%s2 + $0x1c8] sm:$0xff]
        %v2323 = vld [vmem:[%s2 + $0x1d0] sm:$0xff]
        %v2324 = vld [vmem:[%s2 + $0x1d8] sm:$0xff]
        %v2325 = vld [vmem:[%s2 + $0x1e0] sm:$0xff]
        %v2326 = vld [vmem:[%s2 + $0x1e8] sm:$0xff]
        %v2327 = vld [vmem:[%s2 + $0x1f0] sm:$0xff]
        %v2328 = vld [vmem:[%s2 + $0x1f8] sm:$0xff]
        %2329 = vmatprep.subr.mxu0 0.0
        %2330 = vmatpush1.msra.mxu0 %v2280
        %2331 = vmatprep.subr.mxu0 0.0
        %2332 = vmatpush1.msra.mxu0 %v2279
        %2333 = vmatprep.subr.mxu0 0.0
        %2334 = vmatpush1.msra.mxu0 %v2278
        %2335 = vmatprep.subr.mxu0 0.0
        %2336 = vmatpush1.msra.mxu0 %v2277
        %2337 = vmatprep.subr.mxu0 0.0
        %2338 = vmatpush1.msra.mxu0 %v2276
        %2339 = vmatprep.subr.mxu0 0.0
        %2340 = vmatpush1.msra.mxu0 %v2275
        %2341 = vmatprep.subr.mxu0 0.0
        %2342 = vmatpush1.msra.mxu0 %v2274
        %2343 = vmatprep.subr.mxu0 0.0
        %2344 = vmatpush1.msra.mxu0 %v2273
        %2345 = vmatprep.subr.mxu0 0.0
        %2346 = vmatpush1.msra.mxu0 %v2272
        %2347 = vmatprep.subr.mxu0 0.0
        %2348 = vmatpush1.msra.mxu0 %v2271
        %2349 = vmatprep.subr.mxu0 0.0
        %2350 = vmatpush1.msra.mxu0 %v2270
        %2351 = vmatprep.subr.mxu0 0.0
        %2352 = vmatpush1.msra.mxu0 %v2269
        %2353 = vmatprep.subr.mxu0 0.0
        %2354 = vmatpush1.msra.mxu0 %v2268
        %2355 = vmatprep.subr.mxu0 0.0
        %2356 = vmatpush1.msra.mxu0 %v2267
        %2357 = vmatprep.subr.mxu0 0.0
        %2358 = vmatpush1.msra.mxu0 %v2266
        %2359 = vmatprep.subr.mxu0 0.0
        %2360 = vmatpush1.msra.mxu0 %v2265
        %2361 = vmatprep.subr.mxu0 0.0
        %2362 = vmatpush2.msra.mxu0 %v2296
        %2363 = vmatprep.subr.mxu0 0.0
        %2364 = vmatpush2.msra.mxu0 %v2295
        %2365 = vmatprep.subr.mxu0 0.0
        %2366 = vmatpush2.msra.mxu0 %v2294
        %2367 = vmatprep.subr.mxu0 0.0
        %2368 = vmatpush2.msra.mxu0 %v2293
        %2369 = vmatprep.subr.mxu0 0.0
        %2370 = vmatpush2.msra.mxu0 %v2292
        %2371 = vmatprep.subr.mxu0 0.0
        %2372 = vmatpush2.msra.mxu0 %v2291
        %2373 = vmatprep.subr.mxu0 0.0
        %2374 = vmatpush2.msra.mxu0 %v2290
        %2375 = vmatprep.subr.mxu0 0.0
        %2376 = vmatpush2.msra.mxu0 %v2289
        %2377 = vmatprep.subr.mxu0 0.0
        %2378 = vmatpush2.msra.mxu0 %v2288
        %2379 = vmatprep.subr.mxu0 0.0
        %2380 = vmatpush2.msra.mxu0 %v2287
        %2381 = vmatprep.subr.mxu0 0.0
        %2382 = vmatpush2.msra.mxu0 %v2286
        %2383 = vmatprep.subr.mxu0 0.0
        %2384 = vmatpush2.msra.mxu0 %v2285
        %2385 = vmatprep.subr.mxu0 0.0
        %2386 = vmatpush2.msra.mxu0 %v2284
        %2387 = vmatprep.subr.mxu0 0.0
        %2388 = vmatpush2.msra.mxu0 %v2283
        %2389 = vmatprep.subr.mxu0 0.0
        %2390 = vmatpush2.msra.mxu0 %v2282
        %2391 = vmatprep.subr.mxu0 0.0
        %2392 = vmatpush2.msra.mxu0 %v2281
        %2393 = vmatprep.mubr.f32.mxu0 %v2138
        %2394 = vmatmul.mubr.f32.gmra.mxu0 %v2137
        %v2395 = vpop.f32.mrf.mxu0
        %v2396 = vadd.f32 0.0, %v2395
        %v2397 = vpop.f32.mrf.mxu0
        %2398 = vmatprep.mubr.f32.mxu0 %v2142
        %2399 = vmatmul.mubr.f32.gmra.mxu0 %v2141
        %v2400 = vpop.f32.mrf.mxu0
        %v2401 = vadd.f32 0.0, %v2400
        %v2402 = vpop.f32.mrf.mxu0
        %2403 = vmatprep.mubr.f32.mxu0 %v2146
        %2404 = vmatmul.mubr.f32.gmra.mxu0 %v2145
        %v2405 = vpop.f32.mrf.mxu0
        %v2406 = vadd.f32 0.0, %v2405
        %v2407 = vpop.f32.mrf.mxu0
        %2408 = vmatprep.mubr.f32.mxu0 %v2150
        %2409 = vmatmul.mubr.f32.gmra.mxu0 %v2149
        %v2410 = vpop.f32.mrf.mxu0
        %v2411 = vadd.f32 0.0, %v2410
        %v2412 = vpop.f32.mrf.mxu0
        %2413 = vmatprep.mubr.f32.mxu0 %v2154
        %2414 = vmatmul.mubr.f32.gmra.mxu0 %v2153
        %v2415 = vpop.f32.mrf.mxu0
        %v2416 = vadd.f32 0.0, %v2415
        %v2417 = vpop.f32.mrf.mxu0
        %2418 = vmatprep.mubr.f32.mxu0 %v2158
        %2419 = vmatmul.mubr.f32.gmra.mxu0 %v2157
        %v2420 = vpop.f32.mrf.mxu0
        %v2421 = vadd.f32 0.0, %v2420
        %v2422 = vpop.f32.mrf.mxu0
        %2423 = vmatprep.mubr.f32.mxu0 %v2162
        %2424 = vmatmul.mubr.f32.gmra.mxu0 %v2161
        %v2425 = vpop.f32.mrf.mxu0
        %v2426 = vadd.f32 0.0, %v2425
        %v2427 = vpop.f32.mrf.mxu0
        %2428 = vmatprep.mubr.f32.mxu0 %v2166
        %2429 = vmatmul.mubr.f32.gmra.mxu0 %v2165
        %v2430 = vpop.f32.mrf.mxu0
        %v2431 = vadd.f32 0.0, %v2430
        %v2432 = vpop.f32.mrf.mxu0
        %2433 = vmatprep.mubr.f32.mxu0 %v2170
        %2434 = vmatmul.mubr.f32.gmra.mxu0 %v2169
        %v2435 = vpop.f32.mrf.mxu0
        %v2436 = vadd.f32 0.0, %v2435
        %v2437 = vpop.f32.mrf.mxu0
        %2438 = vmatprep.mubr.f32.mxu0 %v2174
        %2439 = vmatmul.mubr.f32.gmra.mxu0 %v2173
        %v2440 = vpop.f32.mrf.mxu0
        %v2441 = vadd.f32 0.0, %v2440
        %v2442 = vpop.f32.mrf.mxu0
        %2443 = vmatprep.mubr.f32.mxu0 %v2178
        %2444 = vmatmul.mubr.f32.gmra.mxu0 %v2177
        %v2445 = vpop.f32.mrf.mxu0
        %v2446 = vadd.f32 0.0, %v2445
        %v2447 = vpop.f32.mrf.mxu0
        %2448 = vmatprep.mubr.f32.mxu0 %v2182
        %2449 = vmatmul.mubr.f32.gmra.mxu0 %v2181
        %v2450 = vpop.f32.mrf.mxu0
        %v2451 = vadd.f32 0.0, %v2450
        %v2452 = vpop.f32.mrf.mxu0
        %2453 = vmatprep.mubr.f32.mxu0 %v2186
        %2454 = vmatmul.mubr.f32.gmra.mxu0 %v2185
        %v2455 = vpop.f32.mrf.mxu0
        %v2456 = vadd.f32 0.0, %v2455
        %v2457 = vpop.f32.mrf.mxu0
        %2458 = vmatprep.mubr.f32.mxu0 %v2190
        %2459 = vmatmul.mubr.f32.gmra.mxu0 %v2189
        %v2460 = vpop.f32.mrf.mxu0
        %v2461 = vadd.f32 0.0, %v2460
        %v2462 = vpop.f32.mrf.mxu0
        %2463 = vmatprep.mubr.f32.mxu0 %v2194
        %2464 = vmatmul.mubr.f32.gmra.mxu0 %v2193
        %v2465 = vpop.f32.mrf.mxu0
        %v2466 = vadd.f32 0.0, %v2465
        %v2467 = vpop.f32.mrf.mxu0
        %2468 = vmatprep.mubr.f32.mxu0 %v2198
        %2469 = vmatmul.mubr.f32.gmra.mxu0 %v2197
        %v2470 = vpop.f32.mrf.mxu0
        %v2471 = vadd.f32 0.0, %v2470
        %v2472 = vpop.f32.mrf.mxu0
        %2473 = vmatprep.mubr.f32.mxu0 %v2202
        %2474 = vmatmul.mubr.f32.gmra.mxu0 %v2201
        %v2475 = vpop.f32.mrf.mxu0
        %v2476 = vadd.f32 0.0, %v2475
        %v2477 = vpop.f32.mrf.mxu0
        %2478 = vmatprep.mubr.f32.mxu0 %v2206
        %2479 = vmatmul.mubr.f32.gmra.mxu0 %v2205
        %v2480 = vpop.f32.mrf.mxu0
        %v2481 = vadd.f32 0.0, %v2480
        %v2482 = vpop.f32.mrf.mxu0
        %2483 = vmatprep.mubr.f32.mxu0 %v2210
        %2484 = vmatmul.mubr.f32.gmra.mxu0 %v2209
        %v2485 = vpop.f32.mrf.mxu0
        %v2486 = vadd.f32 0.0, %v2485
        %v2487 = vpop.f32.mrf.mxu0
        %2488 = vmatprep.mubr.f32.mxu0 %v2214
        %2489 = vmatmul.mubr.f32.gmra.mxu0 %v2213
        %v2490 = vpop.f32.mrf.mxu0
        %v2491 = vadd.f32 0.0, %v2490
        %v2492 = vpop.f32.mrf.mxu0
        %2493 = vmatprep.mubr.f32.mxu0 %v2218
        %2494 = vmatmul.mubr.f32.gmra.mxu0 %v2217
        %v2495 = vpop.f32.mrf.mxu0
        %v2496 = vadd.f32 0.0, %v2495
        %v2497 = vpop.f32.mrf.mxu0
        %2498 = vmatprep.mubr.f32.mxu0 %v2222
        %2499 = vmatmul.mubr.f32.gmra.mxu0 %v2221
        %v2500 = vpop.f32.mrf.mxu0
        %v2501 = vadd.f32 0.0, %v2500
        %v2502 = vpop.f32.mrf.mxu0
        %2503 = vmatprep.mubr.f32.mxu0 %v2226
        %2504 = vmatmul.mubr.f32.gmra.mxu0 %v2225
        %v2505 = vpop.f32.mrf.mxu0
        %v2506 = vadd.f32 0.0, %v2505
        %v2507 = vpop.f32.mrf.mxu0
        %2508 = vmatprep.mubr.f32.mxu0 %v2230
        %2509 = vmatmul.mubr.f32.gmra.mxu0 %v2229
        %v2510 = vpop.f32.mrf.mxu0
        %v2511 = vadd.f32 0.0, %v2510
        %v2512 = vpop.f32.mrf.mxu0
        %2513 = vmatprep.mubr.f32.mxu0 %v2234
        %2514 = vmatmul.mubr.f32.gmra.mxu0 %v2233
        %v2515 = vpop.f32.mrf.mxu0
        %v2516 = vadd.f32 0.0, %v2515
        %v2517 = vpop.f32.mrf.mxu0
        %2518 = vmatprep.mubr.f32.mxu0 %v2238
        %2519 = vmatmul.mubr.f32.gmra.mxu0 %v2237
        %v2520 = vpop.f32.mrf.mxu0
        %v2521 = vadd.f32 0.0, %v2520
        %v2522 = vpop.f32.mrf.mxu0
        %2523 = vmatprep.mubr.f32.mxu0 %v2242
        %2524 = vmatmul.mubr.f32.gmra.mxu0 %v2241
        %v2525 = vpop.f32.mrf.mxu0
        %v2526 = vadd.f32 0.0, %v2525
        %v2527 = vpop.f32.mrf.mxu0
        %2528 = vmatprep.mubr.f32.mxu0 %v2246
        %2529 = vmatmul.mubr.f32.gmra.mxu0 %v2245
        %v2530 = vpop.f32.mrf.mxu0
        %v2531 = vadd.f32 0.0, %v2530
        %v2532 = vpop.f32.mrf.mxu0
        %2533 = vmatprep.mubr.f32.mxu0 %v2250
        %2534 = vmatmul.mubr.f32.gmra.mxu0 %v2249
        %v2535 = vpop.f32.mrf.mxu0
        %v2536 = vadd.f32 0.0, %v2535
        %v2537 = vpop.f32.mrf.mxu0
        %2538 = vmatprep.mubr.f32.mxu0 %v2254
        %2539 = vmatmul.mubr.f32.gmra.mxu0 %v2253
        %v2540 = vpop.f32.mrf.mxu0
        %v2541 = vadd.f32 0.0, %v2540
        %v2542 = vpop.f32.mrf.mxu0
        %2543 = vmatprep.mubr.f32.mxu0 %v2258
        %2544 = vmatmul.mubr.f32.gmra.mxu0 %v2257
        %v2545 = vpop.f32.mrf.mxu0
        %v2546 = vadd.f32 0.0, %v2545
        %v2547 = vpop.f32.mrf.mxu0
        %2548 = vmatprep.mubr.f32.mxu0 %v2262
        %2549 = vmatmul.mubr.f32.gmra.mxu0 %v2261
        %v2550 = vpop.f32.mrf.mxu0
        %v2551 = vadd.f32 0.0, %v2550
        %v2552 = vpop.f32.mrf.mxu0
        %2553 = vdwg.mxu0
        %2554 = vmatprep.subr.mxu0 0.0
        %2555 = vmatpush1.msra.mxu0 %v2312
        %2556 = vmatprep.subr.mxu0 0.0
        %2557 = vmatpush1.msra.mxu0 %v2311
        %2558 = vmatprep.subr.mxu0 0.0
        %2559 = vmatpush1.msra.mxu0 %v2310
        %2560 = vmatprep.subr.mxu0 0.0
        %2561 = vmatpush1.msra.mxu0 %v2309
        %2562 = vmatprep.subr.mxu0 0.0
        %2563 = vmatpush1.msra.mxu0 %v2308
        %2564 = vmatprep.subr.mxu0 0.0
        %2565 = vmatpush1.msra.mxu0 %v2307
        %2566 = vmatprep.subr.mxu0 0.0
        %2567 = vmatpush1.msra.mxu0 %v2306
        %2568 = vmatprep.subr.mxu0 0.0
        %2569 = vmatpush1.msra.mxu0 %v2305
        %2570 = vmatprep.subr.mxu0 0.0
        %2571 = vmatpush1.msra.mxu0 %v2304
        %2572 = vmatprep.subr.mxu0 0.0
        %2573 = vmatpush1.msra.mxu0 %v2303
        %2574 = vmatprep.subr.mxu0 0.0
        %2575 = vmatpush1.msra.mxu0 %v2302
        %2576 = vmatprep.subr.mxu0 0.0
        %2577 = vmatpush1.msra.mxu0 %v2301
        %2578 = vmatprep.subr.mxu0 0.0
        %2579 = vmatpush1.msra.mxu0 %v2300
        %2580 = vmatprep.subr.mxu0 0.0
        %2581 = vmatpush1.msra.mxu0 %v2299
        %2582 = vmatprep.subr.mxu0 0.0
        %2583 = vmatpush1.msra.mxu0 %v2298
        %2584 = vmatprep.subr.mxu0 0.0
        %2585 = vmatpush1.msra.mxu0 %v2297
        %2586 = vmatprep.subr.mxu0 0.0
        %2587 = vmatpush2.msra.mxu0 %v2328
        %2588 = vmatprep.subr.mxu0 0.0
        %2589 = vmatpush2.msra.mxu0 %v2327
        %2590 = vmatprep.subr.mxu0 0.0
        %2591 = vmatpush2.msra.mxu0 %v2326
        %2592 = vmatprep.subr.mxu0 0.0
        %2593 = vmatpush2.msra.mxu0 %v2325
        %2594 = vmatprep.subr.mxu0 0.0
        %2595 = vmatpush2.msra.mxu0 %v2324
        %2596 = vmatprep.subr.mxu0 0.0
        %2597 = vmatpush2.msra.mxu0 %v2323
        %2598 = vmatprep.subr.mxu0 0.0
        %2599 = vmatpush2.msra.mxu0 %v2322
        %2600 = vmatprep.subr.mxu0 0.0
        %2601 = vmatpush2.msra.mxu0 %v2321
        %2602 = vmatprep.subr.mxu0 0.0
        %2603 = vmatpush2.msra.mxu0 %v2320
        %2604 = vmatprep.subr.mxu0 0.0
        %2605 = vmatpush2.msra.mxu0 %v2319
        %2606 = vmatprep.subr.mxu0 0.0
        %2607 = vmatpush2.msra.mxu0 %v2318
        %2608 = vmatprep.subr.mxu0 0.0
        %2609 = vmatpush2.msra.mxu0 %v2317
        %2610 = vmatprep.subr.mxu0 0.0
        %2611 = vmatpush2.msra.mxu0 %v2316
        %2612 = vmatprep.subr.mxu0 0.0
        %2613 = vmatpush2.msra.mxu0 %v2315
        %2614 = vmatprep.subr.mxu0 0.0
        %2615 = vmatpush2.msra.mxu0 %v2314
        %2616 = vmatprep.subr.mxu0 0.0
        %2617 = vmatpush2.msra.mxu0 %v2313
        %2618 = vmatprep.mubr.f32.mxu0 %v2140
        %2619 = vmatmul.mubr.f32.gmra.mxu0 %v2139
        %v2620 = vpop.f32.mrf.mxu0
        %v2621 = vadd.f32 %v2396, %v2620
        %v2622 = vpop.f32.mrf.mxu0
        %2623 = vmatprep.mubr.f32.mxu0 %v2144
        %2624 = vmatmul.mubr.f32.gmra.mxu0 %v2143
        %v2625 = vpop.f32.mrf.mxu0
        %v2626 = vadd.f32 %v2401, %v2625
        %v2627 = vpop.f32.mrf.mxu0
        %2628 = vmatprep.mubr.f32.mxu0 %v2148
        %2629 = vmatmul.mubr.f32.gmra.mxu0 %v2147
        %v2630 = vpop.f32.mrf.mxu0
        %v2631 = vadd.f32 %v2406, %v2630
        %v2632 = vpop.f32.mrf.mxu0
        %2633 = vmatprep.mubr.f32.mxu0 %v2152
        %2634 = vmatmul.mubr.f32.gmra.mxu0 %v2151
        %v2635 = vpop.f32.mrf.mxu0
        %v2636 = vadd.f32 %v2411, %v2635
        %v2637 = vpop.f32.mrf.mxu0
        %2638 = vmatprep.mubr.f32.mxu0 %v2156
        %2639 = vmatmul.mubr.f32.gmra.mxu0 %v2155
        %v2640 = vpop.f32.mrf.mxu0
        %v2641 = vadd.f32 %v2416, %v2640
        %v2642 = vpop.f32.mrf.mxu0
        %2643 = vmatprep.mubr.f32.mxu0 %v2160
        %2644 = vmatmul.mubr.f32.gmra.mxu0 %v2159
        %v2645 = vpop.f32.mrf.mxu0
        %v2646 = vadd.f32 %v2421, %v2645
        %v2647 = vpop.f32.mrf.mxu0
        %2648 = vmatprep.mubr.f32.mxu0 %v2164
        %2649 = vmatmul.mubr.f32.gmra.mxu0 %v2163
        %v2650 = vpop.f32.mrf.mxu0
        %v2651 = vadd.f32 %v2426, %v2650
        %v2652 = vpop.f32.mrf.mxu0
        %2653 = vmatprep.mubr.f32.mxu0 %v2168
        %2654 = vmatmul.mubr.f32.gmra.mxu0 %v2167
        %v2655 = vpop.f32.mrf.mxu0
        %v2656 = vadd.f32 %v2431, %v2655
        %v2657 = vpop.f32.mrf.mxu0
        %2658 = vmatprep.mubr.f32.mxu0 %v2172
        %2659 = vmatmul.mubr.f32.gmra.mxu0 %v2171
        %v2660 = vpop.f32.mrf.mxu0
        %v2661 = vadd.f32 %v2436, %v2660
        %v2662 = vpop.f32.mrf.mxu0
        %2663 = vmatprep.mubr.f32.mxu0 %v2176
        %2664 = vmatmul.mubr.f32.gmra.mxu0 %v2175
        %v2665 = vpop.f32.mrf.mxu0
        %v2666 = vadd.f32 %v2441, %v2665
        %v2667 = vpop.f32.mrf.mxu0
        %2668 = vmatprep.mubr.f32.mxu0 %v2180
        %2669 = vmatmul.mubr.f32.gmra.mxu0 %v2179
        %v2670 = vpop.f32.mrf.mxu0
        %v2671 = vadd.f32 %v2446, %v2670
        %v2672 = vpop.f32.mrf.mxu0
        %2673 = vmatprep.mubr.f32.mxu0 %v2184
        %2674 = vmatmul.mubr.f32.gmra.mxu0 %v2183
        %v2675 = vpop.f32.mrf.mxu0
        %v2676 = vadd.f32 %v2451, %v2675
        %v2677 = vpop.f32.mrf.mxu0
        %2678 = vmatprep.mubr.f32.mxu0 %v2188
        %2679 = vmatmul.mubr.f32.gmra.mxu0 %v2187
        %v2680 = vpop.f32.mrf.mxu0
        %v2681 = vadd.f32 %v2456, %v2680
        %v2682 = vpop.f32.mrf.mxu0
        %2683 = vmatprep.mubr.f32.mxu0 %v2192
        %2684 = vmatmul.mubr.f32.gmra.mxu0 %v2191
        %v2685 = vpop.f32.mrf.mxu0
        %v2686 = vadd.f32 %v2461, %v2685
        %v2687 = vpop.f32.mrf.mxu0
        %2688 = vmatprep.mubr.f32.mxu0 %v2196
        %2689 = vmatmul.mubr.f32.gmra.mxu0 %v2195
        %v2690 = vpop.f32.mrf.mxu0
        %v2691 = vadd.f32 %v2466, %v2690
        %v2692 = vpop.f32.mrf.mxu0
        %2693 = vmatprep.mubr.f32.mxu0 %v2200
        %2694 = vmatmul.mubr.f32.gmra.mxu0 %v2199
        %v2695 = vpop.f32.mrf.mxu0
        %v2696 = vadd.f32 %v2471, %v2695
        %v2697 = vpop.f32.mrf.mxu0
        %2698 = vmatprep.mubr.f32.mxu0 %v2204
        %2699 = vmatmul.mubr.f32.gmra.mxu0 %v2203
        %v2700 = vpop.f32.mrf.mxu0
        %v2701 = vadd.f32 %v2476, %v2700
        %v2702 = vpop.f32.mrf.mxu0
        %2703 = vmatprep.mubr.f32.mxu0 %v2208
        %2704 = vmatmul.mubr.f32.gmra.mxu0 %v2207
        %v2705 = vpop.f32.mrf.mxu0
        %v2706 = vadd.f32 %v2481, %v2705
        %v2707 = vpop.f32.mrf.mxu0
        %2708 = vmatprep.mubr.f32.mxu0 %v2212
        %2709 = vmatmul.mubr.f32.gmra.mxu0 %v2211
        %v2710 = vpop.f32.mrf.mxu0
        %v2711 = vadd.f32 %v2486, %v2710
        %v2712 = vpop.f32.mrf.mxu0
        %2713 = vmatprep.mubr.f32.mxu0 %v2216
        %2714 = vmatmul.mubr.f32.gmra.mxu0 %v2215
        %v2715 = vpop.f32.mrf.mxu0
        %v2716 = vadd.f32 %v2491, %v2715
        %v2717 = vpop.f32.mrf.mxu0
        %2718 = vmatprep.mubr.f32.mxu0 %v2220
        %2719 = vmatmul.mubr.f32.gmra.mxu0 %v2219
        %v2720 = vpop.f32.mrf.mxu0
        %v2721 = vadd.f32 %v2496, %v2720
        %v2722 = vpop.f32.mrf.mxu0
        %2723 = vmatprep.mubr.f32.mxu0 %v2224
        %2724 = vmatmul.mubr.f32.gmra.mxu0 %v2223
        %v2725 = vpop.f32.mrf.mxu0
        %v2726 = vadd.f32 %v2501, %v2725
        %v2727 = vpop.f32.mrf.mxu0
        %2728 = vmatprep.mubr.f32.mxu0 %v2228
        %2729 = vmatmul.mubr.f32.gmra.mxu0 %v2227
        %v2730 = vpop.f32.mrf.mxu0
        %v2731 = vadd.f32 %v2506, %v2730
        %v2732 = vpop.f32.mrf.mxu0
        %2733 = vmatprep.mubr.f32.mxu0 %v2232
        %2734 = vmatmul.mubr.f32.gmra.mxu0 %v2231
        %v2735 = vpop.f32.mrf.mxu0
        %v2736 = vadd.f32 %v2511, %v2735
        %v2737 = vpop.f32.mrf.mxu0
        %2738 = vmatprep.mubr.f32.mxu0 %v2236
        %2739 = vmatmul.mubr.f32.gmra.mxu0 %v2235
        %v2740 = vpop.f32.mrf.mxu0
        %v2741 = vadd.f32 %v2516, %v2740
        %v2742 = vpop.f32.mrf.mxu0
        %2743 = vmatprep.mubr.f32.mxu0 %v2240
        %2744 = vmatmul.mubr.f32.gmra.mxu0 %v2239
        %v2745 = vpop.f32.mrf.mxu0
        %v2746 = vadd.f32 %v2521, %v2745
        %v2747 = vpop.f32.mrf.mxu0
        %2748 = vmatprep.mubr.f32.mxu0 %v2244
        %2749 = vmatmul.mubr.f32.gmra.mxu0 %v2243
        %v2750 = vpop.f32.mrf.mxu0
        %v2751 = vadd.f32 %v2526, %v2750
        %v2752 = vpop.f32.mrf.mxu0
        %2753 = vmatprep.mubr.f32.mxu0 %v2248
        %2754 = vmatmul.mubr.f32.gmra.mxu0 %v2247
        %v2755 = vpop.f32.mrf.mxu0
        %v2756 = vadd.f32 %v2531, %v2755
        %v2757 = vpop.f32.mrf.mxu0
        %2758 = vmatprep.mubr.f32.mxu0 %v2252
        %2759 = vmatmul.mubr.f32.gmra.mxu0 %v2251
        %v2760 = vpop.f32.mrf.mxu0
        %v2761 = vadd.f32 %v2536, %v2760
        %v2762 = vpop.f32.mrf.mxu0
        %2763 = vmatprep.mubr.f32.mxu0 %v2256
        %2764 = vmatmul.mubr.f32.gmra.mxu0 %v2255
        %v2765 = vpop.f32.mrf.mxu0
        %v2766 = vadd.f32 %v2541, %v2765
        %v2767 = vpop.f32.mrf.mxu0
        %2768 = vmatprep.mubr.f32.mxu0 %v2260
        %2769 = vmatmul.mubr.f32.gmra.mxu0 %v2259
        %v2770 = vpop.f32.mrf.mxu0
        %v2771 = vadd.f32 %v2546, %v2770
        %v2772 = vpop.f32.mrf.mxu0
        %2773 = vmatprep.mubr.f32.mxu0 %v2264
        %2774 = vmatmul.mubr.f32.gmra.mxu0 %v2263
        %v2775 = vpop.f32.mrf.mxu0
        %v2776 = vadd.f32 %v2551, %v2775
        %v2777 = vpop.f32.mrf.mxu0
        %2778 = vdwg.mxu0
        %2779 = vst [vmem:[%s192] sm:$0xff] %v2621
        %2780 = vst [vmem:[%s192 + $0x8] sm:$0xff] %v2626
        %2781 = vst [vmem:[%s192 + $0x10] sm:$0xff] %v2631
        %2782 = vst [vmem:[%s192 + $0x18] sm:$0xff] %v2636
        %2783 = vst [vmem:[%s192 + $0x20] sm:$0xff] %v2641
        %2784 = vst [vmem:[%s192 + $0x28] sm:$0xff] %v2646
        %2785 = vst [vmem:[%s192 + $0x30] sm:$0xff] %v2651
        %2786 = vst [vmem:[%s192 + $0x38] sm:$0xff] %v2656
        %2787 = vst [vmem:[%s192 + $0x40] sm:$0xff] %v2661
        %2788 = vst [vmem:[%s192 + $0x48] sm:$0xff] %v2666
        %2789 = vst [vmem:[%s192 + $0x50] sm:$0xff] %v2671
        %2790 = vst [vmem:[%s192 + $0x58] sm:$0xff] %v2676
        %2791 = vst [vmem:[%s192 + $0x60] sm:$0xff] %v2681
        %2792 = vst [vmem:[%s192 + $0x68] sm:$0xff] %v2686
        %2793 = vst [vmem:[%s192 + $0x70] sm:$0xff] %v2691
        %2794 = vst [vmem:[%s192 + $0x78] sm:$0xff] %v2696
        %2795 = vst [vmem:[%s192 + $0x80] sm:$0xff] %v2701
        %2796 = vst [vmem:[%s192 + $0x88] sm:$0xff] %v2706
        %2797 = vst [vmem:[%s192 + $0x90] sm:$0xff] %v2711
        %2798 = vst [vmem:[%s192 + $0x98] sm:$0xff] %v2716
        %2799 = vst [vmem:[%s192 + $0xa0] sm:$0xff] %v2721
        %2800 = vst [vmem:[%s192 + $0xa8] sm:$0xff] %v2726
        %2801 = vst [vmem:[%s192 + $0xb0] sm:$0xff] %v2731
        %2802 = vst [vmem:[%s192 + $0xb8] sm:$0xff] %v2736
        %2803 = vst [vmem:[%s192 + $0xc0] sm:$0xff] %v2741
        %2804 = vst [vmem:[%s192 + $0xc8] sm:$0xff] %v2746
        %2805 = vst [vmem:[%s192 + $0xd0] sm:$0xff] %v2751
        %2806 = vst [vmem:[%s192 + $0xd8] sm:$0xff] %v2756
        %2807 = vst [vmem:[%s192 + $0xe0] sm:$0xff] %v2761
        %2808 = vst [vmem:[%s192 + $0xe8] sm:$0xff] %v2766
        %2809 = vst [vmem:[%s192 + $0xf0] sm:$0xff] %v2771
        %2810 = vst [vmem:[%s192 + $0xf8] sm:$0xff] %v2776
        %v2811 = vlaneseq
        %v2812 = vshrl.u32 %v2811, 7
        %v2813 = vsub.s32 0, %v2812
        %v2814 = vrot.slane %v1260, %v2813
        %v2815 = vlaneseq
        %v2816 = vshrl.u32 %v2815, 7
        %v2817 = vsub.s32 1, %v2816
        %v2818 = vrot.slane %v1260, %v2817
        %v2819 = vlaneseq
        %v2820 = vshrl.u32 %v2819, 7
        %v2821 = vsub.s32 2, %v2820
        %v2822 = vrot.slane %v1260, %v2821
        %v2823 = vlaneseq
        %v2824 = vshrl.u32 %v2823, 7
        %v2825 = vsub.s32 3, %v2824
        %v2826 = vrot.slane %v1260, %v2825
        %v2827 = vlaneseq
        %v2828 = vshrl.u32 %v2827, 7
        %v2829 = vsub.s32 4, %v2828
        %v2830 = vrot.slane %v1260, %v2829
        %v2831 = vlaneseq
        %v2832 = vshrl.u32 %v2831, 7
        %v2833 = vsub.s32 5, %v2832
        %v2834 = vrot.slane %v1260, %v2833
        %v2835 = vlaneseq
        %v2836 = vshrl.u32 %v2835, 7
        %v2837 = vsub.s32 6, %v2836
        %v2838 = vrot.slane %v1260, %v2837
        %v2839 = vlaneseq
        %v2840 = vshrl.u32 %v2839, 7
        %v2841 = vsub.s32 7, %v2840
        %v2842 = vrot.slane %v1260, %v2841
        %v2843 = vlaneseq
        %v2844 = vshrl.u32 %v2843, 7
        %v2845 = vsub.s32 0, %v2844
        %v2846 = vrot.slane %v1280, %v2845
        %v2847 = vlaneseq
        %v2848 = vshrl.u32 %v2847, 7
        %v2849 = vsub.s32 1, %v2848
        %v2850 = vrot.slane %v1280, %v2849
        %v2851 = vlaneseq
        %v2852 = vshrl.u32 %v2851, 7
        %v2853 = vsub.s32 2, %v2852
        %v2854 = vrot.slane %v1280, %v2853
        %v2855 = vlaneseq
        %v2856 = vshrl.u32 %v2855, 7
        %v2857 = vsub.s32 3, %v2856
        %v2858 = vrot.slane %v1280, %v2857
        %v2859 = vlaneseq
        %v2860 = vshrl.u32 %v2859, 7
        %v2861 = vsub.s32 4, %v2860
        %v2862 = vrot.slane %v1280, %v2861
        %v2863 = vlaneseq
        %v2864 = vshrl.u32 %v2863, 7
        %v2865 = vsub.s32 5, %v2864
        %v2866 = vrot.slane %v1280, %v2865
        %v2867 = vlaneseq
        %v2868 = vshrl.u32 %v2867, 7
        %v2869 = vsub.s32 6, %v2868
        %v2870 = vrot.slane %v1280, %v2869
        %v2871 = vlaneseq
        %v2872 = vshrl.u32 %v2871, 7
        %v2873 = vsub.s32 7, %v2872
        %v2874 = vrot.slane %v1280, %v2873
        %v2875 = vlaneseq
        %v2876 = vshrl.u32 %v2875, 7
        %v2877 = vsub.s32 0, %v2876
        %v2878 = vrot.slane %v1300, %v2877
        %v2879 = vlaneseq
        %v2880 = vshrl.u32 %v2879, 7
        %v2881 = vsub.s32 1, %v2880
        %v2882 = vrot.slane %v1300, %v2881
        %v2883 = vlaneseq
        %v2884 = vshrl.u32 %v2883, 7
        %v2885 = vsub.s32 2, %v2884
        %v2886 = vrot.slane %v1300, %v2885
        %v2887 = vlaneseq
        %v2888 = vshrl.u32 %v2887, 7
        %v2889 = vsub.s32 3, %v2888
        %v2890 = vrot.slane %v1300, %v2889
        %v2891 = vlaneseq
        %v2892 = vshrl.u32 %v2891, 7
        %v2893 = vsub.s32 4, %v2892
        %v2894 = vrot.slane %v1300, %v2893
        %v2895 = vlaneseq
        %v2896 = vshrl.u32 %v2895, 7
        %v2897 = vsub.s32 5, %v2896
        %v2898 = vrot.slane %v1300, %v2897
        %v2899 = vlaneseq
        %v2900 = vshrl.u32 %v2899, 7
        %v2901 = vsub.s32 6, %v2900
        %v2902 = vrot.slane %v1300, %v2901
        %v2903 = vlaneseq
        %v2904 = vshrl.u32 %v2903, 7
        %v2905 = vsub.s32 7, %v2904
        %v2906 = vrot.slane %v1300, %v2905
        %v2907 = vlaneseq
        %v2908 = vshrl.u32 %v2907, 7
        %v2909 = vsub.s32 0, %v2908
        %v2910 = vrot.slane %v1320, %v2909
        %v2911 = vlaneseq
        %v2912 = vshrl.u32 %v2911, 7
        %v2913 = vsub.s32 1, %v2912
        %v2914 = vrot.slane %v1320, %v2913
        %v2915 = vlaneseq
        %v2916 = vshrl.u32 %v2915, 7
        %v2917 = vsub.s32 2, %v2916
        %v2918 = vrot.slane %v1320, %v2917
        %v2919 = vlaneseq
        %v2920 = vshrl.u32 %v2919, 7
        %v2921 = vsub.s32 3, %v2920
        %v2922 = vrot.slane %v1320, %v2921
        %v2923 = vlaneseq
        %v2924 = vshrl.u32 %v2923, 7
        %v2925 = vsub.s32 4, %v2924
        %v2926 = vrot.slane %v1320, %v2925
        %v2927 = vlaneseq
        %v2928 = vshrl.u32 %v2927, 7
        %v2929 = vsub.s32 5, %v2928
        %v2930 = vrot.slane %v1320, %v2929
        %v2931 = vlaneseq
        %v2932 = vshrl.u32 %v2931, 7
        %v2933 = vsub.s32 6, %v2932
        %v2934 = vrot.slane %v1320, %v2933
        %v2935 = vlaneseq
        %v2936 = vshrl.u32 %v2935, 7
        %v2937 = vsub.s32 7, %v2936
        %v2938 = vrot.slane %v1320, %v2937
        %v2939 = vlaneseq
        %v2940 = vshrl.u32 %v2939, 7
        %v2941 = vsub.s32 0, %v2940
        %v2942 = vrot.slane %v1340, %v2941
        %v2943 = vlaneseq
        %v2944 = vshrl.u32 %v2943, 7
        %v2945 = vsub.s32 1, %v2944
        %v2946 = vrot.slane %v1340, %v2945
        %v2947 = vlaneseq
        %v2948 = vshrl.u32 %v2947, 7
        %v2949 = vsub.s32 2, %v2948
        %v2950 = vrot.slane %v1340, %v2949
        %v2951 = vlaneseq
        %v2952 = vshrl.u32 %v2951, 7
        %v2953 = vsub.s32 3, %v2952
        %v2954 = vrot.slane %v1340, %v2953
        %v2955 = vlaneseq
        %v2956 = vshrl.u32 %v2955, 7
        %v2957 = vsub.s32 4, %v2956
        %v2958 = vrot.slane %v1340, %v2957
        %v2959 = vlaneseq
        %v2960 = vshrl.u32 %v2959, 7
        %v2961 = vsub.s32 5, %v2960
        %v2962 = vrot.slane %v1340, %v2961
        %v2963 = vlaneseq
        %v2964 = vshrl.u32 %v2963, 7
        %v2965 = vsub.s32 6, %v2964
        %v2966 = vrot.slane %v1340, %v2965
        %v2967 = vlaneseq
        %v2968 = vshrl.u32 %v2967, 7
        %v2969 = vsub.s32 7, %v2968
        %v2970 = vrot.slane %v1340, %v2969
        %v2971 = vlaneseq
        %v2972 = vshrl.u32 %v2971, 7
        %v2973 = vsub.s32 0, %v2972
        %v2974 = vrot.slane %v1360, %v2973
        %v2975 = vlaneseq
        %v2976 = vshrl.u32 %v2975, 7
        %v2977 = vsub.s32 1, %v2976
        %v2978 = vrot.slane %v1360, %v2977
        %v2979 = vlaneseq
        %v2980 = vshrl.u32 %v2979, 7
        %v2981 = vsub.s32 2, %v2980
        %v2982 = vrot.slane %v1360, %v2981
        %v2983 = vlaneseq
        %v2984 = vshrl.u32 %v2983, 7
        %v2985 = vsub.s32 3, %v2984
        %v2986 = vrot.slane %v1360, %v2985
        %v2987 = vlaneseq
        %v2988 = vshrl.u32 %v2987, 7
        %v2989 = vsub.s32 4, %v2988
        %v2990 = vrot.slane %v1360, %v2989
        %v2991 = vlaneseq
        %v2992 = vshrl.u32 %v2991, 7
        %v2993 = vsub.s32 5, %v2992
        %v2994 = vrot.slane %v1360, %v2993
        %v2995 = vlaneseq
        %v2996 = vshrl.u32 %v2995, 7
        %v2997 = vsub.s32 6, %v2996
        %v2998 = vrot.slane %v1360, %v2997
        %v2999 = vlaneseq
        %v3000 = vshrl.u32 %v2999, 7
        %v3001 = vsub.s32 7, %v3000
        %v3002 = vrot.slane %v1360, %v3001
        %v3003 = vlaneseq
        %v3004 = vshrl.u32 %v3003, 7
        %v3005 = vsub.s32 0, %v3004
        %v3006 = vrot.slane %v1380, %v3005
        %v3007 = vlaneseq
        %v3008 = vshrl.u32 %v3007, 7
        %v3009 = vsub.s32 1, %v3008
        %v3010 = vrot.slane %v1380, %v3009
        %v3011 = vlaneseq
        %v3012 = vshrl.u32 %v3011, 7
        %v3013 = vsub.s32 2, %v3012
        %v3014 = vrot.slane %v1380, %v3013
        %v3015 = vlaneseq
        %v3016 = vshrl.u32 %v3015, 7
        %v3017 = vsub.s32 3, %v3016
        %v3018 = vrot.slane %v1380, %v3017
        %v3019 = vlaneseq
        %v3020 = vshrl.u32 %v3019, 7
        %v3021 = vsub.s32 4, %v3020
        %v3022 = vrot.slane %v1380, %v3021
        %v3023 = vlaneseq
        %v3024 = vshrl.u32 %v3023, 7
        %v3025 = vsub.s32 5, %v3024
        %v3026 = vrot.slane %v1380, %v3025
        %v3027 = vlaneseq
        %v3028 = vshrl.u32 %v3027, 7
        %v3029 = vsub.s32 6, %v3028
        %v3030 = vrot.slane %v1380, %v3029
        %v3031 = vlaneseq
        %v3032 = vshrl.u32 %v3031, 7
        %v3033 = vsub.s32 7, %v3032
        %v3034 = vrot.slane %v1380, %v3033
        %v3035 = vlaneseq
        %v3036 = vshrl.u32 %v3035, 7
        %v3037 = vsub.s32 0, %v3036
        %v3038 = vrot.slane %v1400, %v3037
        %v3039 = vlaneseq
        %v3040 = vshrl.u32 %v3039, 7
        %v3041 = vsub.s32 1, %v3040
        %v3042 = vrot.slane %v1400, %v3041
        %v3043 = vlaneseq
        %v3044 = vshrl.u32 %v3043, 7
        %v3045 = vsub.s32 2, %v3044
        %v3046 = vrot.slane %v1400, %v3045
        %v3047 = vlaneseq
        %v3048 = vshrl.u32 %v3047, 7
        %v3049 = vsub.s32 3, %v3048
        %v3050 = vrot.slane %v1400, %v3049
        %v3051 = vlaneseq
        %v3052 = vshrl.u32 %v3051, 7
        %v3053 = vsub.s32 4, %v3052
        %v3054 = vrot.slane %v1400, %v3053
        %v3055 = vlaneseq
        %v3056 = vshrl.u32 %v3055, 7
        %v3057 = vsub.s32 5, %v3056
        %v3058 = vrot.slane %v1400, %v3057
        %v3059 = vlaneseq
        %v3060 = vshrl.u32 %v3059, 7
        %v3061 = vsub.s32 6, %v3060
        %v3062 = vrot.slane %v1400, %v3061
        %v3063 = vlaneseq
        %v3064 = vshrl.u32 %v3063, 7
        %v3065 = vsub.s32 7, %v3064
        %v3066 = vrot.slane %v1400, %v3065
        %v3067 = vlaneseq
        %v3068 = vshrl.u32 %v3067, 7
        %v3069 = vsub.s32 0, %v3068
        %v3070 = vrot.slane %v1420, %v3069
        %v3071 = vlaneseq
        %v3072 = vshrl.u32 %v3071, 7
        %v3073 = vsub.s32 1, %v3072
        %v3074 = vrot.slane %v1420, %v3073
        %v3075 = vlaneseq
        %v3076 = vshrl.u32 %v3075, 7
        %v3077 = vsub.s32 2, %v3076
        %v3078 = vrot.slane %v1420, %v3077
        %v3079 = vlaneseq
        %v3080 = vshrl.u32 %v3079, 7
        %v3081 = vsub.s32 3, %v3080
        %v3082 = vrot.slane %v1420, %v3081
        %v3083 = vlaneseq
        %v3084 = vshrl.u32 %v3083, 7
        %v3085 = vsub.s32 4, %v3084
        %v3086 = vrot.slane %v1420, %v3085
        %v3087 = vlaneseq
        %v3088 = vshrl.u32 %v3087, 7
        %v3089 = vsub.s32 5, %v3088
        %v3090 = vrot.slane %v1420, %v3089
        %v3091 = vlaneseq
        %v3092 = vshrl.u32 %v3091, 7
        %v3093 = vsub.s32 6, %v3092
        %v3094 = vrot.slane %v1420, %v3093
        %v3095 = vlaneseq
        %v3096 = vshrl.u32 %v3095, 7
        %v3097 = vsub.s32 7, %v3096
        %v3098 = vrot.slane %v1420, %v3097
        %v3099 = vlaneseq
        %v3100 = vshrl.u32 %v3099, 7
        %v3101 = vsub.s32 0, %v3100
        %v3102 = vrot.slane %v1440, %v3101
        %v3103 = vlaneseq
        %v3104 = vshrl.u32 %v3103, 7
        %v3105 = vsub.s32 1, %v3104
        %v3106 = vrot.slane %v1440, %v3105
        %v3107 = vlaneseq
        %v3108 = vshrl.u32 %v3107, 7
        %v3109 = vsub.s32 2, %v3108
        %v3110 = vrot.slane %v1440, %v3109
        %v3111 = vlaneseq
        %v3112 = vshrl.u32 %v3111, 7
        %v3113 = vsub.s32 3, %v3112
        %v3114 = vrot.slane %v1440, %v3113
        %v3115 = vlaneseq
        %v3116 = vshrl.u32 %v3115, 7
        %v3117 = vsub.s32 4, %v3116
        %v3118 = vrot.slane %v1440, %v3117
        %v3119 = vlaneseq
        %v3120 = vshrl.u32 %v3119, 7
        %v3121 = vsub.s32 5, %v3120
        %v3122 = vrot.slane %v1440, %v3121
        %v3123 = vlaneseq
        %v3124 = vshrl.u32 %v3123, 7
        %v3125 = vsub.s32 6, %v3124
        %v3126 = vrot.slane %v1440, %v3125
        %v3127 = vlaneseq
        %v3128 = vshrl.u32 %v3127, 7
        %v3129 = vsub.s32 7, %v3128
        %v3130 = vrot.slane %v1440, %v3129
        %v3131 = vlaneseq
        %v3132 = vshrl.u32 %v3131, 7
        %v3133 = vsub.s32 0, %v3132
        %v3134 = vrot.slane %v1460, %v3133
        %v3135 = vlaneseq
        %v3136 = vshrl.u32 %v3135, 7
        %v3137 = vsub.s32 1, %v3136
        %v3138 = vrot.slane %v1460, %v3137
        %v3139 = vlaneseq
        %v3140 = vshrl.u32 %v3139, 7
        %v3141 = vsub.s32 2, %v3140
        %v3142 = vrot.slane %v1460, %v3141
        %v3143 = vlaneseq
        %v3144 = vshrl.u32 %v3143, 7
        %v3145 = vsub.s32 3, %v3144
        %v3146 = vrot.slane %v1460, %v3145
        %v3147 = vlaneseq
        %v3148 = vshrl.u32 %v3147, 7
        %v3149 = vsub.s32 4, %v3148
        %v3150 = vrot.slane %v1460, %v3149
        %v3151 = vlaneseq
        %v3152 = vshrl.u32 %v3151, 7
        %v3153 = vsub.s32 5, %v3152
        %v3154 = vrot.slane %v1460, %v3153
        %v3155 = vlaneseq
        %v3156 = vshrl.u32 %v3155, 7
        %v3157 = vsub.s32 6, %v3156
        %v3158 = vrot.slane %v1460, %v3157
        %v3159 = vlaneseq
        %v3160 = vshrl.u32 %v3159, 7
        %v3161 = vsub.s32 7, %v3160
        %v3162 = vrot.slane %v1460, %v3161
        %v3163 = vlaneseq
        %v3164 = vshrl.u32 %v3163, 7
        %v3165 = vsub.s32 0, %v3164
        %v3166 = vrot.slane %v1480, %v3165
        %v3167 = vlaneseq
        %v3168 = vshrl.u32 %v3167, 7
        %v3169 = vsub.s32 1, %v3168
        %v3170 = vrot.slane %v1480, %v3169
        %v3171 = vlaneseq
        %v3172 = vshrl.u32 %v3171, 7
        %v3173 = vsub.s32 2, %v3172
        %v3174 = vrot.slane %v1480, %v3173
        %v3175 = vlaneseq
        %v3176 = vshrl.u32 %v3175, 7
        %v3177 = vsub.s32 3, %v3176
        %v3178 = vrot.slane %v1480, %v3177
        %v3179 = vlaneseq
        %v3180 = vshrl.u32 %v3179, 7
        %v3181 = vsub.s32 4, %v3180
        %v3182 = vrot.slane %v1480, %v3181
        %v3183 = vlaneseq
        %v3184 = vshrl.u32 %v3183, 7
        %v3185 = vsub.s32 5, %v3184
        %v3186 = vrot.slane %v1480, %v3185
        %v3187 = vlaneseq
        %v3188 = vshrl.u32 %v3187, 7
        %v3189 = vsub.s32 6, %v3188
        %v3190 = vrot.slane %v1480, %v3189
        %v3191 = vlaneseq
        %v3192 = vshrl.u32 %v3191, 7
        %v3193 = vsub.s32 7, %v3192
        %v3194 = vrot.slane %v1480, %v3193
        %v3195 = vlaneseq
        %v3196 = vshrl.u32 %v3195, 7
        %v3197 = vsub.s32 0, %v3196
        %v3198 = vrot.slane %v1500, %v3197
        %v3199 = vlaneseq
        %v3200 = vshrl.u32 %v3199, 7
        %v3201 = vsub.s32 1, %v3200
        %v3202 = vrot.slane %v1500, %v3201
        %v3203 = vlaneseq
        %v3204 = vshrl.u32 %v3203, 7
        %v3205 = vsub.s32 2, %v3204
        %v3206 = vrot.slane %v1500, %v3205
        %v3207 = vlaneseq
        %v3208 = vshrl.u32 %v3207, 7
        %v3209 = vsub.s32 3, %v3208
        %v3210 = vrot.slane %v1500, %v3209
        %v3211 = vlaneseq
        %v3212 = vshrl.u32 %v3211, 7
        %v3213 = vsub.s32 4, %v3212
        %v3214 = vrot.slane %v1500, %v3213
        %v3215 = vlaneseq
        %v3216 = vshrl.u32 %v3215, 7
        %v3217 = vsub.s32 5, %v3216
        %v3218 = vrot.slane %v1500, %v3217
        %v3219 = vlaneseq
        %v3220 = vshrl.u32 %v3219, 7
        %v3221 = vsub.s32 6, %v3220
        %v3222 = vrot.slane %v1500, %v3221
        %v3223 = vlaneseq
        %v3224 = vshrl.u32 %v3223, 7
        %v3225 = vsub.s32 7, %v3224
        %v3226 = vrot.slane %v1500, %v3225
        %v3227 = vlaneseq
        %v3228 = vshrl.u32 %v3227, 7
        %v3229 = vsub.s32 0, %v3228
        %v3230 = vrot.slane %v1520, %v3229
        %v3231 = vlaneseq
        %v3232 = vshrl.u32 %v3231, 7
        %v3233 = vsub.s32 1, %v3232
        %v3234 = vrot.slane %v1520, %v3233
        %v3235 = vlaneseq
        %v3236 = vshrl.u32 %v3235, 7
        %v3237 = vsub.s32 2, %v3236
        %v3238 = vrot.slane %v1520, %v3237
        %v3239 = vlaneseq
        %v3240 = vshrl.u32 %v3239, 7
        %v3241 = vsub.s32 3, %v3240
        %v3242 = vrot.slane %v1520, %v3241
        %v3243 = vlaneseq
        %v3244 = vshrl.u32 %v3243, 7
        %v3245 = vsub.s32 4, %v3244
        %v3246 = vrot.slane %v1520, %v3245
        %v3247 = vlaneseq
        %v3248 = vshrl.u32 %v3247, 7
        %v3249 = vsub.s32 5, %v3248
        %v3250 = vrot.slane %v1520, %v3249
        %v3251 = vlaneseq
        %v3252 = vshrl.u32 %v3251, 7
        %v3253 = vsub.s32 6, %v3252
        %v3254 = vrot.slane %v1520, %v3253
        %v3255 = vlaneseq
        %v3256 = vshrl.u32 %v3255, 7
        %v3257 = vsub.s32 7, %v3256
        %v3258 = vrot.slane %v1520, %v3257
        %v3259 = vlaneseq
        %v3260 = vshrl.u32 %v3259, 7
        %v3261 = vsub.s32 0, %v3260
        %v3262 = vrot.slane %v1540, %v3261
        %v3263 = vlaneseq
        %v3264 = vshrl.u32 %v3263, 7
        %v3265 = vsub.s32 1, %v3264
        %v3266 = vrot.slane %v1540, %v3265
        %v3267 = vlaneseq
        %v3268 = vshrl.u32 %v3267, 7
        %v3269 = vsub.s32 2, %v3268
        %v3270 = vrot.slane %v1540, %v3269
        %v3271 = vlaneseq
        %v3272 = vshrl.u32 %v3271, 7
        %v3273 = vsub.s32 3, %v3272
        %v3274 = vrot.slane %v1540, %v3273
        %v3275 = vlaneseq
        %v3276 = vshrl.u32 %v3275, 7
        %v3277 = vsub.s32 4, %v3276
        %v3278 = vrot.slane %v1540, %v3277
        %v3279 = vlaneseq
        %v3280 = vshrl.u32 %v3279, 7
        %v3281 = vsub.s32 5, %v3280
        %v3282 = vrot.slane %v1540, %v3281
        %v3283 = vlaneseq
        %v3284 = vshrl.u32 %v3283, 7
        %v3285 = vsub.s32 6, %v3284
        %v3286 = vrot.slane %v1540, %v3285
        %v3287 = vlaneseq
        %v3288 = vshrl.u32 %v3287, 7
        %v3289 = vsub.s32 7, %v3288
        %v3290 = vrot.slane %v1540, %v3289
        %v3291 = vlaneseq
        %v3292 = vshrl.u32 %v3291, 7
        %v3293 = vsub.s32 0, %v3292
        %v3294 = vrot.slane %v1560, %v3293
        %v3295 = vlaneseq
        %v3296 = vshrl.u32 %v3295, 7
        %v3297 = vsub.s32 1, %v3296
        %v3298 = vrot.slane %v1560, %v3297
        %v3299 = vlaneseq
        %v3300 = vshrl.u32 %v3299, 7
        %v3301 = vsub.s32 2, %v3300
        %v3302 = vrot.slane %v1560, %v3301
        %v3303 = vlaneseq
        %v3304 = vshrl.u32 %v3303, 7
        %v3305 = vsub.s32 3, %v3304
        %v3306 = vrot.slane %v1560, %v3305
        %v3307 = vlaneseq
        %v3308 = vshrl.u32 %v3307, 7
        %v3309 = vsub.s32 4, %v3308
        %v3310 = vrot.slane %v1560, %v3309
        %v3311 = vlaneseq
        %v3312 = vshrl.u32 %v3311, 7
        %v3313 = vsub.s32 5, %v3312
        %v3314 = vrot.slane %v1560, %v3313
        %v3315 = vlaneseq
        %v3316 = vshrl.u32 %v3315, 7
        %v3317 = vsub.s32 6, %v3316
        %v3318 = vrot.slane %v1560, %v3317
        %v3319 = vlaneseq
        %v3320 = vshrl.u32 %v3319, 7
        %v3321 = vsub.s32 7, %v3320
        %v3322 = vrot.slane %v1560, %v3321
        %v3323 = vlaneseq
        %v3324 = vshrl.u32 %v3323, 7
        %v3325 = vsub.s32 0, %v3324
        %v3326 = vrot.slane %v1580, %v3325
        %v3327 = vlaneseq
        %v3328 = vshrl.u32 %v3327, 7
        %v3329 = vsub.s32 1, %v3328
        %v3330 = vrot.slane %v1580, %v3329
        %v3331 = vlaneseq
        %v3332 = vshrl.u32 %v3331, 7
        %v3333 = vsub.s32 2, %v3332
        %v3334 = vrot.slane %v1580, %v3333
        %v3335 = vlaneseq
        %v3336 = vshrl.u32 %v3335, 7
        %v3337 = vsub.s32 3, %v3336
        %v3338 = vrot.slane %v1580, %v3337
        %v3339 = vlaneseq
        %v3340 = vshrl.u32 %v3339, 7
        %v3341 = vsub.s32 4, %v3340
        %v3342 = vrot.slane %v1580, %v3341
        %v3343 = vlaneseq
        %v3344 = vshrl.u32 %v3343, 7
        %v3345 = vsub.s32 5, %v3344
        %v3346 = vrot.slane %v1580, %v3345
        %v3347 = vlaneseq
        %v3348 = vshrl.u32 %v3347, 7
        %v3349 = vsub.s32 6, %v3348
        %v3350 = vrot.slane %v1580, %v3349
        %v3351 = vlaneseq
        %v3352 = vshrl.u32 %v3351, 7
        %v3353 = vsub.s32 7, %v3352
        %v3354 = vrot.slane %v1580, %v3353
        %v3355 = vlaneseq
        %v3356 = vshrl.u32 %v3355, 7
        %v3357 = vsub.s32 0, %v3356
        %v3358 = vrot.slane %v1600, %v3357
        %v3359 = vlaneseq
        %v3360 = vshrl.u32 %v3359, 7
        %v3361 = vsub.s32 1, %v3360
        %v3362 = vrot.slane %v1600, %v3361
        %v3363 = vlaneseq
        %v3364 = vshrl.u32 %v3363, 7
        %v3365 = vsub.s32 2, %v3364
        %v3366 = vrot.slane %v1600, %v3365
        %v3367 = vlaneseq
        %v3368 = vshrl.u32 %v3367, 7
        %v3369 = vsub.s32 3, %v3368
        %v3370 = vrot.slane %v1600, %v3369
        %v3371 = vlaneseq
        %v3372 = vshrl.u32 %v3371, 7
        %v3373 = vsub.s32 4, %v3372
        %v3374 = vrot.slane %v1600, %v3373
        %v3375 = vlaneseq
        %v3376 = vshrl.u32 %v3375, 7
        %v3377 = vsub.s32 5, %v3376
        %v3378 = vrot.slane %v1600, %v3377
        %v3379 = vlaneseq
        %v3380 = vshrl.u32 %v3379, 7
        %v3381 = vsub.s32 6, %v3380
        %v3382 = vrot.slane %v1600, %v3381
        %v3383 = vlaneseq
        %v3384 = vshrl.u32 %v3383, 7
        %v3385 = vsub.s32 7, %v3384
        %v3386 = vrot.slane %v1600, %v3385
        %v3387 = vlaneseq
        %v3388 = vshrl.u32 %v3387, 7
        %v3389 = vsub.s32 0, %v3388
        %v3390 = vrot.slane %v1620, %v3389
        %v3391 = vlaneseq
        %v3392 = vshrl.u32 %v3391, 7
        %v3393 = vsub.s32 1, %v3392
        %v3394 = vrot.slane %v1620, %v3393
        %v3395 = vlaneseq
        %v3396 = vshrl.u32 %v3395, 7
        %v3397 = vsub.s32 2, %v3396
        %v3398 = vrot.slane %v1620, %v3397
        %v3399 = vlaneseq
        %v3400 = vshrl.u32 %v3399, 7
        %v3401 = vsub.s32 3, %v3400
        %v3402 = vrot.slane %v1620, %v3401
        %v3403 = vlaneseq
        %v3404 = vshrl.u32 %v3403, 7
        %v3405 = vsub.s32 4, %v3404
        %v3406 = vrot.slane %v1620, %v3405
        %v3407 = vlaneseq
        %v3408 = vshrl.u32 %v3407, 7
        %v3409 = vsub.s32 5, %v3408
        %v3410 = vrot.slane %v1620, %v3409
        %v3411 = vlaneseq
        %v3412 = vshrl.u32 %v3411, 7
        %v3413 = vsub.s32 6, %v3412
        %v3414 = vrot.slane %v1620, %v3413
        %v3415 = vlaneseq
        %v3416 = vshrl.u32 %v3415, 7
        %v3417 = vsub.s32 7, %v3416
        %v3418 = vrot.slane %v1620, %v3417
        %v3419 = vlaneseq
        %v3420 = vshrl.u32 %v3419, 7
        %v3421 = vsub.s32 0, %v3420
        %v3422 = vrot.slane %v1640, %v3421
        %v3423 = vlaneseq
        %v3424 = vshrl.u32 %v3423, 7
        %v3425 = vsub.s32 1, %v3424
        %v3426 = vrot.slane %v1640, %v3425
        %v3427 = vlaneseq
        %v3428 = vshrl.u32 %v3427, 7
        %v3429 = vsub.s32 2, %v3428
        %v3430 = vrot.slane %v1640, %v3429
        %v3431 = vlaneseq
        %v3432 = vshrl.u32 %v3431, 7
        %v3433 = vsub.s32 3, %v3432
        %v3434 = vrot.slane %v1640, %v3433
        %v3435 = vlaneseq
        %v3436 = vshrl.u32 %v3435, 7
        %v3437 = vsub.s32 4, %v3436
        %v3438 = vrot.slane %v1640, %v3437
        %v3439 = vlaneseq
        %v3440 = vshrl.u32 %v3439, 7
        %v3441 = vsub.s32 5, %v3440
        %v3442 = vrot.slane %v1640, %v3441
        %v3443 = vlaneseq
        %v3444 = vshrl.u32 %v3443, 7
        %v3445 = vsub.s32 6, %v3444
        %v3446 = vrot.slane %v1640, %v3445
        %v3447 = vlaneseq
        %v3448 = vshrl.u32 %v3447, 7
        %v3449 = vsub.s32 7, %v3448
        %v3450 = vrot.slane %v1640, %v3449
        %v3451 = vlaneseq
        %v3452 = vshrl.u32 %v3451, 7
        %v3453 = vsub.s32 0, %v3452
        %v3454 = vrot.slane %v1660, %v3453
        %v3455 = vlaneseq
        %v3456 = vshrl.u32 %v3455, 7
        %v3457 = vsub.s32 1, %v3456
        %v3458 = vrot.slane %v1660, %v3457
        %v3459 = vlaneseq
        %v3460 = vshrl.u32 %v3459, 7
        %v3461 = vsub.s32 2, %v3460
        %v3462 = vrot.slane %v1660, %v3461
        %v3463 = vlaneseq
        %v3464 = vshrl.u32 %v3463, 7
        %v3465 = vsub.s32 3, %v3464
        %v3466 = vrot.slane %v1660, %v3465
        %v3467 = vlaneseq
        %v3468 = vshrl.u32 %v3467, 7
        %v3469 = vsub.s32 4, %v3468
        %v3470 = vrot.slane %v1660, %v3469
        %v3471 = vlaneseq
        %v3472 = vshrl.u32 %v3471, 7
        %v3473 = vsub.s32 5, %v3472
        %v3474 = vrot.slane %v1660, %v3473
        %v3475 = vlaneseq
        %v3476 = vshrl.u32 %v3475, 7
        %v3477 = vsub.s32 6, %v3476
        %v3478 = vrot.slane %v1660, %v3477
        %v3479 = vlaneseq
        %v3480 = vshrl.u32 %v3479, 7
        %v3481 = vsub.s32 7, %v3480
        %v3482 = vrot.slane %v1660, %v3481
        %v3483 = vlaneseq
        %v3484 = vshrl.u32 %v3483, 7
        %v3485 = vsub.s32 0, %v3484
        %v3486 = vrot.slane %v1680, %v3485
        %v3487 = vlaneseq
        %v3488 = vshrl.u32 %v3487, 7
        %v3489 = vsub.s32 1, %v3488
        %v3490 = vrot.slane %v1680, %v3489
        %v3491 = vlaneseq
        %v3492 = vshrl.u32 %v3491, 7
        %v3493 = vsub.s32 2, %v3492
        %v3494 = vrot.slane %v1680, %v3493
        %v3495 = vlaneseq
        %v3496 = vshrl.u32 %v3495, 7
        %v3497 = vsub.s32 3, %v3496
        %v3498 = vrot.slane %v1680, %v3497
        %v3499 = vlaneseq
        %v3500 = vshrl.u32 %v3499, 7
        %v3501 = vsub.s32 4, %v3500
        %v3502 = vrot.slane %v1680, %v3501
        %v3503 = vlaneseq
        %v3504 = vshrl.u32 %v3503, 7
        %v3505 = vsub.s32 5, %v3504
        %v3506 = vrot.slane %v1680, %v3505
        %v3507 = vlaneseq
        %v3508 = vshrl.u32 %v3507, 7
        %v3509 = vsub.s32 6, %v3508
        %v3510 = vrot.slane %v1680, %v3509
        %v3511 = vlaneseq
        %v3512 = vshrl.u32 %v3511, 7
        %v3513 = vsub.s32 7, %v3512
        %v3514 = vrot.slane %v1680, %v3513
        %v3515 = vlaneseq
        %v3516 = vshrl.u32 %v3515, 7
        %v3517 = vsub.s32 0, %v3516
        %v3518 = vrot.slane %v1700, %v3517
        %v3519 = vlaneseq
        %v3520 = vshrl.u32 %v3519, 7
        %v3521 = vsub.s32 1, %v3520
        %v3522 = vrot.slane %v1700, %v3521
        %v3523 = vlaneseq
        %v3524 = vshrl.u32 %v3523, 7
        %v3525 = vsub.s32 2, %v3524
        %v3526 = vrot.slane %v1700, %v3525
        %v3527 = vlaneseq
        %v3528 = vshrl.u32 %v3527, 7
        %v3529 = vsub.s32 3, %v3528
        %v3530 = vrot.slane %v1700, %v3529
        %v3531 = vlaneseq
        %v3532 = vshrl.u32 %v3531, 7
        %v3533 = vsub.s32 4, %v3532
        %v3534 = vrot.slane %v1700, %v3533
        %v3535 = vlaneseq
        %v3536 = vshrl.u32 %v3535, 7
        %v3537 = vsub.s32 5, %v3536
        %v3538 = vrot.slane %v1700, %v3537
        %v3539 = vlaneseq
        %v3540 = vshrl.u32 %v3539, 7
        %v3541 = vsub.s32 6, %v3540
        %v3542 = vrot.slane %v1700, %v3541
        %v3543 = vlaneseq
        %v3544 = vshrl.u32 %v3543, 7
        %v3545 = vsub.s32 7, %v3544
        %v3546 = vrot.slane %v1700, %v3545
        %v3547 = vlaneseq
        %v3548 = vshrl.u32 %v3547, 7
        %v3549 = vsub.s32 0, %v3548
        %v3550 = vrot.slane %v1720, %v3549
        %v3551 = vlaneseq
        %v3552 = vshrl.u32 %v3551, 7
        %v3553 = vsub.s32 1, %v3552
        %v3554 = vrot.slane %v1720, %v3553
        %v3555 = vlaneseq
        %v3556 = vshrl.u32 %v3555, 7
        %v3557 = vsub.s32 2, %v3556
        %v3558 = vrot.slane %v1720, %v3557
        %v3559 = vlaneseq
        %v3560 = vshrl.u32 %v3559, 7
        %v3561 = vsub.s32 3, %v3560
        %v3562 = vrot.slane %v1720, %v3561
        %v3563 = vlaneseq
        %v3564 = vshrl.u32 %v3563, 7
        %v3565 = vsub.s32 4, %v3564
        %v3566 = vrot.slane %v1720, %v3565
        %v3567 = vlaneseq
        %v3568 = vshrl.u32 %v3567, 7
        %v3569 = vsub.s32 5, %v3568
        %v3570 = vrot.slane %v1720, %v3569
        %v3571 = vlaneseq
        %v3572 = vshrl.u32 %v3571, 7
        %v3573 = vsub.s32 6, %v3572
        %v3574 = vrot.slane %v1720, %v3573
        %v3575 = vlaneseq
        %v3576 = vshrl.u32 %v3575, 7
        %v3577 = vsub.s32 7, %v3576
        %v3578 = vrot.slane %v1720, %v3577
        %v3579 = vlaneseq
        %v3580 = vshrl.u32 %v3579, 7
        %v3581 = vsub.s32 0, %v3580
        %v3582 = vrot.slane %v1740, %v3581
        %v3583 = vlaneseq
        %v3584 = vshrl.u32 %v3583, 7
        %v3585 = vsub.s32 1, %v3584
        %v3586 = vrot.slane %v1740, %v3585
        %v3587 = vlaneseq
        %v3588 = vshrl.u32 %v3587, 7
        %v3589 = vsub.s32 2, %v3588
        %v3590 = vrot.slane %v1740, %v3589
        %v3591 = vlaneseq
        %v3592 = vshrl.u32 %v3591, 7
        %v3593 = vsub.s32 3, %v3592
        %v3594 = vrot.slane %v1740, %v3593
        %v3595 = vlaneseq
        %v3596 = vshrl.u32 %v3595, 7
        %v3597 = vsub.s32 4, %v3596
        %v3598 = vrot.slane %v1740, %v3597
        %v3599 = vlaneseq
        %v3600 = vshrl.u32 %v3599, 7
        %v3601 = vsub.s32 5, %v3600
        %v3602 = vrot.slane %v1740, %v3601
        %v3603 = vlaneseq
        %v3604 = vshrl.u32 %v3603, 7
        %v3605 = vsub.s32 6, %v3604
        %v3606 = vrot.slane %v1740, %v3605
        %v3607 = vlaneseq
        %v3608 = vshrl.u32 %v3607, 7
        %v3609 = vsub.s32 7, %v3608
        %v3610 = vrot.slane %v1740, %v3609
        %v3611 = vlaneseq
        %v3612 = vshrl.u32 %v3611, 7
        %v3613 = vsub.s32 0, %v3612
        %v3614 = vrot.slane %v1760, %v3613
        %v3615 = vlaneseq
        %v3616 = vshrl.u32 %v3615, 7
        %v3617 = vsub.s32 1, %v3616
        %v3618 = vrot.slane %v1760, %v3617
        %v3619 = vlaneseq
        %v3620 = vshrl.u32 %v3619, 7
        %v3621 = vsub.s32 2, %v3620
        %v3622 = vrot.slane %v1760, %v3621
        %v3623 = vlaneseq
        %v3624 = vshrl.u32 %v3623, 7
        %v3625 = vsub.s32 3, %v3624
        %v3626 = vrot.slane %v1760, %v3625
        %v3627 = vlaneseq
        %v3628 = vshrl.u32 %v3627, 7
        %v3629 = vsub.s32 4, %v3628
        %v3630 = vrot.slane %v1760, %v3629
        %v3631 = vlaneseq
        %v3632 = vshrl.u32 %v3631, 7
        %v3633 = vsub.s32 5, %v3632
        %v3634 = vrot.slane %v1760, %v3633
        %v3635 = vlaneseq
        %v3636 = vshrl.u32 %v3635, 7
        %v3637 = vsub.s32 6, %v3636
        %v3638 = vrot.slane %v1760, %v3637
        %v3639 = vlaneseq
        %v3640 = vshrl.u32 %v3639, 7
        %v3641 = vsub.s32 7, %v3640
        %v3642 = vrot.slane %v1760, %v3641
        %v3643 = vlaneseq
        %v3644 = vshrl.u32 %v3643, 7
        %v3645 = vsub.s32 0, %v3644
        %v3646 = vrot.slane %v1780, %v3645
        %v3647 = vlaneseq
        %v3648 = vshrl.u32 %v3647, 7
        %v3649 = vsub.s32 1, %v3648
        %v3650 = vrot.slane %v1780, %v3649
        %v3651 = vlaneseq
        %v3652 = vshrl.u32 %v3651, 7
        %v3653 = vsub.s32 2, %v3652
        %v3654 = vrot.slane %v1780, %v3653
        %v3655 = vlaneseq
        %v3656 = vshrl.u32 %v3655, 7
        %v3657 = vsub.s32 3, %v3656
        %v3658 = vrot.slane %v1780, %v3657
        %v3659 = vlaneseq
        %v3660 = vshrl.u32 %v3659, 7
        %v3661 = vsub.s32 4, %v3660
        %v3662 = vrot.slane %v1780, %v3661
        %v3663 = vlaneseq
        %v3664 = vshrl.u32 %v3663, 7
        %v3665 = vsub.s32 5, %v3664
        %v3666 = vrot.slane %v1780, %v3665
        %v3667 = vlaneseq
        %v3668 = vshrl.u32 %v3667, 7
        %v3669 = vsub.s32 6, %v3668
        %v3670 = vrot.slane %v1780, %v3669
        %v3671 = vlaneseq
        %v3672 = vshrl.u32 %v3671, 7
        %v3673 = vsub.s32 7, %v3672
        %v3674 = vrot.slane %v1780, %v3673
        %v3675 = vlaneseq
        %v3676 = vshrl.u32 %v3675, 7
        %v3677 = vsub.s32 0, %v3676
        %v3678 = vrot.slane %v1800, %v3677
        %v3679 = vlaneseq
        %v3680 = vshrl.u32 %v3679, 7
        %v3681 = vsub.s32 1, %v3680
        %v3682 = vrot.slane %v1800, %v3681
        %v3683 = vlaneseq
        %v3684 = vshrl.u32 %v3683, 7
        %v3685 = vsub.s32 2, %v3684
        %v3686 = vrot.slane %v1800, %v3685
        %v3687 = vlaneseq
        %v3688 = vshrl.u32 %v3687, 7
        %v3689 = vsub.s32 3, %v3688
        %v3690 = vrot.slane %v1800, %v3689
        %v3691 = vlaneseq
        %v3692 = vshrl.u32 %v3691, 7
        %v3693 = vsub.s32 4, %v3692
        %v3694 = vrot.slane %v1800, %v3693
        %v3695 = vlaneseq
        %v3696 = vshrl.u32 %v3695, 7
        %v3697 = vsub.s32 5, %v3696
        %v3698 = vrot.slane %v1800, %v3697
        %v3699 = vlaneseq
        %v3700 = vshrl.u32 %v3699, 7
        %v3701 = vsub.s32 6, %v3700
        %v3702 = vrot.slane %v1800, %v3701
        %v3703 = vlaneseq
        %v3704 = vshrl.u32 %v3703, 7
        %v3705 = vsub.s32 7, %v3704
        %v3706 = vrot.slane %v1800, %v3705
        %v3707 = vlaneseq
        %v3708 = vshrl.u32 %v3707, 7
        %v3709 = vsub.s32 0, %v3708
        %v3710 = vrot.slane %v1820, %v3709
        %v3711 = vlaneseq
        %v3712 = vshrl.u32 %v3711, 7
        %v3713 = vsub.s32 1, %v3712
        %v3714 = vrot.slane %v1820, %v3713
        %v3715 = vlaneseq
        %v3716 = vshrl.u32 %v3715, 7
        %v3717 = vsub.s32 2, %v3716
        %v3718 = vrot.slane %v1820, %v3717
        %v3719 = vlaneseq
        %v3720 = vshrl.u32 %v3719, 7
        %v3721 = vsub.s32 3, %v3720
        %v3722 = vrot.slane %v1820, %v3721
        %v3723 = vlaneseq
        %v3724 = vshrl.u32 %v3723, 7
        %v3725 = vsub.s32 4, %v3724
        %v3726 = vrot.slane %v1820, %v3725
        %v3727 = vlaneseq
        %v3728 = vshrl.u32 %v3727, 7
        %v3729 = vsub.s32 5, %v3728
        %v3730 = vrot.slane %v1820, %v3729
        %v3731 = vlaneseq
        %v3732 = vshrl.u32 %v3731, 7
        %v3733 = vsub.s32 6, %v3732
        %v3734 = vrot.slane %v1820, %v3733
        %v3735 = vlaneseq
        %v3736 = vshrl.u32 %v3735, 7
        %v3737 = vsub.s32 7, %v3736
        %v3738 = vrot.slane %v1820, %v3737
        %v3739 = vlaneseq
        %v3740 = vshrl.u32 %v3739, 7
        %v3741 = vsub.s32 0, %v3740
        %v3742 = vrot.slane %v1840, %v3741
        %v3743 = vlaneseq
        %v3744 = vshrl.u32 %v3743, 7
        %v3745 = vsub.s32 1, %v3744
        %v3746 = vrot.slane %v1840, %v3745
        %v3747 = vlaneseq
        %v3748 = vshrl.u32 %v3747, 7
        %v3749 = vsub.s32 2, %v3748
        %v3750 = vrot.slane %v1840, %v3749
        %v3751 = vlaneseq
        %v3752 = vshrl.u32 %v3751, 7
        %v3753 = vsub.s32 3, %v3752
        %v3754 = vrot.slane %v1840, %v3753
        %v3755 = vlaneseq
        %v3756 = vshrl.u32 %v3755, 7
        %v3757 = vsub.s32 4, %v3756
        %v3758 = vrot.slane %v1840, %v3757
        %v3759 = vlaneseq
        %v3760 = vshrl.u32 %v3759, 7
        %v3761 = vsub.s32 5, %v3760
        %v3762 = vrot.slane %v1840, %v3761
        %v3763 = vlaneseq
        %v3764 = vshrl.u32 %v3763, 7
        %v3765 = vsub.s32 6, %v3764
        %v3766 = vrot.slane %v1840, %v3765
        %v3767 = vlaneseq
        %v3768 = vshrl.u32 %v3767, 7
        %v3769 = vsub.s32 7, %v3768
        %v3770 = vrot.slane %v1840, %v3769
        %v3771 = vlaneseq
        %v3772 = vshrl.u32 %v3771, 7
        %v3773 = vsub.s32 0, %v3772
        %v3774 = vrot.slane %v1860, %v3773
        %v3775 = vlaneseq
        %v3776 = vshrl.u32 %v3775, 7
        %v3777 = vsub.s32 1, %v3776
        %v3778 = vrot.slane %v1860, %v3777
        %v3779 = vlaneseq
        %v3780 = vshrl.u32 %v3779, 7
        %v3781 = vsub.s32 2, %v3780
        %v3782 = vrot.slane %v1860, %v3781
        %v3783 = vlaneseq
        %v3784 = vshrl.u32 %v3783, 7
        %v3785 = vsub.s32 3, %v3784
        %v3786 = vrot.slane %v1860, %v3785
        %v3787 = vlaneseq
        %v3788 = vshrl.u32 %v3787, 7
        %v3789 = vsub.s32 4, %v3788
        %v3790 = vrot.slane %v1860, %v3789
        %v3791 = vlaneseq
        %v3792 = vshrl.u32 %v3791, 7
        %v3793 = vsub.s32 5, %v3792
        %v3794 = vrot.slane %v1860, %v3793
        %v3795 = vlaneseq
        %v3796 = vshrl.u32 %v3795, 7
        %v3797 = vsub.s32 6, %v3796
        %v3798 = vrot.slane %v1860, %v3797
        %v3799 = vlaneseq
        %v3800 = vshrl.u32 %v3799, 7
        %v3801 = vsub.s32 7, %v3800
        %v3802 = vrot.slane %v1860, %v3801
        %v3803 = vlaneseq
        %v3804 = vshrl.u32 %v3803, 7
        %v3805 = vsub.s32 0, %v3804
        %v3806 = vrot.slane %v1880, %v3805
        %v3807 = vlaneseq
        %v3808 = vshrl.u32 %v3807, 7
        %v3809 = vsub.s32 1, %v3808
        %v3810 = vrot.slane %v1880, %v3809
        %v3811 = vlaneseq
        %v3812 = vshrl.u32 %v3811, 7
        %v3813 = vsub.s32 2, %v3812
        %v3814 = vrot.slane %v1880, %v3813
        %v3815 = vlaneseq
        %v3816 = vshrl.u32 %v3815, 7
        %v3817 = vsub.s32 3, %v3816
        %v3818 = vrot.slane %v1880, %v3817
        %v3819 = vlaneseq
        %v3820 = vshrl.u32 %v3819, 7
        %v3821 = vsub.s32 4, %v3820
        %v3822 = vrot.slane %v1880, %v3821
        %v3823 = vlaneseq
        %v3824 = vshrl.u32 %v3823, 7
        %v3825 = vsub.s32 5, %v3824
        %v3826 = vrot.slane %v1880, %v3825
        %v3827 = vlaneseq
        %v3828 = vshrl.u32 %v3827, 7
        %v3829 = vsub.s32 6, %v3828
        %v3830 = vrot.slane %v1880, %v3829
        %v3831 = vlaneseq
        %v3832 = vshrl.u32 %v3831, 7
        %v3833 = vsub.s32 7, %v3832
        %v3834 = vrot.slane %v1880, %v3833
        %v3835 = vcombine.low %v2814, %v2818
        %v3836 = vcombine.low %v2822, %v2826
        %v3837 = vcombine.low %v2830, %v2834
        %v3838 = vcombine.low %v2838, %v2842
        %v3840 = vunpack.c.l.s4 1966171168
        %v3841 = vunpack.c.0.s8 %v3840
        %v3842 = vlaneseq
        %v3843 = vshrl.u32 %v3842, 7
        %v3844 = vsub.s32 %v3841, %v3843
        %v3845 = vrot.slane %v3835, %v3844
        %v3847 = vunpack.c.l.s4 1966171168
        %v3848 = vunpack.c.0.s8 %v3847
        %v3849 = vlaneseq
        %v3850 = vshrl.u32 %v3849, 7
        %v3851 = vsub.s32 %v3848, %v3850
        %v3852 = vrot.slane %v3836, %v3851
        %v3854 = vunpack.c.l.s4 1966171168
        %v3855 = vunpack.c.0.s8 %v3854
        %v3856 = vlaneseq
        %v3857 = vshrl.u32 %v3856, 7
        %v3858 = vsub.s32 %v3855, %v3857
        %v3859 = vrot.slane %v3837, %v3858
        %v3861 = vunpack.c.l.s4 1966171168
        %v3862 = vunpack.c.0.s8 %v3861
        %v3863 = vlaneseq
        %v3864 = vshrl.u32 %v3863, 7
        %v3865 = vsub.s32 %v3862, %v3864
        %v3866 = vrot.slane %v3838, %v3865
        %v3867 = vcombine.low %v3845, %v3852
        %v3868 = vcombine.low %v3859, %v3866
        %v3870 = vunpack.c.l.s4 1966171168
        %v3871 = vunpack.c.0.s8 %v3870
        %v3872 = vlaneseq
        %v3873 = vshrl.u32 %v3872, 7
        %v3874 = vsub.s32 %v3871, %v3873
        %v3875 = vrot.slane %v3867, %v3874
        %v3877 = vunpack.c.l.s4 1966171168
        %v3878 = vunpack.c.0.s8 %v3877
        %v3879 = vlaneseq
        %v3880 = vshrl.u32 %v3879, 7
        %v3881 = vsub.s32 %v3878, %v3880
        %v3882 = vrot.slane %v3868, %v3881
        %v3883 = vcombine.low %v3875, %v3882
        %v3884 = vcombine.low %v2846, %v2850
        %v3885 = vcombine.low %v2854, %v2858
        %v3886 = vcombine.low %v2862, %v2866
        %v3887 = vcombine.low %v2870, %v2874
        %v3889 = vunpack.c.l.s4 1966171168
        %v3890 = vunpack.c.0.s8 %v3889
        %v3891 = vlaneseq
        %v3892 = vshrl.u32 %v3891, 7
        %v3893 = vsub.s32 %v3890, %v3892
        %v3894 = vrot.slane %v3884, %v3893
        %v3896 = vunpack.c.l.s4 1966171168
        %v3897 = vunpack.c.0.s8 %v3896
        %v3898 = vlaneseq
        %v3899 = vshrl.u32 %v3898, 7
        %v3900 = vsub.s32 %v3897, %v3899
        %v3901 = vrot.slane %v3885, %v3900
        %v3903 = vunpack.c.l.s4 1966171168
        %v3904 = vunpack.c.0.s8 %v3903
        %v3905 = vlaneseq
        %v3906 = vshrl.u32 %v3905, 7
        %v3907 = vsub.s32 %v3904, %v3906
        %v3908 = vrot.slane %v3886, %v3907
        %v3910 = vunpack.c.l.s4 1966171168
        %v3911 = vunpack.c.0.s8 %v3910
        %v3912 = vlaneseq
        %v3913 = vshrl.u32 %v3912, 7
        %v3914 = vsub.s32 %v3911, %v3913
        %v3915 = vrot.slane %v3887, %v3914
        %v3916 = vcombine.low %v3894, %v3901
        %v3917 = vcombine.low %v3908, %v3915
        %v3919 = vunpack.c.l.s4 1966171168
        %v3920 = vunpack.c.0.s8 %v3919
        %v3921 = vlaneseq
        %v3922 = vshrl.u32 %v3921, 7
        %v3923 = vsub.s32 %v3920, %v3922
        %v3924 = vrot.slane %v3916, %v3923
        %v3926 = vunpack.c.l.s4 1966171168
        %v3927 = vunpack.c.0.s8 %v3926
        %v3928 = vlaneseq
        %v3929 = vshrl.u32 %v3928, 7
        %v3930 = vsub.s32 %v3927, %v3929
        %v3931 = vrot.slane %v3917, %v3930
        %v3932 = vcombine.low %v3924, %v3931
        %v3933 = vcombine.low %v2878, %v2882
        %v3934 = vcombine.low %v2886, %v2890
        %v3935 = vcombine.low %v2894, %v2898
        %v3936 = vcombine.low %v2902, %v2906
        %v3938 = vunpack.c.l.s4 1966171168
        %v3939 = vunpack.c.0.s8 %v3938
        %v3940 = vlaneseq
        %v3941 = vshrl.u32 %v3940, 7
        %v3942 = vsub.s32 %v3939, %v3941
        %v3943 = vrot.slane %v3933, %v3942
        %v3945 = vunpack.c.l.s4 1966171168
        %v3946 = vunpack.c.0.s8 %v3945
        %v3947 = vlaneseq
        %v3948 = vshrl.u32 %v3947, 7
        %v3949 = vsub.s32 %v3946, %v3948
        %v3950 = vrot.slane %v3934, %v3949
        %v3952 = vunpack.c.l.s4 1966171168
        %v3953 = vunpack.c.0.s8 %v3952
        %v3954 = vlaneseq
        %v3955 = vshrl.u32 %v3954, 7
        %v3956 = vsub.s32 %v3953, %v3955
        %v3957 = vrot.slane %v3935, %v3956
        %v3959 = vunpack.c.l.s4 1966171168
        %v3960 = vunpack.c.0.s8 %v3959
        %v3961 = vlaneseq
        %v3962 = vshrl.u32 %v3961, 7
        %v3963 = vsub.s32 %v3960, %v3962
        %v3964 = vrot.slane %v3936, %v3963
        %v3965 = vcombine.low %v3943, %v3950
        %v3966 = vcombine.low %v3957, %v3964
        %v3968 = vunpack.c.l.s4 1966171168
        %v3969 = vunpack.c.0.s8 %v3968
        %v3970 = vlaneseq
        %v3971 = vshrl.u32 %v3970, 7
        %v3972 = vsub.s32 %v3969, %v3971
        %v3973 = vrot.slane %v3965, %v3972
        %v3975 = vunpack.c.l.s4 1966171168
        %v3976 = vunpack.c.0.s8 %v3975
        %v3977 = vlaneseq
        %v3978 = vshrl.u32 %v3977, 7
        %v3979 = vsub.s32 %v3976, %v3978
        %v3980 = vrot.slane %v3966, %v3979
        %v3981 = vcombine.low %v3973, %v3980
        %v3982 = vcombine.low %v2910, %v2914
        %v3983 = vcombine.low %v2918, %v2922
        %v3984 = vcombine.low %v2926, %v2930
        %v3985 = vcombine.low %v2934, %v2938
        %v3987 = vunpack.c.l.s4 1966171168
        %v3988 = vunpack.c.0.s8 %v3987
        %v3989 = vlaneseq
        %v3990 = vshrl.u32 %v3989, 7
        %v3991 = vsub.s32 %v3988, %v3990
        %v3992 = vrot.slane %v3982, %v3991
        %v3994 = vunpack.c.l.s4 1966171168
        %v3995 = vunpack.c.0.s8 %v3994
        %v3996 = vlaneseq
        %v3997 = vshrl.u32 %v3996, 7
        %v3998 = vsub.s32 %v3995, %v3997
        %v3999 = vrot.slane %v3983, %v3998
        %v4001 = vunpack.c.l.s4 1966171168
        %v4002 = vunpack.c.0.s8 %v4001
        %v4003 = vlaneseq
        %v4004 = vshrl.u32 %v4003, 7
        %v4005 = vsub.s32 %v4002, %v4004
        %v4006 = vrot.slane %v3984, %v4005
        %v4008 = vunpack.c.l.s4 1966171168
        %v4009 = vunpack.c.0.s8 %v4008
        %v4010 = vlaneseq
        %v4011 = vshrl.u32 %v4010, 7
        %v4012 = vsub.s32 %v4009, %v4011
        %v4013 = vrot.slane %v3985, %v4012
        %v4014 = vcombine.low %v3992, %v3999
        %v4015 = vcombine.low %v4006, %v4013
        %v4017 = vunpack.c.l.s4 1966171168
        %v4018 = vunpack.c.0.s8 %v4017
        %v4019 = vlaneseq
        %v4020 = vshrl.u32 %v4019, 7
        %v4021 = vsub.s32 %v4018, %v4020
        %v4022 = vrot.slane %v4014, %v4021
        %v4024 = vunpack.c.l.s4 1966171168
        %v4025 = vunpack.c.0.s8 %v4024
        %v4026 = vlaneseq
        %v4027 = vshrl.u32 %v4026, 7
        %v4028 = vsub.s32 %v4025, %v4027
        %v4029 = vrot.slane %v4015, %v4028
        %v4030 = vcombine.low %v4022, %v4029
        %v4031 = vcombine.low %v2942, %v2946
        %v4032 = vcombine.low %v2950, %v2954
        %v4033 = vcombine.low %v2958, %v2962
        %v4034 = vcombine.low %v2966, %v2970
        %v4036 = vunpack.c.l.s4 1966171168
        %v4037 = vunpack.c.0.s8 %v4036
        %v4038 = vlaneseq
        %v4039 = vshrl.u32 %v4038, 7
        %v4040 = vsub.s32 %v4037, %v4039
        %v4041 = vrot.slane %v4031, %v4040
        %v4043 = vunpack.c.l.s4 1966171168
        %v4044 = vunpack.c.0.s8 %v4043
        %v4045 = vlaneseq
        %v4046 = vshrl.u32 %v4045, 7
        %v4047 = vsub.s32 %v4044, %v4046
        %v4048 = vrot.slane %v4032, %v4047
        %v4050 = vunpack.c.l.s4 1966171168
        %v4051 = vunpack.c.0.s8 %v4050
        %v4052 = vlaneseq
        %v4053 = vshrl.u32 %v4052, 7
        %v4054 = vsub.s32 %v4051, %v4053
        %v4055 = vrot.slane %v4033, %v4054
        %v4057 = vunpack.c.l.s4 1966171168
        %v4058 = vunpack.c.0.s8 %v4057
        %v4059 = vlaneseq
        %v4060 = vshrl.u32 %v4059, 7
        %v4061 = vsub.s32 %v4058, %v4060
        %v4062 = vrot.slane %v4034, %v4061
        %v4063 = vcombine.low %v4041, %v4048
        %v4064 = vcombine.low %v4055, %v4062
        %v4066 = vunpack.c.l.s4 1966171168
        %v4067 = vunpack.c.0.s8 %v4066
        %v4068 = vlaneseq
        %v4069 = vshrl.u32 %v4068, 7
        %v4070 = vsub.s32 %v4067, %v4069
        %v4071 = vrot.slane %v4063, %v4070
        %v4073 = vunpack.c.l.s4 1966171168
        %v4074 = vunpack.c.0.s8 %v4073
        %v4075 = vlaneseq
        %v4076 = vshrl.u32 %v4075, 7
        %v4077 = vsub.s32 %v4074, %v4076
        %v4078 = vrot.slane %v4064, %v4077
        %v4079 = vcombine.low %v4071, %v4078
        %v4080 = vcombine.low %v2974, %v2978
        %v4081 = vcombine.low %v2982, %v2986
        %v4082 = vcombine.low %v2990, %v2994
        %v4083 = vcombine.low %v2998, %v3002
        %v4085 = vunpack.c.l.s4 1966171168
        %v4086 = vunpack.c.0.s8 %v4085
        %v4087 = vlaneseq
        %v4088 = vshrl.u32 %v4087, 7
        %v4089 = vsub.s32 %v4086, %v4088
        %v4090 = vrot.slane %v4080, %v4089
        %v4092 = vunpack.c.l.s4 1966171168
        %v4093 = vunpack.c.0.s8 %v4092
        %v4094 = vlaneseq
        %v4095 = vshrl.u32 %v4094, 7
        %v4096 = vsub.s32 %v4093, %v4095
        %v4097 = vrot.slane %v4081, %v4096
        %v4099 = vunpack.c.l.s4 1966171168
        %v4100 = vunpack.c.0.s8 %v4099
        %v4101 = vlaneseq
        %v4102 = vshrl.u32 %v4101, 7
        %v4103 = vsub.s32 %v4100, %v4102
        %v4104 = vrot.slane %v4082, %v4103
        %v4106 = vunpack.c.l.s4 1966171168
        %v4107 = vunpack.c.0.s8 %v4106
        %v4108 = vlaneseq
        %v4109 = vshrl.u32 %v4108, 7
        %v4110 = vsub.s32 %v4107, %v4109
        %v4111 = vrot.slane %v4083, %v4110
        %v4112 = vcombine.low %v4090, %v4097
        %v4113 = vcombine.low %v4104, %v4111
        %v4115 = vunpack.c.l.s4 1966171168
        %v4116 = vunpack.c.0.s8 %v4115
        %v4117 = vlaneseq
        %v4118 = vshrl.u32 %v4117, 7
        %v4119 = vsub.s32 %v4116, %v4118
        %v4120 = vrot.slane %v4112, %v4119
        %v4122 = vunpack.c.l.s4 1966171168
        %v4123 = vunpack.c.0.s8 %v4122
        %v4124 = vlaneseq
        %v4125 = vshrl.u32 %v4124, 7
        %v4126 = vsub.s32 %v4123, %v4125
        %v4127 = vrot.slane %v4113, %v4126
        %v4128 = vcombine.low %v4120, %v4127
        %v4129 = vcombine.low %v3006, %v3010
        %v4130 = vcombine.low %v3014, %v3018
        %v4131 = vcombine.low %v3022, %v3026
        %v4132 = vcombine.low %v3030, %v3034
        %v4134 = vunpack.c.l.s4 1966171168
        %v4135 = vunpack.c.0.s8 %v4134
        %v4136 = vlaneseq
        %v4137 = vshrl.u32 %v4136, 7
        %v4138 = vsub.s32 %v4135, %v4137
        %v4139 = vrot.slane %v4129, %v4138
        %v4141 = vunpack.c.l.s4 1966171168
        %v4142 = vunpack.c.0.s8 %v4141
        %v4143 = vlaneseq
        %v4144 = vshrl.u32 %v4143, 7
        %v4145 = vsub.s32 %v4142, %v4144
        %v4146 = vrot.slane %v4130, %v4145
        %v4148 = vunpack.c.l.s4 1966171168
        %v4149 = vunpack.c.0.s8 %v4148
        %v4150 = vlaneseq
        %v4151 = vshrl.u32 %v4150, 7
        %v4152 = vsub.s32 %v4149, %v4151
        %v4153 = vrot.slane %v4131, %v4152
        %v4155 = vunpack.c.l.s4 1966171168
        %v4156 = vunpack.c.0.s8 %v4155
        %v4157 = vlaneseq
        %v4158 = vshrl.u32 %v4157, 7
        %v4159 = vsub.s32 %v4156, %v4158
        %v4160 = vrot.slane %v4132, %v4159
        %v4161 = vcombine.low %v4139, %v4146
        %v4162 = vcombine.low %v4153, %v4160
        %v4164 = vunpack.c.l.s4 1966171168
        %v4165 = vunpack.c.0.s8 %v4164
        %v4166 = vlaneseq
        %v4167 = vshrl.u32 %v4166, 7
        %v4168 = vsub.s32 %v4165, %v4167
        %v4169 = vrot.slane %v4161, %v4168
        %v4171 = vunpack.c.l.s4 1966171168
        %v4172 = vunpack.c.0.s8 %v4171
        %v4173 = vlaneseq
        %v4174 = vshrl.u32 %v4173, 7
        %v4175 = vsub.s32 %v4172, %v4174
        %v4176 = vrot.slane %v4162, %v4175
        %v4177 = vcombine.low %v4169, %v4176
        %v4178 = vcombine.low %v3038, %v3042
        %v4179 = vcombine.low %v3046, %v3050
        %v4180 = vcombine.low %v3054, %v3058
        %v4181 = vcombine.low %v3062, %v3066
        %v4183 = vunpack.c.l.s4 1966171168
        %v4184 = vunpack.c.0.s8 %v4183
        %v4185 = vlaneseq
        %v4186 = vshrl.u32 %v4185, 7
        %v4187 = vsub.s32 %v4184, %v4186
        %v4188 = vrot.slane %v4178, %v4187
        %v4190 = vunpack.c.l.s4 1966171168
        %v4191 = vunpack.c.0.s8 %v4190
        %v4192 = vlaneseq
        %v4193 = vshrl.u32 %v4192, 7
        %v4194 = vsub.s32 %v4191, %v4193
        %v4195 = vrot.slane %v4179, %v4194
        %v4197 = vunpack.c.l.s4 1966171168
        %v4198 = vunpack.c.0.s8 %v4197
        %v4199 = vlaneseq
        %v4200 = vshrl.u32 %v4199, 7
        %v4201 = vsub.s32 %v4198, %v4200
        %v4202 = vrot.slane %v4180, %v4201
        %v4204 = vunpack.c.l.s4 1966171168
        %v4205 = vunpack.c.0.s8 %v4204
        %v4206 = vlaneseq
        %v4207 = vshrl.u32 %v4206, 7
        %v4208 = vsub.s32 %v4205, %v4207
        %v4209 = vrot.slane %v4181, %v4208
        %v4210 = vcombine.low %v4188, %v4195
        %v4211 = vcombine.low %v4202, %v4209
        %v4213 = vunpack.c.l.s4 1966171168
        %v4214 = vunpack.c.0.s8 %v4213
        %v4215 = vlaneseq
        %v4216 = vshrl.u32 %v4215, 7
        %v4217 = vsub.s32 %v4214, %v4216
        %v4218 = vrot.slane %v4210, %v4217
        %v4220 = vunpack.c.l.s4 1966171168
        %v4221 = vunpack.c.0.s8 %v4220
        %v4222 = vlaneseq
        %v4223 = vshrl.u32 %v4222, 7
        %v4224 = vsub.s32 %v4221, %v4223
        %v4225 = vrot.slane %v4211, %v4224
        %v4226 = vcombine.low %v4218, %v4225
        %v4227 = vcombine.low %v3070, %v3074
        %v4228 = vcombine.low %v3078, %v3082
        %v4229 = vcombine.low %v3086, %v3090
        %v4230 = vcombine.low %v3094, %v3098
        %v4232 = vunpack.c.l.s4 1966171168
        %v4233 = vunpack.c.0.s8 %v4232
        %v4234 = vlaneseq
        %v4235 = vshrl.u32 %v4234, 7
        %v4236 = vsub.s32 %v4233, %v4235
        %v4237 = vrot.slane %v4227, %v4236
        %v4239 = vunpack.c.l.s4 1966171168
        %v4240 = vunpack.c.0.s8 %v4239
        %v4241 = vlaneseq
        %v4242 = vshrl.u32 %v4241, 7
        %v4243 = vsub.s32 %v4240, %v4242
        %v4244 = vrot.slane %v4228, %v4243
        %v4246 = vunpack.c.l.s4 1966171168
        %v4247 = vunpack.c.0.s8 %v4246
        %v4248 = vlaneseq
        %v4249 = vshrl.u32 %v4248, 7
        %v4250 = vsub.s32 %v4247, %v4249
        %v4251 = vrot.slane %v4229, %v4250
        %v4253 = vunpack.c.l.s4 1966171168
        %v4254 = vunpack.c.0.s8 %v4253
        %v4255 = vlaneseq
        %v4256 = vshrl.u32 %v4255, 7
        %v4257 = vsub.s32 %v4254, %v4256
        %v4258 = vrot.slane %v4230, %v4257
        %v4259 = vcombine.low %v4237, %v4244
        %v4260 = vcombine.low %v4251, %v4258
        %v4262 = vunpack.c.l.s4 1966171168
        %v4263 = vunpack.c.0.s8 %v4262
        %v4264 = vlaneseq
        %v4265 = vshrl.u32 %v4264, 7
        %v4266 = vsub.s32 %v4263, %v4265
        %v4267 = vrot.slane %v4259, %v4266
        %v4269 = vunpack.c.l.s4 1966171168
        %v4270 = vunpack.c.0.s8 %v4269
        %v4271 = vlaneseq
        %v4272 = vshrl.u32 %v4271, 7
        %v4273 = vsub.s32 %v4270, %v4272
        %v4274 = vrot.slane %v4260, %v4273
        %v4275 = vcombine.low %v4267, %v4274
        %v4276 = vcombine.low %v3102, %v3106
        %v4277 = vcombine.low %v3110, %v3114
        %v4278 = vcombine.low %v3118, %v3122
        %v4279 = vcombine.low %v3126, %v3130
        %v4281 = vunpack.c.l.s4 1966171168
        %v4282 = vunpack.c.0.s8 %v4281
        %v4283 = vlaneseq
        %v4284 = vshrl.u32 %v4283, 7
        %v4285 = vsub.s32 %v4282, %v4284
        %v4286 = vrot.slane %v4276, %v4285
        %v4288 = vunpack.c.l.s4 1966171168
        %v4289 = vunpack.c.0.s8 %v4288
        %v4290 = vlaneseq
        %v4291 = vshrl.u32 %v4290, 7
        %v4292 = vsub.s32 %v4289, %v4291
        %v4293 = vrot.slane %v4277, %v4292
        %v4295 = vunpack.c.l.s4 1966171168
        %v4296 = vunpack.c.0.s8 %v4295
        %v4297 = vlaneseq
        %v4298 = vshrl.u32 %v4297, 7
        %v4299 = vsub.s32 %v4296, %v4298
        %v4300 = vrot.slane %v4278, %v4299
        %v4302 = vunpack.c.l.s4 1966171168
        %v4303 = vunpack.c.0.s8 %v4302
        %v4304 = vlaneseq
        %v4305 = vshrl.u32 %v4304, 7
        %v4306 = vsub.s32 %v4303, %v4305
        %v4307 = vrot.slane %v4279, %v4306
        %v4308 = vcombine.low %v4286, %v4293
        %v4309 = vcombine.low %v4300, %v4307
        %v4311 = vunpack.c.l.s4 1966171168
        %v4312 = vunpack.c.0.s8 %v4311
        %v4313 = vlaneseq
        %v4314 = vshrl.u32 %v4313, 7
        %v4315 = vsub.s32 %v4312, %v4314
        %v4316 = vrot.slane %v4308, %v4315
        %v4318 = vunpack.c.l.s4 1966171168
        %v4319 = vunpack.c.0.s8 %v4318
        %v4320 = vlaneseq
        %v4321 = vshrl.u32 %v4320, 7
        %v4322 = vsub.s32 %v4319, %v4321
        %v4323 = vrot.slane %v4309, %v4322
        %v4324 = vcombine.low %v4316, %v4323
        %v4325 = vcombine.low %v3134, %v3138
        %v4326 = vcombine.low %v3142, %v3146
        %v4327 = vcombine.low %v3150, %v3154
        %v4328 = vcombine.low %v3158, %v3162
        %v4330 = vunpack.c.l.s4 1966171168
        %v4331 = vunpack.c.0.s8 %v4330
        %v4332 = vlaneseq
        %v4333 = vshrl.u32 %v4332, 7
        %v4334 = vsub.s32 %v4331, %v4333
        %v4335 = vrot.slane %v4325, %v4334
        %v4337 = vunpack.c.l.s4 1966171168
        %v4338 = vunpack.c.0.s8 %v4337
        %v4339 = vlaneseq
        %v4340 = vshrl.u32 %v4339, 7
        %v4341 = vsub.s32 %v4338, %v4340
        %v4342 = vrot.slane %v4326, %v4341
        %v4344 = vunpack.c.l.s4 1966171168
        %v4345 = vunpack.c.0.s8 %v4344
        %v4346 = vlaneseq
        %v4347 = vshrl.u32 %v4346, 7
        %v4348 = vsub.s32 %v4345, %v4347
        %v4349 = vrot.slane %v4327, %v4348
        %v4351 = vunpack.c.l.s4 1966171168
        %v4352 = vunpack.c.0.s8 %v4351
        %v4353 = vlaneseq
        %v4354 = vshrl.u32 %v4353, 7
        %v4355 = vsub.s32 %v4352, %v4354
        %v4356 = vrot.slane %v4328, %v4355
        %v4357 = vcombine.low %v4335, %v4342
        %v4358 = vcombine.low %v4349, %v4356
        %v4360 = vunpack.c.l.s4 1966171168
        %v4361 = vunpack.c.0.s8 %v4360
        %v4362 = vlaneseq
        %v4363 = vshrl.u32 %v4362, 7
        %v4364 = vsub.s32 %v4361, %v4363
        %v4365 = vrot.slane %v4357, %v4364
        %v4367 = vunpack.c.l.s4 1966171168
        %v4368 = vunpack.c.0.s8 %v4367
        %v4369 = vlaneseq
        %v4370 = vshrl.u32 %v4369, 7
        %v4371 = vsub.s32 %v4368, %v4370
        %v4372 = vrot.slane %v4358, %v4371
        %v4373 = vcombine.low %v4365, %v4372
        %v4374 = vcombine.low %v3166, %v3170
        %v4375 = vcombine.low %v3174, %v3178
        %v4376 = vcombine.low %v3182, %v3186
        %v4377 = vcombine.low %v3190, %v3194
        %v4379 = vunpack.c.l.s4 1966171168
        %v4380 = vunpack.c.0.s8 %v4379
        %v4381 = vlaneseq
        %v4382 = vshrl.u32 %v4381, 7
        %v4383 = vsub.s32 %v4380, %v4382
        %v4384 = vrot.slane %v4374, %v4383
        %v4386 = vunpack.c.l.s4 1966171168
        %v4387 = vunpack.c.0.s8 %v4386
        %v4388 = vlaneseq
        %v4389 = vshrl.u32 %v4388, 7
        %v4390 = vsub.s32 %v4387, %v4389
        %v4391 = vrot.slane %v4375, %v4390
        %v4393 = vunpack.c.l.s4 1966171168
        %v4394 = vunpack.c.0.s8 %v4393
        %v4395 = vlaneseq
        %v4396 = vshrl.u32 %v4395, 7
        %v4397 = vsub.s32 %v4394, %v4396
        %v4398 = vrot.slane %v4376, %v4397
        %v4400 = vunpack.c.l.s4 1966171168
        %v4401 = vunpack.c.0.s8 %v4400
        %v4402 = vlaneseq
        %v4403 = vshrl.u32 %v4402, 7
        %v4404 = vsub.s32 %v4401, %v4403
        %v4405 = vrot.slane %v4377, %v4404
        %v4406 = vcombine.low %v4384, %v4391
        %v4407 = vcombine.low %v4398, %v4405
        %v4409 = vunpack.c.l.s4 1966171168
        %v4410 = vunpack.c.0.s8 %v4409
        %v4411 = vlaneseq
        %v4412 = vshrl.u32 %v4411, 7
        %v4413 = vsub.s32 %v4410, %v4412
        %v4414 = vrot.slane %v4406, %v4413
        %v4416 = vunpack.c.l.s4 1966171168
        %v4417 = vunpack.c.0.s8 %v4416
        %v4418 = vlaneseq
        %v4419 = vshrl.u32 %v4418, 7
        %v4420 = vsub.s32 %v4417, %v4419
        %v4421 = vrot.slane %v4407, %v4420
        %v4422 = vcombine.low %v4414, %v4421
        %v4423 = vcombine.low %v3198, %v3202
        %v4424 = vcombine.low %v3206, %v3210
        %v4425 = vcombine.low %v3214, %v3218
        %v4426 = vcombine.low %v3222, %v3226
        %v4428 = vunpack.c.l.s4 1966171168
        %v4429 = vunpack.c.0.s8 %v4428
        %v4430 = vlaneseq
        %v4431 = vshrl.u32 %v4430, 7
        %v4432 = vsub.s32 %v4429, %v4431
        %v4433 = vrot.slane %v4423, %v4432
        %v4435 = vunpack.c.l.s4 1966171168
        %v4436 = vunpack.c.0.s8 %v4435
        %v4437 = vlaneseq
        %v4438 = vshrl.u32 %v4437, 7
        %v4439 = vsub.s32 %v4436, %v4438
        %v4440 = vrot.slane %v4424, %v4439
        %v4442 = vunpack.c.l.s4 1966171168
        %v4443 = vunpack.c.0.s8 %v4442
        %v4444 = vlaneseq
        %v4445 = vshrl.u32 %v4444, 7
        %v4446 = vsub.s32 %v4443, %v4445
        %v4447 = vrot.slane %v4425, %v4446
        %v4449 = vunpack.c.l.s4 1966171168
        %v4450 = vunpack.c.0.s8 %v4449
        %v4451 = vlaneseq
        %v4452 = vshrl.u32 %v4451, 7
        %v4453 = vsub.s32 %v4450, %v4452
        %v4454 = vrot.slane %v4426, %v4453
        %v4455 = vcombine.low %v4433, %v4440
        %v4456 = vcombine.low %v4447, %v4454
        %v4458 = vunpack.c.l.s4 1966171168
        %v4459 = vunpack.c.0.s8 %v4458
        %v4460 = vlaneseq
        %v4461 = vshrl.u32 %v4460, 7
        %v4462 = vsub.s32 %v4459, %v4461
        %v4463 = vrot.slane %v4455, %v4462
        %v4465 = vunpack.c.l.s4 1966171168
        %v4466 = vunpack.c.0.s8 %v4465
        %v4467 = vlaneseq
        %v4468 = vshrl.u32 %v4467, 7
        %v4469 = vsub.s32 %v4466, %v4468
        %v4470 = vrot.slane %v4456, %v4469
        %v4471 = vcombine.low %v4463, %v4470
        %v4472 = vcombine.low %v3230, %v3234
        %v4473 = vcombine.low %v3238, %v3242
        %v4474 = vcombine.low %v3246, %v3250
        %v4475 = vcombine.low %v3254, %v3258
        %v4477 = vunpack.c.l.s4 1966171168
        %v4478 = vunpack.c.0.s8 %v4477
        %v4479 = vlaneseq
        %v4480 = vshrl.u32 %v4479, 7
        %v4481 = vsub.s32 %v4478, %v4480
        %v4482 = vrot.slane %v4472, %v4481
        %v4484 = vunpack.c.l.s4 1966171168
        %v4485 = vunpack.c.0.s8 %v4484
        %v4486 = vlaneseq
        %v4487 = vshrl.u32 %v4486, 7
        %v4488 = vsub.s32 %v4485, %v4487
        %v4489 = vrot.slane %v4473, %v4488
        %v4491 = vunpack.c.l.s4 1966171168
        %v4492 = vunpack.c.0.s8 %v4491
        %v4493 = vlaneseq
        %v4494 = vshrl.u32 %v4493, 7
        %v4495 = vsub.s32 %v4492, %v4494
        %v4496 = vrot.slane %v4474, %v4495
        %v4498 = vunpack.c.l.s4 1966171168
        %v4499 = vunpack.c.0.s8 %v4498
        %v4500 = vlaneseq
        %v4501 = vshrl.u32 %v4500, 7
        %v4502 = vsub.s32 %v4499, %v4501
        %v4503 = vrot.slane %v4475, %v4502
        %v4504 = vcombine.low %v4482, %v4489
        %v4505 = vcombine.low %v4496, %v4503
        %v4507 = vunpack.c.l.s4 1966171168
        %v4508 = vunpack.c.0.s8 %v4507
        %v4509 = vlaneseq
        %v4510 = vshrl.u32 %v4509, 7
        %v4511 = vsub.s32 %v4508, %v4510
        %v4512 = vrot.slane %v4504, %v4511
        %v4514 = vunpack.c.l.s4 1966171168
        %v4515 = vunpack.c.0.s8 %v4514
        %v4516 = vlaneseq
        %v4517 = vshrl.u32 %v4516, 7
        %v4518 = vsub.s32 %v4515, %v4517
        %v4519 = vrot.slane %v4505, %v4518
        %v4520 = vcombine.low %v4512, %v4519
        %v4521 = vcombine.low %v3262, %v3266
        %v4522 = vcombine.low %v3270, %v3274
        %v4523 = vcombine.low %v3278, %v3282
        %v4524 = vcombine.low %v3286, %v3290
        %v4526 = vunpack.c.l.s4 1966171168
        %v4527 = vunpack.c.0.s8 %v4526
        %v4528 = vlaneseq
        %v4529 = vshrl.u32 %v4528, 7
        %v4530 = vsub.s32 %v4527, %v4529
        %v4531 = vrot.slane %v4521, %v4530
        %v4533 = vunpack.c.l.s4 1966171168
        %v4534 = vunpack.c.0.s8 %v4533
        %v4535 = vlaneseq
        %v4536 = vshrl.u32 %v4535, 7
        %v4537 = vsub.s32 %v4534, %v4536
        %v4538 = vrot.slane %v4522, %v4537
        %v4540 = vunpack.c.l.s4 1966171168
        %v4541 = vunpack.c.0.s8 %v4540
        %v4542 = vlaneseq
        %v4543 = vshrl.u32 %v4542, 7
        %v4544 = vsub.s32 %v4541, %v4543
        %v4545 = vrot.slane %v4523, %v4544
        %v4547 = vunpack.c.l.s4 1966171168
        %v4548 = vunpack.c.0.s8 %v4547
        %v4549 = vlaneseq
        %v4550 = vshrl.u32 %v4549, 7
        %v4551 = vsub.s32 %v4548, %v4550
        %v4552 = vrot.slane %v4524, %v4551
        %v4553 = vcombine.low %v4531, %v4538
        %v4554 = vcombine.low %v4545, %v4552
        %v4556 = vunpack.c.l.s4 1966171168
        %v4557 = vunpack.c.0.s8 %v4556
        %v4558 = vlaneseq
        %v4559 = vshrl.u32 %v4558, 7
        %v4560 = vsub.s32 %v4557, %v4559
        %v4561 = vrot.slane %v4553, %v4560
        %v4563 = vunpack.c.l.s4 1966171168
        %v4564 = vunpack.c.0.s8 %v4563
        %v4565 = vlaneseq
        %v4566 = vshrl.u32 %v4565, 7
        %v4567 = vsub.s32 %v4564, %v4566
        %v4568 = vrot.slane %v4554, %v4567
        %v4569 = vcombine.low %v4561, %v4568
        %v4570 = vcombine.low %v3294, %v3298
        %v4571 = vcombine.low %v3302, %v3306
        %v4572 = vcombine.low %v3310, %v3314
        %v4573 = vcombine.low %v3318, %v3322
        %v4575 = vunpack.c.l.s4 1966171168
        %v4576 = vunpack.c.0.s8 %v4575
        %v4577 = vlaneseq
        %v4578 = vshrl.u32 %v4577, 7
        %v4579 = vsub.s32 %v4576, %v4578
        %v4580 = vrot.slane %v4570, %v4579
        %v4582 = vunpack.c.l.s4 1966171168
        %v4583 = vunpack.c.0.s8 %v4582
        %v4584 = vlaneseq
        %v4585 = vshrl.u32 %v4584, 7
        %v4586 = vsub.s32 %v4583, %v4585
        %v4587 = vrot.slane %v4571, %v4586
        %v4589 = vunpack.c.l.s4 1966171168
        %v4590 = vunpack.c.0.s8 %v4589
        %v4591 = vlaneseq
        %v4592 = vshrl.u32 %v4591, 7
        %v4593 = vsub.s32 %v4590, %v4592
        %v4594 = vrot.slane %v4572, %v4593
        %v4596 = vunpack.c.l.s4 1966171168
        %v4597 = vunpack.c.0.s8 %v4596
        %v4598 = vlaneseq
        %v4599 = vshrl.u32 %v4598, 7
        %v4600 = vsub.s32 %v4597, %v4599
        %v4601 = vrot.slane %v4573, %v4600
        %v4602 = vcombine.low %v4580, %v4587
        %v4603 = vcombine.low %v4594, %v4601
        %v4605 = vunpack.c.l.s4 1966171168
        %v4606 = vunpack.c.0.s8 %v4605
        %v4607 = vlaneseq
        %v4608 = vshrl.u32 %v4607, 7
        %v4609 = vsub.s32 %v4606, %v4608
        %v4610 = vrot.slane %v4602, %v4609
        %v4612 = vunpack.c.l.s4 1966171168
        %v4613 = vunpack.c.0.s8 %v4612
        %v4614 = vlaneseq
        %v4615 = vshrl.u32 %v4614, 7
        %v4616 = vsub.s32 %v4613, %v4615
        %v4617 = vrot.slane %v4603, %v4616
        %v4618 = vcombine.low %v4610, %v4617
        %v4619 = vcombine.low %v3326, %v3330
        %v4620 = vcombine.low %v3334, %v3338
        %v4621 = vcombine.low %v3342, %v3346
        %v4622 = vcombine.low %v3350, %v3354
        %v4624 = vunpack.c.l.s4 1966171168
        %v4625 = vunpack.c.0.s8 %v4624
        %v4626 = vlaneseq
        %v4627 = vshrl.u32 %v4626, 7
        %v4628 = vsub.s32 %v4625, %v4627
        %v4629 = vrot.slane %v4619, %v4628
        %v4631 = vunpack.c.l.s4 1966171168
        %v4632 = vunpack.c.0.s8 %v4631
        %v4633 = vlaneseq
        %v4634 = vshrl.u32 %v4633, 7
        %v4635 = vsub.s32 %v4632, %v4634
        %v4636 = vrot.slane %v4620, %v4635
        %v4638 = vunpack.c.l.s4 1966171168
        %v4639 = vunpack.c.0.s8 %v4638
        %v4640 = vlaneseq
        %v4641 = vshrl.u32 %v4640, 7
        %v4642 = vsub.s32 %v4639, %v4641
        %v4643 = vrot.slane %v4621, %v4642
        %v4645 = vunpack.c.l.s4 1966171168
        %v4646 = vunpack.c.0.s8 %v4645
        %v4647 = vlaneseq
        %v4648 = vshrl.u32 %v4647, 7
        %v4649 = vsub.s32 %v4646, %v4648
        %v4650 = vrot.slane %v4622, %v4649
        %v4651 = vcombine.low %v4629, %v4636
        %v4652 = vcombine.low %v4643, %v4650
        %v4654 = vunpack.c.l.s4 1966171168
        %v4655 = vunpack.c.0.s8 %v4654
        %v4656 = vlaneseq
        %v4657 = vshrl.u32 %v4656, 7
        %v4658 = vsub.s32 %v4655, %v4657
        %v4659 = vrot.slane %v4651, %v4658
        %v4661 = vunpack.c.l.s4 1966171168
        %v4662 = vunpack.c.0.s8 %v4661
        %v4663 = vlaneseq
        %v4664 = vshrl.u32 %v4663, 7
        %v4665 = vsub.s32 %v4662, %v4664
        %v4666 = vrot.slane %v4652, %v4665
        %v4667 = vcombine.low %v4659, %v4666
        %v4668 = vcombine.low %v3358, %v3362
        %v4669 = vcombine.low %v3366, %v3370
        %v4670 = vcombine.low %v3374, %v3378
        %v4671 = vcombine.low %v3382, %v3386
        %v4673 = vunpack.c.l.s4 1966171168
        %v4674 = vunpack.c.0.s8 %v4673
        %v4675 = vlaneseq
        %v4676 = vshrl.u32 %v4675, 7
        %v4677 = vsub.s32 %v4674, %v4676
        %v4678 = vrot.slane %v4668, %v4677
        %v4680 = vunpack.c.l.s4 1966171168
        %v4681 = vunpack.c.0.s8 %v4680
        %v4682 = vlaneseq
        %v4683 = vshrl.u32 %v4682, 7
        %v4684 = vsub.s32 %v4681, %v4683
        %v4685 = vrot.slane %v4669, %v4684
        %v4687 = vunpack.c.l.s4 1966171168
        %v4688 = vunpack.c.0.s8 %v4687
        %v4689 = vlaneseq
        %v4690 = vshrl.u32 %v4689, 7
        %v4691 = vsub.s32 %v4688, %v4690
        %v4692 = vrot.slane %v4670, %v4691
        %v4694 = vunpack.c.l.s4 1966171168
        %v4695 = vunpack.c.0.s8 %v4694
        %v4696 = vlaneseq
        %v4697 = vshrl.u32 %v4696, 7
        %v4698 = vsub.s32 %v4695, %v4697
        %v4699 = vrot.slane %v4671, %v4698
        %v4700 = vcombine.low %v4678, %v4685
        %v4701 = vcombine.low %v4692, %v4699
        %v4703 = vunpack.c.l.s4 1966171168
        %v4704 = vunpack.c.0.s8 %v4703
        %v4705 = vlaneseq
        %v4706 = vshrl.u32 %v4705, 7
        %v4707 = vsub.s32 %v4704, %v4706
        %v4708 = vrot.slane %v4700, %v4707
        %v4710 = vunpack.c.l.s4 1966171168
        %v4711 = vunpack.c.0.s8 %v4710
        %v4712 = vlaneseq
        %v4713 = vshrl.u32 %v4712, 7
        %v4714 = vsub.s32 %v4711, %v4713
        %v4715 = vrot.slane %v4701, %v4714
        %v4716 = vcombine.low %v4708, %v4715
        %v4717 = vcombine.low %v3390, %v3394
        %v4718 = vcombine.low %v3398, %v3402
        %v4719 = vcombine.low %v3406, %v3410
        %v4720 = vcombine.low %v3414, %v3418
        %v4722 = vunpack.c.l.s4 1966171168
        %v4723 = vunpack.c.0.s8 %v4722
        %v4724 = vlaneseq
        %v4725 = vshrl.u32 %v4724, 7
        %v4726 = vsub.s32 %v4723, %v4725
        %v4727 = vrot.slane %v4717, %v4726
        %v4729 = vunpack.c.l.s4 1966171168
        %v4730 = vunpack.c.0.s8 %v4729
        %v4731 = vlaneseq
        %v4732 = vshrl.u32 %v4731, 7
        %v4733 = vsub.s32 %v4730, %v4732
        %v4734 = vrot.slane %v4718, %v4733
        %v4736 = vunpack.c.l.s4 1966171168
        %v4737 = vunpack.c.0.s8 %v4736
        %v4738 = vlaneseq
        %v4739 = vshrl.u32 %v4738, 7
        %v4740 = vsub.s32 %v4737, %v4739
        %v4741 = vrot.slane %v4719, %v4740
        %v4743 = vunpack.c.l.s4 1966171168
        %v4744 = vunpack.c.0.s8 %v4743
        %v4745 = vlaneseq
        %v4746 = vshrl.u32 %v4745, 7
        %v4747 = vsub.s32 %v4744, %v4746
        %v4748 = vrot.slane %v4720, %v4747
        %v4749 = vcombine.low %v4727, %v4734
        %v4750 = vcombine.low %v4741, %v4748
        %v4752 = vunpack.c.l.s4 1966171168
        %v4753 = vunpack.c.0.s8 %v4752
        %v4754 = vlaneseq
        %v4755 = vshrl.u32 %v4754, 7
        %v4756 = vsub.s32 %v4753, %v4755
        %v4757 = vrot.slane %v4749, %v4756
        %v4759 = vunpack.c.l.s4 1966171168
        %v4760 = vunpack.c.0.s8 %v4759
        %v4761 = vlaneseq
        %v4762 = vshrl.u32 %v4761, 7
        %v4763 = vsub.s32 %v4760, %v4762
        %v4764 = vrot.slane %v4750, %v4763
        %v4765 = vcombine.low %v4757, %v4764
        %v4766 = vcombine.low %v3422, %v3426
        %v4767 = vcombine.low %v3430, %v3434
        %v4768 = vcombine.low %v3438, %v3442
        %v4769 = vcombine.low %v3446, %v3450
        %v4771 = vunpack.c.l.s4 1966171168
        %v4772 = vunpack.c.0.s8 %v4771
        %v4773 = vlaneseq
        %v4774 = vshrl.u32 %v4773, 7
        %v4775 = vsub.s32 %v4772, %v4774
        %v4776 = vrot.slane %v4766, %v4775
        %v4778 = vunpack.c.l.s4 1966171168
        %v4779 = vunpack.c.0.s8 %v4778
        %v4780 = vlaneseq
        %v4781 = vshrl.u32 %v4780, 7
        %v4782 = vsub.s32 %v4779, %v4781
        %v4783 = vrot.slane %v4767, %v4782
        %v4785 = vunpack.c.l.s4 1966171168
        %v4786 = vunpack.c.0.s8 %v4785
        %v4787 = vlaneseq
        %v4788 = vshrl.u32 %v4787, 7
        %v4789 = vsub.s32 %v4786, %v4788
        %v4790 = vrot.slane %v4768, %v4789
        %v4792 = vunpack.c.l.s4 1966171168
        %v4793 = vunpack.c.0.s8 %v4792
        %v4794 = vlaneseq
        %v4795 = vshrl.u32 %v4794, 7
        %v4796 = vsub.s32 %v4793, %v4795
        %v4797 = vrot.slane %v4769, %v4796
        %v4798 = vcombine.low %v4776, %v4783
        %v4799 = vcombine.low %v4790, %v4797
        %v4801 = vunpack.c.l.s4 1966171168
        %v4802 = vunpack.c.0.s8 %v4801
        %v4803 = vlaneseq
        %v4804 = vshrl.u32 %v4803, 7
        %v4805 = vsub.s32 %v4802, %v4804
        %v4806 = vrot.slane %v4798, %v4805
        %v4808 = vunpack.c.l.s4 1966171168
        %v4809 = vunpack.c.0.s8 %v4808
        %v4810 = vlaneseq
        %v4811 = vshrl.u32 %v4810, 7
        %v4812 = vsub.s32 %v4809, %v4811
        %v4813 = vrot.slane %v4799, %v4812
        %v4814 = vcombine.low %v4806, %v4813
        %v4815 = vcombine.low %v3454, %v3458
        %v4816 = vcombine.low %v3462, %v3466
        %v4817 = vcombine.low %v3470, %v3474
        %v4818 = vcombine.low %v3478, %v3482
        %v4820 = vunpack.c.l.s4 1966171168
        %v4821 = vunpack.c.0.s8 %v4820
        %v4822 = vlaneseq
        %v4823 = vshrl.u32 %v4822, 7
        %v4824 = vsub.s32 %v4821, %v4823
        %v4825 = vrot.slane %v4815, %v4824
        %v4827 = vunpack.c.l.s4 1966171168
        %v4828 = vunpack.c.0.s8 %v4827
        %v4829 = vlaneseq
        %v4830 = vshrl.u32 %v4829, 7
        %v4831 = vsub.s32 %v4828, %v4830
        %v4832 = vrot.slane %v4816, %v4831
        %v4834 = vunpack.c.l.s4 1966171168
        %v4835 = vunpack.c.0.s8 %v4834
        %v4836 = vlaneseq
        %v4837 = vshrl.u32 %v4836, 7
        %v4838 = vsub.s32 %v4835, %v4837
        %v4839 = vrot.slane %v4817, %v4838
        %v4841 = vunpack.c.l.s4 1966171168
        %v4842 = vunpack.c.0.s8 %v4841
        %v4843 = vlaneseq
        %v4844 = vshrl.u32 %v4843, 7
        %v4845 = vsub.s32 %v4842, %v4844
        %v4846 = vrot.slane %v4818, %v4845
        %v4847 = vcombine.low %v4825, %v4832
        %v4848 = vcombine.low %v4839, %v4846
        %v4850 = vunpack.c.l.s4 1966171168
        %v4851 = vunpack.c.0.s8 %v4850
        %v4852 = vlaneseq
        %v4853 = vshrl.u32 %v4852, 7
        %v4854 = vsub.s32 %v4851, %v4853
        %v4855 = vrot.slane %v4847, %v4854
        %v4857 = vunpack.c.l.s4 1966171168
        %v4858 = vunpack.c.0.s8 %v4857
        %v4859 = vlaneseq
        %v4860 = vshrl.u32 %v4859, 7
        %v4861 = vsub.s32 %v4858, %v4860
        %v4862 = vrot.slane %v4848, %v4861
        %v4863 = vcombine.low %v4855, %v4862
        %v4864 = vcombine.low %v3486, %v3490
        %v4865 = vcombine.low %v3494, %v3498
        %v4866 = vcombine.low %v3502, %v3506
        %v4867 = vcombine.low %v3510, %v3514
        %v4869 = vunpack.c.l.s4 1966171168
        %v4870 = vunpack.c.0.s8 %v4869
        %v4871 = vlaneseq
        %v4872 = vshrl.u32 %v4871, 7
        %v4873 = vsub.s32 %v4870, %v4872
        %v4874 = vrot.slane %v4864, %v4873
        %v4876 = vunpack.c.l.s4 1966171168
        %v4877 = vunpack.c.0.s8 %v4876
        %v4878 = vlaneseq
        %v4879 = vshrl.u32 %v4878, 7
        %v4880 = vsub.s32 %v4877, %v4879
        %v4881 = vrot.slane %v4865, %v4880
        %v4883 = vunpack.c.l.s4 1966171168
        %v4884 = vunpack.c.0.s8 %v4883
        %v4885 = vlaneseq
        %v4886 = vshrl.u32 %v4885, 7
        %v4887 = vsub.s32 %v4884, %v4886
        %v4888 = vrot.slane %v4866, %v4887
        %v4890 = vunpack.c.l.s4 1966171168
        %v4891 = vunpack.c.0.s8 %v4890
        %v4892 = vlaneseq
        %v4893 = vshrl.u32 %v4892, 7
        %v4894 = vsub.s32 %v4891, %v4893
        %v4895 = vrot.slane %v4867, %v4894
        %v4896 = vcombine.low %v4874, %v4881
        %v4897 = vcombine.low %v4888, %v4895
        %v4899 = vunpack.c.l.s4 1966171168
        %v4900 = vunpack.c.0.s8 %v4899
        %v4901 = vlaneseq
        %v4902 = vshrl.u32 %v4901, 7
        %v4903 = vsub.s32 %v4900, %v4902
        %v4904 = vrot.slane %v4896, %v4903
        %v4906 = vunpack.c.l.s4 1966171168
        %v4907 = vunpack.c.0.s8 %v4906
        %v4908 = vlaneseq
        %v4909 = vshrl.u32 %v4908, 7
        %v4910 = vsub.s32 %v4907, %v4909
        %v4911 = vrot.slane %v4897, %v4910
        %v4912 = vcombine.low %v4904, %v4911
        %v4913 = vcombine.low %v3518, %v3522
        %v4914 = vcombine.low %v3526, %v3530
        %v4915 = vcombine.low %v3534, %v3538
        %v4916 = vcombine.low %v3542, %v3546
        %v4918 = vunpack.c.l.s4 1966171168
        %v4919 = vunpack.c.0.s8 %v4918
        %v4920 = vlaneseq
        %v4921 = vshrl.u32 %v4920, 7
        %v4922 = vsub.s32 %v4919, %v4921
        %v4923 = vrot.slane %v4913, %v4922
        %v4925 = vunpack.c.l.s4 1966171168
        %v4926 = vunpack.c.0.s8 %v4925
        %v4927 = vlaneseq
        %v4928 = vshrl.u32 %v4927, 7
        %v4929 = vsub.s32 %v4926, %v4928
        %v4930 = vrot.slane %v4914, %v4929
        %v4932 = vunpack.c.l.s4 1966171168
        %v4933 = vunpack.c.0.s8 %v4932
        %v4934 = vlaneseq
        %v4935 = vshrl.u32 %v4934, 7
        %v4936 = vsub.s32 %v4933, %v4935
        %v4937 = vrot.slane %v4915, %v4936
        %v4939 = vunpack.c.l.s4 1966171168
        %v4940 = vunpack.c.0.s8 %v4939
        %v4941 = vlaneseq
        %v4942 = vshrl.u32 %v4941, 7
        %v4943 = vsub.s32 %v4940, %v4942
        %v4944 = vrot.slane %v4916, %v4943
        %v4945 = vcombine.low %v4923, %v4930
        %v4946 = vcombine.low %v4937, %v4944
        %v4948 = vunpack.c.l.s4 1966171168
        %v4949 = vunpack.c.0.s8 %v4948
        %v4950 = vlaneseq
        %v4951 = vshrl.u32 %v4950, 7
        %v4952 = vsub.s32 %v4949, %v4951
        %v4953 = vrot.slane %v4945, %v4952
        %v4955 = vunpack.c.l.s4 1966171168
        %v4956 = vunpack.c.0.s8 %v4955
        %v4957 = vlaneseq
        %v4958 = vshrl.u32 %v4957, 7
        %v4959 = vsub.s32 %v4956, %v4958
        %v4960 = vrot.slane %v4946, %v4959
        %v4961 = vcombine.low %v4953, %v4960
        %v4962 = vcombine.low %v3550, %v3554
        %v4963 = vcombine.low %v3558, %v3562
        %v4964 = vcombine.low %v3566, %v3570
        %v4965 = vcombine.low %v3574, %v3578
        %v4967 = vunpack.c.l.s4 1966171168
        %v4968 = vunpack.c.0.s8 %v4967
        %v4969 = vlaneseq
        %v4970 = vshrl.u32 %v4969, 7
        %v4971 = vsub.s32 %v4968, %v4970
        %v4972 = vrot.slane %v4962, %v4971
        %v4974 = vunpack.c.l.s4 1966171168
        %v4975 = vunpack.c.0.s8 %v4974
        %v4976 = vlaneseq
        %v4977 = vshrl.u32 %v4976, 7
        %v4978 = vsub.s32 %v4975, %v4977
        %v4979 = vrot.slane %v4963, %v4978
        %v4981 = vunpack.c.l.s4 1966171168
        %v4982 = vunpack.c.0.s8 %v4981
        %v4983 = vlaneseq
        %v4984 = vshrl.u32 %v4983, 7
        %v4985 = vsub.s32 %v4982, %v4984
        %v4986 = vrot.slane %v4964, %v4985
        %v4988 = vunpack.c.l.s4 1966171168
        %v4989 = vunpack.c.0.s8 %v4988
        %v4990 = vlaneseq
        %v4991 = vshrl.u32 %v4990, 7
        %v4992 = vsub.s32 %v4989, %v4991
        %v4993 = vrot.slane %v4965, %v4992
        %v4994 = vcombine.low %v4972, %v4979
        %v4995 = vcombine.low %v4986, %v4993
        %v4997 = vunpack.c.l.s4 1966171168
        %v4998 = vunpack.c.0.s8 %v4997
        %v4999 = vlaneseq
        %v5000 = vshrl.u32 %v4999, 7
        %v5001 = vsub.s32 %v4998, %v5000
        %v5002 = vrot.slane %v4994, %v5001
        %v5004 = vunpack.c.l.s4 1966171168
        %v5005 = vunpack.c.0.s8 %v5004
        %v5006 = vlaneseq
        %v5007 = vshrl.u32 %v5006, 7
        %v5008 = vsub.s32 %v5005, %v5007
        %v5009 = vrot.slane %v4995, %v5008
        %v5010 = vcombine.low %v5002, %v5009
        %v5011 = vcombine.low %v3582, %v3586
        %v5012 = vcombine.low %v3590, %v3594
        %v5013 = vcombine.low %v3598, %v3602
        %v5014 = vcombine.low %v3606, %v3610
        %v5016 = vunpack.c.l.s4 1966171168
        %v5017 = vunpack.c.0.s8 %v5016
        %v5018 = vlaneseq
        %v5019 = vshrl.u32 %v5018, 7
        %v5020 = vsub.s32 %v5017, %v5019
        %v5021 = vrot.slane %v5011, %v5020
        %v5023 = vunpack.c.l.s4 1966171168
        %v5024 = vunpack.c.0.s8 %v5023
        %v5025 = vlaneseq
        %v5026 = vshrl.u32 %v5025, 7
        %v5027 = vsub.s32 %v5024, %v5026
        %v5028 = vrot.slane %v5012, %v5027
        %v5030 = vunpack.c.l.s4 1966171168
        %v5031 = vunpack.c.0.s8 %v5030
        %v5032 = vlaneseq
        %v5033 = vshrl.u32 %v5032, 7
        %v5034 = vsub.s32 %v5031, %v5033
        %v5035 = vrot.slane %v5013, %v5034
        %v5037 = vunpack.c.l.s4 1966171168
        %v5038 = vunpack.c.0.s8 %v5037
        %v5039 = vlaneseq
        %v5040 = vshrl.u32 %v5039, 7
        %v5041 = vsub.s32 %v5038, %v5040
        %v5042 = vrot.slane %v5014, %v5041
        %v5043 = vcombine.low %v5021, %v5028
        %v5044 = vcombine.low %v5035, %v5042
        %v5046 = vunpack.c.l.s4 1966171168
        %v5047 = vunpack.c.0.s8 %v5046
        %v5048 = vlaneseq
        %v5049 = vshrl.u32 %v5048, 7
        %v5050 = vsub.s32 %v5047, %v5049
        %v5051 = vrot.slane %v5043, %v5050
        %v5053 = vunpack.c.l.s4 1966171168
        %v5054 = vunpack.c.0.s8 %v5053
        %v5055 = vlaneseq
        %v5056 = vshrl.u32 %v5055, 7
        %v5057 = vsub.s32 %v5054, %v5056
        %v5058 = vrot.slane %v5044, %v5057
        %v5059 = vcombine.low %v5051, %v5058
        %v5060 = vcombine.low %v3614, %v3618
        %v5061 = vcombine.low %v3622, %v3626
        %v5062 = vcombine.low %v3630, %v3634
        %v5063 = vcombine.low %v3638, %v3642
        %v5065 = vunpack.c.l.s4 1966171168
        %v5066 = vunpack.c.0.s8 %v5065
        %v5067 = vlaneseq
        %v5068 = vshrl.u32 %v5067, 7
        %v5069 = vsub.s32 %v5066, %v5068
        %v5070 = vrot.slane %v5060, %v5069
        %v5072 = vunpack.c.l.s4 1966171168
        %v5073 = vunpack.c.0.s8 %v5072
        %v5074 = vlaneseq
        %v5075 = vshrl.u32 %v5074, 7
        %v5076 = vsub.s32 %v5073, %v5075
        %v5077 = vrot.slane %v5061, %v5076
        %v5079 = vunpack.c.l.s4 1966171168
        %v5080 = vunpack.c.0.s8 %v5079
        %v5081 = vlaneseq
        %v5082 = vshrl.u32 %v5081, 7
        %v5083 = vsub.s32 %v5080, %v5082
        %v5084 = vrot.slane %v5062, %v5083
        %v5086 = vunpack.c.l.s4 1966171168
        %v5087 = vunpack.c.0.s8 %v5086
        %v5088 = vlaneseq
        %v5089 = vshrl.u32 %v5088, 7
        %v5090 = vsub.s32 %v5087, %v5089
        %v5091 = vrot.slane %v5063, %v5090
        %v5092 = vcombine.low %v5070, %v5077
        %v5093 = vcombine.low %v5084, %v5091
        %v5095 = vunpack.c.l.s4 1966171168
        %v5096 = vunpack.c.0.s8 %v5095
        %v5097 = vlaneseq
        %v5098 = vshrl.u32 %v5097, 7
        %v5099 = vsub.s32 %v5096, %v5098
        %v5100 = vrot.slane %v5092, %v5099
        %v5102 = vunpack.c.l.s4 1966171168
        %v5103 = vunpack.c.0.s8 %v5102
        %v5104 = vlaneseq
        %v5105 = vshrl.u32 %v5104, 7
        %v5106 = vsub.s32 %v5103, %v5105
        %v5107 = vrot.slane %v5093, %v5106
        %v5108 = vcombine.low %v5100, %v5107
        %v5109 = vcombine.low %v3646, %v3650
        %v5110 = vcombine.low %v3654, %v3658
        %v5111 = vcombine.low %v3662, %v3666
        %v5112 = vcombine.low %v3670, %v3674
        %v5114 = vunpack.c.l.s4 1966171168
        %v5115 = vunpack.c.0.s8 %v5114
        %v5116 = vlaneseq
        %v5117 = vshrl.u32 %v5116, 7
        %v5118 = vsub.s32 %v5115, %v5117
        %v5119 = vrot.slane %v5109, %v5118
        %v5121 = vunpack.c.l.s4 1966171168
        %v5122 = vunpack.c.0.s8 %v5121
        %v5123 = vlaneseq
        %v5124 = vshrl.u32 %v5123, 7
        %v5125 = vsub.s32 %v5122, %v5124
        %v5126 = vrot.slane %v5110, %v5125
        %v5128 = vunpack.c.l.s4 1966171168
        %v5129 = vunpack.c.0.s8 %v5128
        %v5130 = vlaneseq
        %v5131 = vshrl.u32 %v5130, 7
        %v5132 = vsub.s32 %v5129, %v5131
        %v5133 = vrot.slane %v5111, %v5132
        %v5135 = vunpack.c.l.s4 1966171168
        %v5136 = vunpack.c.0.s8 %v5135
        %v5137 = vlaneseq
        %v5138 = vshrl.u32 %v5137, 7
        %v5139 = vsub.s32 %v5136, %v5138
        %v5140 = vrot.slane %v5112, %v5139
        %v5141 = vcombine.low %v5119, %v5126
        %v5142 = vcombine.low %v5133, %v5140
        %v5144 = vunpack.c.l.s4 1966171168
        %v5145 = vunpack.c.0.s8 %v5144
        %v5146 = vlaneseq
        %v5147 = vshrl.u32 %v5146, 7
        %v5148 = vsub.s32 %v5145, %v5147
        %v5149 = vrot.slane %v5141, %v5148
        %v5151 = vunpack.c.l.s4 1966171168
        %v5152 = vunpack.c.0.s8 %v5151
        %v5153 = vlaneseq
        %v5154 = vshrl.u32 %v5153, 7
        %v5155 = vsub.s32 %v5152, %v5154
        %v5156 = vrot.slane %v5142, %v5155
        %v5157 = vcombine.low %v5149, %v5156
        %v5158 = vcombine.low %v3678, %v3682
        %v5159 = vcombine.low %v3686, %v3690
        %v5160 = vcombine.low %v3694, %v3698
        %v5161 = vcombine.low %v3702, %v3706
        %v5163 = vunpack.c.l.s4 1966171168
        %v5164 = vunpack.c.0.s8 %v5163
        %v5165 = vlaneseq
        %v5166 = vshrl.u32 %v5165, 7
        %v5167 = vsub.s32 %v5164, %v5166
        %v5168 = vrot.slane %v5158, %v5167
        %v5170 = vunpack.c.l.s4 1966171168
        %v5171 = vunpack.c.0.s8 %v5170
        %v5172 = vlaneseq
        %v5173 = vshrl.u32 %v5172, 7
        %v5174 = vsub.s32 %v5171, %v5173
        %v5175 = vrot.slane %v5159, %v5174
        %v5177 = vunpack.c.l.s4 1966171168
        %v5178 = vunpack.c.0.s8 %v5177
        %v5179 = vlaneseq
        %v5180 = vshrl.u32 %v5179, 7
        %v5181 = vsub.s32 %v5178, %v5180
        %v5182 = vrot.slane %v5160, %v5181
        %v5184 = vunpack.c.l.s4 1966171168
        %v5185 = vunpack.c.0.s8 %v5184
        %v5186 = vlaneseq
        %v5187 = vshrl.u32 %v5186, 7
        %v5188 = vsub.s32 %v5185, %v5187
        %v5189 = vrot.slane %v5161, %v5188
        %v5190 = vcombine.low %v5168, %v5175
        %v5191 = vcombine.low %v5182, %v5189
        %v5193 = vunpack.c.l.s4 1966171168
        %v5194 = vunpack.c.0.s8 %v5193
        %v5195 = vlaneseq
        %v5196 = vshrl.u32 %v5195, 7
        %v5197 = vsub.s32 %v5194, %v5196
        %v5198 = vrot.slane %v5190, %v5197
        %v5200 = vunpack.c.l.s4 1966171168
        %v5201 = vunpack.c.0.s8 %v5200
        %v5202 = vlaneseq
        %v5203 = vshrl.u32 %v5202, 7
        %v5204 = vsub.s32 %v5201, %v5203
        %v5205 = vrot.slane %v5191, %v5204
        %v5206 = vcombine.low %v5198, %v5205
        %v5207 = vcombine.low %v3710, %v3714
        %v5208 = vcombine.low %v3718, %v3722
        %v5209 = vcombine.low %v3726, %v3730
        %v5210 = vcombine.low %v3734, %v3738
        %v5212 = vunpack.c.l.s4 1966171168
        %v5213 = vunpack.c.0.s8 %v5212
        %v5214 = vlaneseq
        %v5215 = vshrl.u32 %v5214, 7
        %v5216 = vsub.s32 %v5213, %v5215
        %v5217 = vrot.slane %v5207, %v5216
        %v5219 = vunpack.c.l.s4 1966171168
        %v5220 = vunpack.c.0.s8 %v5219
        %v5221 = vlaneseq
        %v5222 = vshrl.u32 %v5221, 7
        %v5223 = vsub.s32 %v5220, %v5222
        %v5224 = vrot.slane %v5208, %v5223
        %v5226 = vunpack.c.l.s4 1966171168
        %v5227 = vunpack.c.0.s8 %v5226
        %v5228 = vlaneseq
        %v5229 = vshrl.u32 %v5228, 7
        %v5230 = vsub.s32 %v5227, %v5229
        %v5231 = vrot.slane %v5209, %v5230
        %v5233 = vunpack.c.l.s4 1966171168
        %v5234 = vunpack.c.0.s8 %v5233
        %v5235 = vlaneseq
        %v5236 = vshrl.u32 %v5235, 7
        %v5237 = vsub.s32 %v5234, %v5236
        %v5238 = vrot.slane %v5210, %v5237
        %v5239 = vcombine.low %v5217, %v5224
        %v5240 = vcombine.low %v5231, %v5238
        %v5242 = vunpack.c.l.s4 1966171168
        %v5243 = vunpack.c.0.s8 %v5242
        %v5244 = vlaneseq
        %v5245 = vshrl.u32 %v5244, 7
        %v5246 = vsub.s32 %v5243, %v5245
        %v5247 = vrot.slane %v5239, %v5246
        %v5249 = vunpack.c.l.s4 1966171168
        %v5250 = vunpack.c.0.s8 %v5249
        %v5251 = vlaneseq
        %v5252 = vshrl.u32 %v5251, 7
        %v5253 = vsub.s32 %v5250, %v5252
        %v5254 = vrot.slane %v5240, %v5253
        %v5255 = vcombine.low %v5247, %v5254
        %v5256 = vcombine.low %v3742, %v3746
        %v5257 = vcombine.low %v3750, %v3754
        %v5258 = vcombine.low %v3758, %v3762
        %v5259 = vcombine.low %v3766, %v3770
        %v5261 = vunpack.c.l.s4 1966171168
        %v5262 = vunpack.c.0.s8 %v5261
        %v5263 = vlaneseq
        %v5264 = vshrl.u32 %v5263, 7
        %v5265 = vsub.s32 %v5262, %v5264
        %v5266 = vrot.slane %v5256, %v5265
        %v5268 = vunpack.c.l.s4 1966171168
        %v5269 = vunpack.c.0.s8 %v5268
        %v5270 = vlaneseq
        %v5271 = vshrl.u32 %v5270, 7
        %v5272 = vsub.s32 %v5269, %v5271
        %v5273 = vrot.slane %v5257, %v5272
        %v5275 = vunpack.c.l.s4 1966171168
        %v5276 = vunpack.c.0.s8 %v5275
        %v5277 = vlaneseq
        %v5278 = vshrl.u32 %v5277, 7
        %v5279 = vsub.s32 %v5276, %v5278
        %v5280 = vrot.slane %v5258, %v5279
        %v5282 = vunpack.c.l.s4 1966171168
        %v5283 = vunpack.c.0.s8 %v5282
        %v5284 = vlaneseq
        %v5285 = vshrl.u32 %v5284, 7
        %v5286 = vsub.s32 %v5283, %v5285
        %v5287 = vrot.slane %v5259, %v5286
        %v5288 = vcombine.low %v5266, %v5273
        %v5289 = vcombine.low %v5280, %v5287
        %v5291 = vunpack.c.l.s4 1966171168
        %v5292 = vunpack.c.0.s8 %v5291
        %v5293 = vlaneseq
        %v5294 = vshrl.u32 %v5293, 7
        %v5295 = vsub.s32 %v5292, %v5294
        %v5296 = vrot.slane %v5288, %v5295
        %v5298 = vunpack.c.l.s4 1966171168
        %v5299 = vunpack.c.0.s8 %v5298
        %v5300 = vlaneseq
        %v5301 = vshrl.u32 %v5300, 7
        %v5302 = vsub.s32 %v5299, %v5301
        %v5303 = vrot.slane %v5289, %v5302
        %v5304 = vcombine.low %v5296, %v5303
        %v5305 = vcombine.low %v3774, %v3778
        %v5306 = vcombine.low %v3782, %v3786
        %v5307 = vcombine.low %v3790, %v3794
        %v5308 = vcombine.low %v3798, %v3802
        %v5310 = vunpack.c.l.s4 1966171168
        %v5311 = vunpack.c.0.s8 %v5310
        %v5312 = vlaneseq
        %v5313 = vshrl.u32 %v5312, 7
        %v5314 = vsub.s32 %v5311, %v5313
        %v5315 = vrot.slane %v5305, %v5314
        %v5317 = vunpack.c.l.s4 1966171168
        %v5318 = vunpack.c.0.s8 %v5317
        %v5319 = vlaneseq
        %v5320 = vshrl.u32 %v5319, 7
        %v5321 = vsub.s32 %v5318, %v5320
        %v5322 = vrot.slane %v5306, %v5321
        %v5324 = vunpack.c.l.s4 1966171168
        %v5325 = vunpack.c.0.s8 %v5324
        %v5326 = vlaneseq
        %v5327 = vshrl.u32 %v5326, 7
        %v5328 = vsub.s32 %v5325, %v5327
        %v5329 = vrot.slane %v5307, %v5328
        %v5331 = vunpack.c.l.s4 1966171168
        %v5332 = vunpack.c.0.s8 %v5331
        %v5333 = vlaneseq
        %v5334 = vshrl.u32 %v5333, 7
        %v5335 = vsub.s32 %v5332, %v5334
        %v5336 = vrot.slane %v5308, %v5335
        %v5337 = vcombine.low %v5315, %v5322
        %v5338 = vcombine.low %v5329, %v5336
        %v5340 = vunpack.c.l.s4 1966171168
        %v5341 = vunpack.c.0.s8 %v5340
        %v5342 = vlaneseq
        %v5343 = vshrl.u32 %v5342, 7
        %v5344 = vsub.s32 %v5341, %v5343
        %v5345 = vrot.slane %v5337, %v5344
        %v5347 = vunpack.c.l.s4 1966171168
        %v5348 = vunpack.c.0.s8 %v5347
        %v5349 = vlaneseq
        %v5350 = vshrl.u32 %v5349, 7
        %v5351 = vsub.s32 %v5348, %v5350
        %v5352 = vrot.slane %v5338, %v5351
        %v5353 = vcombine.low %v5345, %v5352
        %v5354 = vcombine.low %v3806, %v3810
        %v5355 = vcombine.low %v3814, %v3818
        %v5356 = vcombine.low %v3822, %v3826
        %v5357 = vcombine.low %v3830, %v3834
        %v5359 = vunpack.c.l.s4 1966171168
        %v5360 = vunpack.c.0.s8 %v5359
        %v5361 = vlaneseq
        %v5362 = vshrl.u32 %v5361, 7
        %v5363 = vsub.s32 %v5360, %v5362
        %v5364 = vrot.slane %v5354, %v5363
        %v5366 = vunpack.c.l.s4 1966171168
        %v5367 = vunpack.c.0.s8 %v5366
        %v5368 = vlaneseq
        %v5369 = vshrl.u32 %v5368, 7
        %v5370 = vsub.s32 %v5367, %v5369
        %v5371 = vrot.slane %v5355, %v5370
        %v5373 = vunpack.c.l.s4 1966171168
        %v5374 = vunpack.c.0.s8 %v5373
        %v5375 = vlaneseq
        %v5376 = vshrl.u32 %v5375, 7
        %v5377 = vsub.s32 %v5374, %v5376
        %v5378 = vrot.slane %v5356, %v5377
        %v5380 = vunpack.c.l.s4 1966171168
        %v5381 = vunpack.c.0.s8 %v5380
        %v5382 = vlaneseq
        %v5383 = vshrl.u32 %v5382, 7
        %v5384 = vsub.s32 %v5381, %v5383
        %v5385 = vrot.slane %v5357, %v5384
        %v5386 = vcombine.low %v5364, %v5371
        %v5387 = vcombine.low %v5378, %v5385
        %v5389 = vunpack.c.l.s4 1966171168
        %v5390 = vunpack.c.0.s8 %v5389
        %v5391 = vlaneseq
        %v5392 = vshrl.u32 %v5391, 7
        %v5393 = vsub.s32 %v5390, %v5392
        %v5394 = vrot.slane %v5386, %v5393
        %v5396 = vunpack.c.l.s4 1966171168
        %v5397 = vunpack.c.0.s8 %v5396
        %v5398 = vlaneseq
        %v5399 = vshrl.u32 %v5398, 7
        %v5400 = vsub.s32 %v5397, %v5399
        %v5401 = vrot.slane %v5387, %v5400
        %v5402 = vcombine.low %v5394, %v5401
        %5403 = vset.pattern.permute.xlu0 0
        %5404 = vperm.xlu0 %5403, %v3883
        %v5405 = vpop.permute.xlu0 %5404
        %5406 = vset.pattern.permute.xlu0 0
        %5407 = vperm.xlu0 %5406, %v3932
        %v5408 = vpop.permute.xlu0 %5407
        %5409 = vset.pattern.permute.xlu0 0
        %5410 = vperm.xlu0 %5409, %v3981
        %v5411 = vpop.permute.xlu0 %5410
        %5412 = vset.pattern.permute.xlu0 0
        %5413 = vperm.xlu0 %5412, %v4030
        %v5414 = vpop.permute.xlu0 %5413
        %5415 = vset.pattern.permute.xlu0 0
        %5416 = vperm.xlu0 %5415, %v4079
        %v5417 = vpop.permute.xlu0 %5416
        %5418 = vset.pattern.permute.xlu0 0
        %5419 = vperm.xlu0 %5418, %v4128
        %v5420 = vpop.permute.xlu0 %5419
        %5421 = vset.pattern.permute.xlu0 0
        %5422 = vperm.xlu0 %5421, %v4177
        %v5423 = vpop.permute.xlu0 %5422
        %5424 = vset.pattern.permute.xlu0 0
        %5425 = vperm.xlu0 %5424, %v4226
        %v5426 = vpop.permute.xlu0 %5425
        %5427 = vset.pattern.permute.xlu0 0
        %5428 = vperm.xlu0 %5427, %v4275
        %v5429 = vpop.permute.xlu0 %5428
        %5430 = vset.pattern.permute.xlu0 0
        %5431 = vperm.xlu0 %5430, %v4324
        %v5432 = vpop.permute.xlu0 %5431
        %5433 = vset.pattern.permute.xlu0 0
        %5434 = vperm.xlu0 %5433, %v4373
        %v5435 = vpop.permute.xlu0 %5434
        %5436 = vset.pattern.permute.xlu0 0
        %5437 = vperm.xlu0 %5436, %v4422
        %v5438 = vpop.permute.xlu0 %5437
        %5439 = vset.pattern.permute.xlu0 0
        %5440 = vperm.xlu0 %5439, %v4471
        %v5441 = vpop.permute.xlu0 %5440
        %5442 = vset.pattern.permute.xlu0 0
        %5443 = vperm.xlu0 %5442, %v4520
        %v5444 = vpop.permute.xlu0 %5443
        %5445 = vset.pattern.permute.xlu0 0
        %5446 = vperm.xlu0 %5445, %v4569
        %v5447 = vpop.permute.xlu0 %5446
        %5448 = vset.pattern.permute.xlu0 0
        %5449 = vperm.xlu0 %5448, %v4618
        %v5450 = vpop.permute.xlu0 %5449
        %5451 = vset.pattern.permute.xlu0 0
        %5452 = vperm.xlu0 %5451, %v4667
        %v5453 = vpop.permute.xlu0 %5452
        %5454 = vset.pattern.permute.xlu0 0
        %5455 = vperm.xlu0 %5454, %v4716
        %v5456 = vpop.permute.xlu0 %5455
        %5457 = vset.pattern.permute.xlu0 0
        %5458 = vperm.xlu0 %5457, %v4765
        %v5459 = vpop.permute.xlu0 %5458
        %5460 = vset.pattern.permute.xlu0 0
        %5461 = vperm.xlu0 %5460, %v4814
        %v5462 = vpop.permute.xlu0 %5461
        %5463 = vset.pattern.permute.xlu0 0
        %5464 = vperm.xlu0 %5463, %v4863
        %v5465 = vpop.permute.xlu0 %5464
        %5466 = vset.pattern.permute.xlu0 0
        %5467 = vperm.xlu0 %5466, %v4912
        %v5468 = vpop.permute.xlu0 %5467
        %5469 = vset.pattern.permute.xlu0 0
        %5470 = vperm.xlu0 %5469, %v4961
        %v5471 = vpop.permute.xlu0 %5470
        %5472 = vset.pattern.permute.xlu0 0
        %5473 = vperm.xlu0 %5472, %v5010
        %v5474 = vpop.permute.xlu0 %5473
        %5475 = vset.pattern.permute.xlu0 0
        %5476 = vperm.xlu0 %5475, %v5059
        %v5477 = vpop.permute.xlu0 %5476
        %5478 = vset.pattern.permute.xlu0 0
        %5479 = vperm.xlu0 %5478, %v5108
        %v5480 = vpop.permute.xlu0 %5479
        %5481 = vset.pattern.permute.xlu0 0
        %5482 = vperm.xlu0 %5481, %v5157
        %v5483 = vpop.permute.xlu0 %5482
        %5484 = vset.pattern.permute.xlu0 0
        %5485 = vperm.xlu0 %5484, %v5206
        %v5486 = vpop.permute.xlu0 %5485
        %5487 = vset.pattern.permute.xlu0 0
        %5488 = vperm.xlu0 %5487, %v5255
        %v5489 = vpop.permute.xlu0 %5488
        %5490 = vset.pattern.permute.xlu0 0
        %5491 = vperm.xlu0 %5490, %v5304
        %v5492 = vpop.permute.xlu0 %5491
        %5493 = vset.pattern.permute.xlu0 0
        %5494 = vperm.xlu0 %5493, %v5353
        %v5495 = vpop.permute.xlu0 %5494
        %5496 = vset.pattern.permute.xlu0 0
        %5497 = vperm.xlu0 %5496, %v5402
        %v5498 = vpop.permute.xlu0 %5497
        %v5499 = vlaneseq
        %v5500 = vshrl.u32 %v5499, 7
        %v5501 = vsub.s32 %v821, %v5500
        %v5502 = vrot.slane %v5405, %v5501
        %v5503 = vadd.s32 %v821, 4294967288
        %v5504 = vlaneseq
        %v5505 = vshrl.u32 %v5504, 7
        %v5506 = vsub.s32 %v5503, %v5505
        %v5507 = vrot.slane %v5408, %v5506
        %vm5508 = vcmask 130112
        %v5509 = vsel %vm5508, %v5507, %v5502
        %v5510 = vadd.s32 %v821, 4294967280
        %v5511 = vlaneseq
        %v5512 = vshrl.u32 %v5511, 7
        %v5513 = vsub.s32 %v5510, %v5512
        %v5514 = vrot.slane %v5411, %v5513
        %vm5515 = vcmask 195712
        %v5516 = vsel %vm5515, %v5514, %v5509
        %v5517 = vadd.s32 %v821, 4294967272
        %v5518 = vlaneseq
        %v5519 = vshrl.u32 %v5518, 7
        %v5520 = vsub.s32 %v5517, %v5519
        %v5521 = vrot.slane %v5414, %v5520
        %vm5522 = vcmask 261312
        %v5523 = vsel %vm5522, %v5521, %v5516
        %v5524 = vadd.s32 %v821, 4294967264
        %v5525 = vlaneseq
        %v5526 = vshrl.u32 %v5525, 7
        %v5527 = vsub.s32 %v5524, %v5526
        %v5528 = vrot.slane %v5417, %v5527
        %vm5529 = vcmask 326912
        %v5530 = vsel %vm5529, %v5528, %v5523
        %v5531 = vadd.s32 %v821, 4294967256
        %v5532 = vlaneseq
        %v5533 = vshrl.u32 %v5532, 7
        %v5534 = vsub.s32 %v5531, %v5533
        %v5535 = vrot.slane %v5420, %v5534
        %vm5536 = vcmask 392512
        %v5537 = vsel %vm5536, %v5535, %v5530
        %v5538 = vadd.s32 %v821, 4294967248
        %v5539 = vlaneseq
        %v5540 = vshrl.u32 %v5539, 7
        %v5541 = vsub.s32 %v5538, %v5540
        %v5542 = vrot.slane %v5423, %v5541
        %vm5543 = vcmask 458112
        %v5544 = vsel %vm5543, %v5542, %v5537
        %v5545 = vadd.s32 %v821, 4294967240
        %v5546 = vlaneseq
        %v5547 = vshrl.u32 %v5546, 7
        %v5548 = vsub.s32 %v5545, %v5547
        %v5549 = vrot.slane %v5426, %v5548
        %vm5550 = vcmask 523712
        %v5551 = vsel %vm5550, %v5549, %v5544
        %v5552 = vadd.s32 %v821, 4294967232
        %v5553 = vlaneseq
        %v5554 = vshrl.u32 %v5553, 7
        %v5555 = vsub.s32 %v5552, %v5554
        %v5556 = vrot.slane %v5429, %v5555
        %vm5557 = vcmask 589312
        %v5558 = vsel %vm5557, %v5556, %v5551
        %v5559 = vadd.s32 %v821, 4294967224
        %v5560 = vlaneseq
        %v5561 = vshrl.u32 %v5560, 7
        %v5562 = vsub.s32 %v5559, %v5561
        %v5563 = vrot.slane %v5432, %v5562
        %vm5564 = vcmask 654912
        %v5565 = vsel %vm5564, %v5563, %v5558
        %v5566 = vadd.s32 %v821, 4294967216
        %v5567 = vlaneseq
        %v5568 = vshrl.u32 %v5567, 7
        %v5569 = vsub.s32 %v5566, %v5568
        %v5570 = vrot.slane %v5435, %v5569
        %vm5571 = vcmask 720512
        %v5572 = vsel %vm5571, %v5570, %v5565
        %v5573 = vadd.s32 %v821, 4294967208
        %v5574 = vlaneseq
        %v5575 = vshrl.u32 %v5574, 7
        %v5576 = vsub.s32 %v5573, %v5575
        %v5577 = vrot.slane %v5438, %v5576
        %vm5578 = vcmask 786112
        %v5579 = vsel %vm5578, %v5577, %v5572
        %v5580 = vadd.s32 %v821, 4294967200
        %v5581 = vlaneseq
        %v5582 = vshrl.u32 %v5581, 7
        %v5583 = vsub.s32 %v5580, %v5582
        %v5584 = vrot.slane %v5441, %v5583
        %vm5585 = vcmask 851712
        %v5586 = vsel %vm5585, %v5584, %v5579
        %v5587 = vadd.s32 %v821, 4294967192
        %v5588 = vlaneseq
        %v5589 = vshrl.u32 %v5588, 7
        %v5590 = vsub.s32 %v5587, %v5589
        %v5591 = vrot.slane %v5444, %v5590
        %vm5592 = vcmask 917312
        %v5593 = vsel %vm5592, %v5591, %v5586
        %v5594 = vadd.s32 %v821, 4294967184
        %v5595 = vlaneseq
        %v5596 = vshrl.u32 %v5595, 7
        %v5597 = vsub.s32 %v5594, %v5596
        %v5598 = vrot.slane %v5447, %v5597
        %vm5599 = vcmask 982912
        %v5600 = vsel %vm5599, %v5598, %v5593
        %v5601 = vadd.s32 %v821, 4294967176
        %v5602 = vlaneseq
        %v5603 = vshrl.u32 %v5602, 7
        %v5604 = vsub.s32 %v5601, %v5603
        %v5605 = vrot.slane %v5450, %v5604
        %vm5606 = vcmask 1048512
        %v5607 = vsel %vm5606, %v5605, %v5600
        %v5608 = vlaneseq
        %v5609 = vshrl.u32 %v5608, 7
        %v5610 = vsub.s32 %v821, %v5609
        %v5611 = vrot.slane %v5453, %v5610
        %v5612 = vlaneseq
        %v5613 = vshrl.u32 %v5612, 7
        %v5614 = vsub.s32 %v5503, %v5613
        %v5615 = vrot.slane %v5456, %v5614
        %v5616 = vsel %vm5508, %v5615, %v5611
        %v5617 = vlaneseq
        %v5618 = vshrl.u32 %v5617, 7
        %v5619 = vsub.s32 %v5510, %v5618
        %v5620 = vrot.slane %v5459, %v5619
        %v5621 = vsel %vm5515, %v5620, %v5616
        %v5622 = vlaneseq
        %v5623 = vshrl.u32 %v5622, 7
        %v5624 = vsub.s32 %v5517, %v5623
        %v5625 = vrot.slane %v5462, %v5624
        %v5626 = vsel %vm5522, %v5625, %v5621
        %v5627 = vlaneseq
        %v5628 = vshrl.u32 %v5627, 7
        %v5629 = vsub.s32 %v5524, %v5628
        %v5630 = vrot.slane %v5465, %v5629
        %v5631 = vsel %vm5529, %v5630, %v5626
        %v5632 = vlaneseq
        %v5633 = vshrl.u32 %v5632, 7
        %v5634 = vsub.s32 %v5531, %v5633
        %v5635 = vrot.slane %v5468, %v5634
        %v5636 = vsel %vm5536, %v5635, %v5631
        %v5637 = vlaneseq
        %v5638 = vshrl.u32 %v5637, 7
        %v5639 = vsub.s32 %v5538, %v5638
        %v5640 = vrot.slane %v5471, %v5639
        %v5641 = vsel %vm5543, %v5640, %v5636
        %v5642 = vlaneseq
        %v5643 = vshrl.u32 %v5642, 7
        %v5644 = vsub.s32 %v5545, %v5643
        %v5645 = vrot.slane %v5474, %v5644
        %v5646 = vsel %vm5550, %v5645, %v5641
        %v5647 = vlaneseq
        %v5648 = vshrl.u32 %v5647, 7
        %v5649 = vsub.s32 %v5552, %v5648
        %v5650 = vrot.slane %v5477, %v5649
        %v5651 = vsel %vm5557, %v5650, %v5646
        %v5652 = vlaneseq
        %v5653 = vshrl.u32 %v5652, 7
        %v5654 = vsub.s32 %v5559, %v5653
        %v5655 = vrot.slane %v5480, %v5654
        %v5656 = vsel %vm5564, %v5655, %v5651
        %v5657 = vlaneseq
        %v5658 = vshrl.u32 %v5657, 7
        %v5659 = vsub.s32 %v5566, %v5658
        %v5660 = vrot.slane %v5483, %v5659
        %v5661 = vsel %vm5571, %v5660, %v5656
        %v5662 = vlaneseq
        %v5663 = vshrl.u32 %v5662, 7
        %v5664 = vsub.s32 %v5573, %v5663
        %v5665 = vrot.slane %v5486, %v5664
        %v5666 = vsel %vm5578, %v5665, %v5661
        %v5667 = vlaneseq
        %v5668 = vshrl.u32 %v5667, 7
        %v5669 = vsub.s32 %v5580, %v5668
        %v5670 = vrot.slane %v5489, %v5669
        %v5671 = vsel %vm5585, %v5670, %v5666
        %v5672 = vlaneseq
        %v5673 = vshrl.u32 %v5672, 7
        %v5674 = vsub.s32 %v5587, %v5673
        %v5675 = vrot.slane %v5492, %v5674
        %v5676 = vsel %vm5592, %v5675, %v5671
        %v5677 = vlaneseq
        %v5678 = vshrl.u32 %v5677, 7
        %v5679 = vsub.s32 %v5594, %v5678
        %v5680 = vrot.slane %v5495, %v5679
        %v5681 = vsel %vm5599, %v5680, %v5676
        %v5682 = vlaneseq
        %v5683 = vshrl.u32 %v5682, 7
        %v5684 = vsub.s32 %v5601, %v5683
        %v5685 = vrot.slane %v5498, %v5684
        %v5686 = vsel %vm5606, %v5685, %v5681
        %v5687 = vcombine.low %v5607, %v5686
        %v5689 = vunpack.c.l.s4 1966171168
        %v5690 = vunpack.c.0.s8 %v5689
        %v5691 = vlaneseq
        %v5692 = vshrl.u32 %v5691, 7
        %v5693 = vsub.s32 %v5690, %v5692
        %v5694 = vrot.slane %v5687, %v5693
        %v5696 = vunpack.c.l.s4 1966171168
        %v5697 = vunpack.c.0.s8 %v5696
        %v5698 = vlaneseq
        %v5699 = vshrl.u32 %v5698, 7
        %v5700 = vsub.s32 %v5697, %v5699
        %v5701 = vrot.slane %v5694, %v5700
        %v5702 = vlaneseq
        %vm5703 = vcmp.ge.s32.totalorder %v5702, 0
        %vm5704 = vcmp.lt.s32.totalorder %v5702, 256
        %vm5705 = vmand %vm5703, %vm5704
        %5706 = vst.msk [vmem:[%s209] sm:$0x3] %vm5705, %v5701
        %s5707 = sand.u32 %s95, 1
        %s5708 = scalar_lea.sflag [#allocation3], %s5707
        %s5709 = sand.u32 %s95, 1
        %s5710 = smul.addr %s5709, 256
        %s5711 = scalar_lea.vmem [#allocation2], %s5710
        %p5712 = scmp.lt.s32.totalorder %s19, 1
        %s5713 = scalar_select %p5712, %s19, 1
        %s5714 = smul.addr %s5713, 2
        %s5715 = scalar_lea.vmem %s4, %s5714
        // Predicated region
        $region33: #{cosine_sim_codebook_forward.1} parent=31 // pred_check
          %p5716 = pneg %p105
        $region34: #{cosine_sim_codebook_forward.1} parent=31 // pred_check_branch
          %5718 = sbr.rel (%p5716) target = $region36
        $region35: #{cosine_sim_codebook_forward.1} parent=31 // pred_region
          %s5719 = smul.u32 32, %s19
          %s5721 = ssub.s32 4096, 4096
          %5722 = vsyncadd %s5708, %s5721
          %s5723 = smul.addr %s5719, 128
          %s5724 = scalar_lea.hbm %s3, %s5723
          %s5725 = sshll.u32 %s5711, 4
          %s5726 = int_to_ptr.vmem [resolvable:$true] %s5725
          %5731 = dma.vmem_to_hbm [thread:$0]  %s5726, 4096, %s5724, %s5708, 128, 128, 8
        $region36: #{cosine_sim_codebook_forward.1} parent=31 // pred_fallthru
          _
        // Predicated region
        $region37: #{cosine_sim_codebook_forward.1} parent=31 // pred_check
          %p5732 = pneg %p131
        $region38: #{cosine_sim_codebook_forward.1} parent=31 // pred_check_branch
          %5734 = sbr.rel (%p5732) target = $region40
        $region39: #{cosine_sim_codebook_forward.1} parent=31 // pred_region
          _
        $region40: #{cosine_sim_codebook_forward.1} parent=31 // pred_fallthru
          _
      $region32: #{cosine_sim_codebook_forward.1} parent=5 // pred_fallthru
        _
      %p5735 = scmp.le.s32.totalorder 2, %s14
      // Predicated region
      $region41: #{cosine_sim_codebook_forward.1} parent=5 // pred_check
        %p5736 = pneg %p5735
      $region42: #{cosine_sim_codebook_forward.1} parent=5 // pred_check_branch
        %5738 = sbr.rel (%p5736) target = $region44
      $region43: #{cosine_sim_codebook_forward.1} parent=5 // pred_region
        %s5739 = ssub.s32 %s14, 2
        // Predicated region
        $region45: #{cosine_sim_codebook_forward.1} parent=43 // pred_check
          %p5740 = pneg %p111
        $region46: #{cosine_sim_codebook_forward.1} parent=43 // pred_check_branch
          %5742 = sbr.rel (%p5740) target = $region48
        $region47: #{cosine_sim_codebook_forward.1} parent=43 // pred_region
          %s5743 = sand.u32 %s96, 1
          %s5744 = scalar_lea.sflag [#allocation3], %s5743
          %s5745 = sand.u32 %s96, 1
          %s5746 = smul.addr %s5745, 256
          %s5747 = scalar_lea.vmem [#allocation2], %s5746
          %5748 = dma.done %s5744, 4096
        $region48: #{cosine_sim_codebook_forward.1} parent=43 // pred_fallthru
          _
        // Predicated region
        $region49: #{cosine_sim_codebook_forward.1} parent=43 // pred_check
          %p5749 = pneg %p137
        $region50: #{cosine_sim_codebook_forward.1} parent=43 // pred_check_branch
          %5751 = sbr.rel (%p5749) target = $region52
        $region51: #{cosine_sim_codebook_forward.1} parent=43 // pred_region
          %p5752 = scmp.lt.s32.totalorder %s20, 1
          %s5753 = scalar_select %p5752, %s20, 1
          %s5754 = smul.addr %s5753, 2
          %s5755 = scalar_lea.vmem %s4, %s5754
        $region52: #{cosine_sim_codebook_forward.1} parent=43 // pred_fallthru
          _
      $region44: #{cosine_sim_codebook_forward.1} parent=5 // pred_fallthru
        _
    $region6: #{cosine_sim_codebook_forward.1} parent=1 // loop_footer
      %s18 = sadd.s32 1, %s14
    $region7: #{cosine_sim_codebook_forward.1} parent=1 // loop_footer_branch
      %13 = sbr.rel target = $region3
    $region8: #{cosine_sim_codebook_forward.1} parent=1 // loop_exit
      _
    %5756 = vsyncpa [#allocation3], 1
    %s5757 = scalar_lea.sflag [#allocation3], 1
    %5758 = vsyncpa %s5757, 1

</llo_original>
